<compile_context>
chip_gen: v7x
topology: tpu7x:2x2x1
jax: 0.10.0
libtpu: 0.0.40
codegen_flags: <defaults>
</compile_context>

<pallas_src>
import functools

import jax
import jax.numpy as jnp
from jax import lax
from jax.experimental import pallas as pl
from jax.experimental.pallas import tpu as pltpu


def _rcnn_kernel(x_ref,            # (L, TB, Hp)   time-major batch tile
                 wih_ref,          # (Hp, 6Hp)     fused input-proj weights [fwd r|z|n | bwd r|z|n]
                 bi_ref,           # (1, 6Hp)      folded biases for the hoisted projection
                 whh_ref,          # (2Hp, 6Hp)    block-diagonal recurrent weights (fwd ⊕ bwd)
                 bhn_f_ref,        # (1, Hp)
                 bhn_b_ref,        # (1, Hp)
                 wout_ref,         # (2Hp, Hp)     conv+project pre-added, rows [fwd; bwd]
                 bo_ref,           # (1, Hp)
                 out_ref,          # (L, TB, Hp)
                 gi_s,             # (L*TB, 6Hp)   hoisted input projections, both directions
                 gru_s,            # (L*TB, 2Hp)   bi-GRU outputs [fwd | bwd]
                 *, L, TB, Hp):
    H3 = 3 * Hp

    # ---- hoisted input projection, both directions fused: one big MXU matmul ----------
    x = x_ref[...].reshape(L * TB, Hp)
    gi_s[...] = jnp.dot(x, wih_ref[...], preferred_element_type=jnp.float32) + bi_ref[...]

    # hoist weight / bias loads and broadcasts out of the sequential loop
    whh = whh_ref[...]
    bhn_f = jnp.broadcast_to(bhn_f_ref[...], (TB, Hp))
    bhn_b = jnp.broadcast_to(bhn_b_ref[...], (TB, Hp))

    def step(t, h):                                   # h = [h_f | h_b], (TB, 2Hp)
        rf = pl.multiple_of(t * TB, TB)               # forward-direction time index
        rb = pl.multiple_of((L - 1 - t) * TB, TB)     # backward-direction time index
        gi_f = gi_s[pl.ds(rf, TB), :H3]               # (TB, 3Hp)
        gi_b = gi_s[pl.ds(rb, TB), H3:]               # (TB, 3Hp)

        # one block-diagonal recurrent matmul for both directions per timestep
        gh = jnp.dot(h, whh, preferred_element_type=jnp.float32)   # (TB, 6Hp)
        h_f = h[:, :Hp]
        h_b = h[:, Hp:]

        r_f = jax.nn.sigmoid(gi_f[:, :Hp] + gh[:, :Hp])
        z_f = jax.nn.sigmoid(gi_f[:, Hp:2 * Hp] + gh[:, Hp:2 * Hp])
        n_f = jnp.tanh(gi_f[:, 2 * Hp:] + r_f * (gh[:, 2 * Hp:H3] + bhn_f))

        r_b = jax.nn.sigmoid(gi_b[:, :Hp] + gh[:, H3:H3 + Hp])
        z_b = jax.nn.sigmoid(gi_b[:, Hp:2 * Hp] + gh[:, H3 + Hp:H3 + 2 * Hp])
        n_b = jnp.tanh(gi_b[:, 2 * Hp:] + r_b * (gh[:, H3 + 2 * Hp:] + bhn_b))

        h_f = (1.0 - z_f) * n_f + z_f * h_f
        h_b = (1.0 - z_b) * n_b + z_b * h_b

        # lane-dense stores (Hp is a multiple of 128)
        gru_s[pl.ds(rf, TB), :Hp] = h_f
        gru_s[pl.ds(rb, TB), Hp:] = h_b
        return jnp.concatenate([h_f, h_b], axis=1)

    h0 = jnp.zeros((TB, 2 * Hp), jnp.float32)
    lax.fori_loop(0, L, step, h0, unroll=min(L, 8))

    # ---- fused conv + project 1x1, residual add, ReLU: ONE (L*TB,2Hp)@(2Hp,Hp) matmul --
    out = jnp.maximum(
        jnp.dot(gru_s[...], wout_ref[...], preferred_element_type=jnp.float32) + bo_ref[...],
        0.0)
    out_ref[...] = out.reshape(L, TB, Hp)


# ---------------------------------------------------------------------------
# Wrapper: weight packing (with lane padding) + pallas_call
# ---------------------------------------------------------------------------
def _pad2(a, rows, cols):
    return jnp.pad(a, ((0, rows - a.shape[0]), (0, cols - a.shape[1])))


def _pack_direction(w_ih, w_hh, b_ih, b_hh, H, Hp):
    w_ih = jnp.asarray(w_ih, jnp.float32).T          # (H, 3H), gate columns r|z|n
    w_hh = jnp.asarray(w_hh, jnp.float32).T
    b_ih = jnp.asarray(b_ih, jnp.float32)
    b_hh = jnp.asarray(b_hh, jnp.float32)

    wih = jnp.concatenate(
        [_pad2(w_ih[:, g * H:(g + 1) * H], Hp, Hp) for g in range(3)], axis=1)  # (Hp, 3Hp)
    whh = jnp.concatenate(
        [_pad2(w_hh[:, g * H:(g + 1) * H], Hp, Hp) for g in range(3)], axis=1)  # (Hp, 3Hp)

    # fold b_ih (all gates) and b_hh (r, z) into the hoisted projection;
    # keep b_hn separate (it lives inside r * (W_hn h + b_hn)).
    def gate_bias(g):
        b = b_ih[g * H:(g + 1) * H]
        if g < 2:
            b = b + b_hh[g * H:(g + 1) * H]
        return jnp.pad(b, (0, Hp - H))

    bi = jnp.concatenate([gate_bias(0), gate_bias(1), gate_bias(2)]).reshape(1, 3 * Hp)
    bhn = jnp.pad(b_hh[2 * H:], (0, Hp - H)).reshape(1, Hp)
    return wih, whh, bi, bhn


def _pack_output(conv_w, conv_b, proj_w, proj_b, H, Hp):
    # conv and project are both linear and feed the same ReLU -> pre-add the weights.
    w = jnp.asarray(conv_w, jnp.float32)[:, :, 0] + jnp.asarray(proj_w, jnp.float32)[:, :, 0]
    w0 = _pad2(w[:, :H].T, Hp, Hp)                   # forward half, (Hp, Hp)
    w1 = _pad2(w[:, H:].T, Hp, Hp)                   # backward half
    wout = jnp.concatenate([w0, w1], axis=0)         # (2Hp, Hp)
    bo = jnp.pad(jnp.asarray(conv_b, jnp.float32) + jnp.asarray(proj_b, jnp.float32),
                 (0, Hp - H)).reshape(1, Hp)
    return wout, bo


def _vmem_limit_bytes():
    cap = None
    try:
        cap = getattr(pltpu.get_tpu_info(), "vmem_capacity_bytes", None)
    except Exception:
        cap = None
    if not cap:
        cap = 64 * 1024 * 1024          # conservative fallback (v7x per-core VMEM)
    return int(cap * 0.85)              # ~15% headroom for compiler internal scratch


def residual_rcnn_block(x, raw):
    """x: (B, hidden_dim, L) float32 -> (B, hidden_dim, L) float32."""
    B, H, L = x.shape
    Hp = ((H + 127) // 128) * 128                    # lane-dense feature dim

    vmem_limit = _vmem_limit_bytes()

    wih_f, whh_f, bi_f, bhn_f = _pack_direction(
        raw['w_ih_f'], raw['w_hh_f'], raw['b_ih_f'], raw['b_hh_f'], H, Hp)
    wih_b, whh_b, bi_b, bhn_b = _pack_direction(
        raw['w_ih_b'], raw['w_hh_b'], raw['b_ih_b'], raw['b_hh_b'], H, Hp)

    wih = jnp.concatenate([wih_f, wih_b], axis=1)                   # (Hp, 6Hp)
    bi = jnp.concatenate([bi_f, bi_b], axis=1)                      # (1, 6Hp)
    whh = jnp.zeros((2 * Hp, 6 * Hp), jnp.float32)                  # block-diagonal fused
    whh = whh.at[:Hp, :3 * Hp].set(whh_f).at[Hp:, 3 * Hp:].set(whh_b)
    wout, bo = _pack_output(raw['conv_w'], raw['conv_b'], raw['proj_w'], raw['proj_b'], H, Hp)

    weight_bytes = 4 * (wih.size + bi.size + whh.size + bhn_f.size + bhn_b.size
                        + wout.size + bo.size)

    # batch tile: largest power-of-two multiple of 8 whose resident footprint (x + out
    # double-buffered + gi + gru scratch) fits within a conservative VMEM budget.
    b8 = ((B + 7) // 8) * 8
    budget = max(vmem_limit // 2 - weight_bytes, 1 << 20)
    TB = 8
    while TB * 2 <= b8 and 4 * L * (TB * 2) * Hp * 12 <= budget:
        TB *= 2
    Bp = ((b8 + TB - 1) // TB) * TB
    n_tiles = Bp // TB

    # TODO(synk): the (B,H,L)<->(L,B,H) transposes below are extra HBM passes; accept /
    #   return a time-major layout from the caller to eliminate them.
    x_lbh = jnp.transpose(x, (2, 0, 1)).astype(jnp.float32)         # (L, B, H)
    x_lbh = jnp.pad(x_lbh, ((0, 0), (0, Bp - B), (0, Hp - H)))      # (L, Bp, Hp)

    kernel = functools.partial(_rcnn_kernel, L=L, TB=TB, Hp=Hp)

    out3d = pl.pallas_call(
        kernel,
        out_shape=jax.ShapeDtypeStruct((L, Bp, Hp), jnp.float32),
        grid_spec=pltpu.PrefetchScalarGridSpec(
            num_scalar_prefetch=0,
            grid=(n_tiles,),
            in_specs=[
                pl.BlockSpec((L, TB, Hp), lambda b: (0, b, 0)),      # x batch tile
                pl.BlockSpec((Hp, 6 * Hp), lambda b: (0, 0)),        # wih (fused)
                pl.BlockSpec((1, 6 * Hp), lambda b: (0, 0)),         # bi
                pl.BlockSpec((2 * Hp, 6 * Hp), lambda b: (0, 0)),    # whh (block-diagonal)
                pl.BlockSpec((1, Hp), lambda b: (0, 0)),             # bhn_f
                pl.BlockSpec((1, Hp), lambda b: (0, 0)),             # bhn_b
                pl.BlockSpec((2 * Hp, Hp), lambda b: (0, 0)),        # wout
                pl.BlockSpec((1, Hp), lambda b: (0, 0)),             # bo
            ],
            out_specs=pl.BlockSpec((L, TB, Hp), lambda b: (0, b, 0)),
            scratch_shapes=[
                pltpu.VMEM((L * TB, 6 * Hp), jnp.float32),           # hoisted gi (both dirs)
                pltpu.VMEM((L * TB, 2 * Hp), jnp.float32),           # bi-GRU outputs
            ]),
        compiler_params=pltpu.CompilerParams(
            dimension_semantics=("parallel",),
            vmem_limit_bytes=vmem_limit),
    )(x_lbh, wih, bi, whh, bhn_f, bhn_b, wout, bo)

    out_lbh = out3d[:, :B, :H]                                       # drop batch/lane padding
    return jnp.transpose(out_lbh, (1, 2, 0))                         # (B, H, L)


# ---------------------------------------------------------------------------
# Pure-JAX reference (mirrors torch semantics) for correctness checking.
# ---------------------------------------------------------------------------
def _reference(x, raw):
    B, H, L = x.shape
    xs = jnp.transpose(x, (2, 0, 1))              # (L, B, H)

    def run_dir(w_ih, w_hh, b_ih, b_hh, reverse):
        seq = xs[::-1] if reverse else xs

        def step(h, x_t):
            gi = x_t @ w_ih.T + b_ih
            gh = h @ w_hh.T + b_hh
            r = jax.nn.sigmoid(gi[:, :H] + gh[:, :H])
            z = jax.nn.sigmoid(gi[:, H:2 * H] + gh[:, H:2 * H])
            n = jnp.tanh(gi[:, 2 * H:] + r * gh[:, 2 * H:])
            h = (1.0 - z) * n + z * h
            return h, h

        _, ys = lax.scan(step, jnp.zeros((B, H), jnp.float32), seq)
        return ys[::-1] if reverse else ys        # (L, B, H)

    of = run_dir(raw['w_ih_f'], raw['w_hh_f'], raw['b_ih_f'], raw['b_hh_f'], False)
    ob = run_dir(raw['w_ih_b'], raw['w_hh_b'], raw['b_ih_b'], raw['b_hh_b'], True)
    gru = jnp.transpose(jnp.concatenate([of, ob], axis=-1), (1, 2, 0))   # (B, 2H, L)

    def conv1x1(z, w, b):
        return jnp.einsum('bcl,oc->bol', z, w[:, :, 0]) + b[None, :, None]

    residual = conv1x1(gru, raw['proj_w'], raw['proj_b'])
    out = conv1x1(gru, raw['conv_w'], raw['conv_b'])
    return jnp.maximum(out + residual, 0.0)


def _init_params(key, H):
    kg = 1.0 / jnp.sqrt(H)
    kc = 1.0 / jnp.sqrt(2 * H)
    ks = jax.random.split(key, 12)

    def u(k, shape, scale):
        return jax.random.uniform(k, shape, jnp.float32, -scale, scale)

    return {
        'w_ih_f': u(ks[0], (3 * H, H), kg), 'w_hh_f': u(ks[1], (3 * H, H), kg),
        'b_ih_f': u(ks[2], (3 * H,), kg),   'b_hh_f': u(ks[3], (3 * H,), kg),
        'w_ih_b': u(ks[4], (3 * H, H), kg), 'w_hh_b': u(ks[5], (3 * H, H), kg),
        'b_ih_b': u(ks[6], (3 * H,), kg),   'b_hh_b': u(ks[7], (3 * H,), kg),
        'conv_w': u(ks[8], (H, 2 * H, 1), kc), 'conv_b': u(ks[9], (H,), kc),
        'proj_w': u(ks[10], (H, 2 * H, 1), kc), 'proj_b': u(ks[11], (H,), kc),
    }


if __name__ == "__main__":
    B, H, L = 2, 32, 8                         # batch, hidden_dim, sequence length
    key = jax.random.PRNGKey(0)
    kx, kp = jax.random.split(key)
    x = jax.random.normal(kx, (B, H, L), jnp.float32)
    params = _init_params(kp, H)

    out = jax.block_until_ready(residual_rcnn_block(x, params))
    ref = jax.block_until_ready(_reference(x, params))

    assert out.shape == (B, H, L)
    assert jnp.allclose(out, ref, atol=1e-4, rtol=1e-4), "Pallas kernel mismatch vs reference"
    print("KERNEL_OK")
</pallas_src>

<mosaic_0001>
module attributes {stable_mosaic.version = 11 : i64} {
  func.func @_rcnn_kernel(%arg0: i32, %arg1: memref<8x8x128xf32, #tpu.memory_space<vmem>>, %arg2: memref<128x768xf32, #tpu.memory_space<vmem>>, %arg3: memref<1x768xf32, #tpu.memory_space<vmem>>, %arg4: memref<256x768xf32, #tpu.memory_space<vmem>>, %arg5: memref<1x128xf32, #tpu.memory_space<vmem>>, %arg6: memref<1x128xf32, #tpu.memory_space<vmem>>, %arg7: memref<256x128xf32, #tpu.memory_space<vmem>>, %arg8: memref<1x128xf32, #tpu.memory_space<vmem>>, %arg9: memref<8x8x128xf32, #tpu.memory_space<vmem>>, %arg10: memref<64x768xf32, #tpu.memory_space<vmem>>, %arg11: memref<64x256xf32, #tpu.memory_space<vmem>>) attributes {dimension_semantics = [#tpu.dimension_semantics<parallel>], iteration_bounds = array<i64: 1>, scalar_prefetch = 0 : i64, scratch_operands = 2 : i64, tpu.core_type = #tpu.core_type<tc>, window_params = [{transform_indices = @transform_0, window_bounds = array<i64: 8, 8, 128>}, {pipeline_mode = #tpu.pipeline_mode<synchronous>, transform_indices = @transform_1, window_bounds = array<i64: 128, 768>}, {pipeline_mode = #tpu.pipeline_mode<synchronous>, transform_indices = @transform_2, window_bounds = array<i64: 1, 768>}, {pipeline_mode = #tpu.pipeline_mode<synchronous>, transform_indices = @transform_3, window_bounds = array<i64: 256, 768>}, {pipeline_mode = #tpu.pipeline_mode<synchronous>, transform_indices = @transform_4, window_bounds = array<i64: 1, 128>}, {pipeline_mode = #tpu.pipeline_mode<synchronous>, transform_indices = @transform_5, window_bounds = array<i64: 1, 128>}, {pipeline_mode = #tpu.pipeline_mode<synchronous>, transform_indices = @transform_6, window_bounds = array<i64: 256, 128>}, {pipeline_mode = #tpu.pipeline_mode<synchronous>, transform_indices = @transform_7, window_bounds = array<i64: 1, 128>}, {transform_indices = @transform_8, window_bounds = array<i64: 8, 8, 128>}]} {
    %c0 = arith.constant 0 : index
    %c0_0 = arith.constant 0 : index
    %c0_1 = arith.constant 0 : index
    %0 = vector.load %arg1[%c0, %c0_0, %c0_1] : memref<8x8x128xf32, #tpu.memory_space<vmem>>, vector<8x8x128xf32>
    %1 = vector.shape_cast %0 : vector<8x8x128xf32> to vector<64x128xf32>
    %c0_2 = arith.constant 0 : index
    %c0_3 = arith.constant 0 : index
    %2 = vector.load %arg2[%c0_2, %c0_3] : memref<128x768xf32, #tpu.memory_space<vmem>>, vector<128x768xf32>
    %cst = arith.constant dense<0.000000e+00> : vector<64x768xf32>
    %3 = tpu.matmul %1, %2, %cst {dimension_numbers = #tpu.dot_dimension_numbers<[1], [0], [0], [1], [0, 0, 1, 1], [], []>} : vector<64x128xf32>, vector<128x768xf32>, vector<64x768xf32> -> vector<64x768xf32>
    %c0_4 = arith.constant 0 : index
    %c0_5 = arith.constant 0 : index
    %4 = vector.load %arg3[%c0_4, %c0_5] : memref<1x768xf32, #tpu.memory_space<vmem>>, vector<1x768xf32>
    %5 = vector.broadcast %4 : vector<1x768xf32> to vector<64x768xf32>
    %6 = arith.addf %3, %5 : vector<64x768xf32>
    %c0_6 = arith.constant 0 : index
    %c0_7 = arith.constant 0 : index
    %7 = vector.load %arg10[%c0_6, %c0_7] : memref<64x768xf32, #tpu.memory_space<vmem>>, vector<64x768xf32>
    tpu.vector_store %arg10[%c0_6, %c0_7], %6 {strides = array<i32>} : memref<64x768xf32, #tpu.memory_space<vmem>>, vector<64x768xf32>,
    %c0_8 = arith.constant 0 : index
    %c0_9 = arith.constant 0 : index
    %8 = vector.load %arg4[%c0_8, %c0_9] : memref<256x768xf32, #tpu.memory_space<vmem>>, vector<256x768xf32>
    %c0_10 = arith.constant 0 : index
    %c0_11 = arith.constant 0 : index
    %9 = vector.load %arg5[%c0_10, %c0_11] : memref<1x128xf32, #tpu.memory_space<vmem>>, vector<1x128xf32>
    %10 = vector.shape_cast %9 : vector<1x128xf32> to vector<1x128xf32>
    %11 = vector.broadcast %10 : vector<1x128xf32> to vector<8x128xf32>
    %c0_12 = arith.constant 0 : index
    %c0_13 = arith.constant 0 : index
    %12 = vector.load %arg6[%c0_12, %c0_13] : memref<1x128xf32, #tpu.memory_space<vmem>>, vector<1x128xf32>
    %13 = vector.shape_cast %12 : vector<1x128xf32> to vector<1x128xf32>
    %14 = vector.broadcast %13 : vector<1x128xf32> to vector<8x128xf32>
    %cst_14 = arith.constant 0.000000e+00 : f32
    %15 = vector.broadcast %cst_14 : f32 to vector<8x256xf32>
    %c0_i32 = arith.constant 0 : i32
    %c8_i32 = arith.constant 8 : i32
    %16 = arith.muli %c0_i32, %c8_i32 : i32
    %17 = tpu.assume_multiple %16, 8 : i32
    %c7_i32 = arith.constant 7 : i32
    %18 = arith.subi %c7_i32, %c0_i32 : i32
    %c8_i32_15 = arith.constant 8 : i32
    %19 = arith.muli %18, %c8_i32_15 : i32
    %20 = tpu.assume_multiple %19, 8 : i32
    %21 = arith.index_cast %17 : i32 to index
    %c0_16 = arith.constant 0 : index
    %22 = vector.load %arg10[%21, %c0_16] : memref<64x768xf32, #tpu.memory_space<vmem>>, vector<8x384xf32>
    %23 = arith.index_cast %20 : i32 to index
    %c384 = arith.constant 384 : index
    %24 = vector.load %arg10[%23, %c384] : memref<64x768xf32, #tpu.memory_space<vmem>>, vector<8x384xf32>
    %cst_17 = arith.constant dense<0.000000e+00> : vector<8x768xf32>
    %25 = tpu.matmul %15, %8, %cst_17 {dimension_numbers = #tpu.dot_dimension_numbers<[1], [0], [0], [1], [0, 0, 1, 1], [], []>} : vector<8x256xf32>, vector<256x768xf32>, vector<8x768xf32> -> vector<8x768xf32>
    %26 = vector.extract_strided_slice %15 {offsets = [0, 0], sizes = [8, 128], strides = [1, 1]} : vector<8x256xf32> to vector<8x128xf32>
    %27 = vector.extract_strided_slice %15 {offsets = [0, 128], sizes = [8, 128], strides = [1, 1]} : vector<8x256xf32> to vector<8x128xf32>
    %28 = vector.extract_strided_slice %22 {offsets = [0, 0], sizes = [8, 128], strides = [1, 1]} : vector<8x384xf32> to vector<8x128xf32>
    %29 = vector.extract_strided_slice %25 {offsets = [0, 0], sizes = [8, 128], strides = [1, 1]} : vector<8x768xf32> to vector<8x128xf32>
    %30 = arith.addf %28, %29 : vector<8x128xf32>
    %31 = arith.negf %30 : vector<8x128xf32>
    %32 = math.exp %31 : vector<8x128xf32>
    %cst_18 = arith.constant 1.000000e+00 : f32
    %33 = vector.broadcast %cst_18 : f32 to vector<8x128xf32>
    %34 = arith.addf %33, %32 : vector<8x128xf32>
    %35 = arith.divf %33, %34 : vector<8x128xf32>
    %36 = vector.extract_strided_slice %22 {offsets = [0, 128], sizes = [8, 128], strides = [1, 1]} : vector<8x384xf32> to vector<8x128xf32>
    %37 = vector.extract_strided_slice %25 {offsets = [0, 128], sizes = [8, 128], strides = [1, 1]} : vector<8x768xf32> to vector<8x128xf32>
    %38 = arith.addf %36, %37 : vector<8x128xf32>
    %39 = arith.negf %38 : vector<8x128xf32>
    %40 = math.exp %39 : vector<8x128xf32>
    %cst_19 = arith.constant 1.000000e+00 : f32
    %41 = vector.broadcast %cst_19 : f32 to vector<8x128xf32>
    %42 = arith.addf %41, %40 : vector<8x128xf32>
    %43 = arith.divf %41, %42 : vector<8x128xf32>
    %44 = vector.extract_strided_slice %22 {offsets = [0, 256], sizes = [8, 128], strides = [1, 1]} : vector<8x384xf32> to vector<8x128xf32>
    %45 = vector.extract_strided_slice %25 {offsets = [0, 256], sizes = [8, 128], strides = [1, 1]} : vector<8x768xf32> to vector<8x128xf32>
    %46 = arith.addf %45, %11 : vector<8x128xf32>
    %47 = arith.mulf %35, %46 : vector<8x128xf32>
    %48 = arith.addf %44, %47 : vector<8x128xf32>
    %49 = math.tanh %48 : vector<8x128xf32>
    %50 = vector.extract_strided_slice %24 {offsets = [0, 0], sizes = [8, 128], strides = [1, 1]} : vector<8x384xf32> to vector<8x128xf32>
    %51 = vector.extract_strided_slice %25 {offsets = [0, 384], sizes = [8, 128], strides = [1, 1]} : vector<8x768xf32> to vector<8x128xf32>
    %52 = arith.addf %50, %51 : vector<8x128xf32>
    %53 = arith.negf %52 : vector<8x128xf32>
    %54 = math.exp %53 : vector<8x128xf32>
    %cst_20 = arith.constant 1.000000e+00 : f32
    %55 = vector.broadcast %cst_20 : f32 to vector<8x128xf32>
    %56 = arith.addf %55, %54 : vector<8x128xf32>
    %57 = arith.divf %55, %56 : vector<8x128xf32>
    %58 = vector.extract_strided_slice %24 {offsets = [0, 128], sizes = [8, 128], strides = [1, 1]} : vector<8x384xf32> to vector<8x128xf32>
    %59 = vector.extract_strided_slice %25 {offsets = [0, 512], sizes = [8, 128], strides = [1, 1]} : vector<8x768xf32> to vector<8x128xf32>
    %60 = arith.addf %58, %59 : vector<8x128xf32>
    %61 = arith.negf %60 : vector<8x128xf32>
    %62 = math.exp %61 : vector<8x128xf32>
    %cst_21 = arith.constant 1.000000e+00 : f32
    %63 = vector.broadcast %cst_21 : f32 to vector<8x128xf32>
    %64 = arith.addf %63, %62 : vector<8x128xf32>
    %65 = arith.divf %63, %64 : vector<8x128xf32>
    %66 = vector.extract_strided_slice %24 {offsets = [0, 256], sizes = [8, 128], strides = [1, 1]} : vector<8x384xf32> to vector<8x128xf32>
    %67 = vector.extract_strided_slice %25 {offsets = [0, 640], sizes = [8, 128], strides = [1, 1]} : vector<8x768xf32> to vector<8x128xf32>
    %68 = arith.addf %67, %14 : vector<8x128xf32>
    %69 = arith.mulf %57, %68 : vector<8x128xf32>
    %70 = arith.addf %66, %69 : vector<8x128xf32>
    %71 = math.tanh %70 : vector<8x128xf32>
    %cst_22 = arith.constant 1.000000e+00 : f32
    %72 = vector.broadcast %cst_22 : f32 to vector<8x128xf32>
    %73 = arith.subf %72, %43 : vector<8x128xf32>
    %74 = arith.mulf %73, %49 : vector<8x128xf32>
    %75 = arith.mulf %43, %26 : vector<8x128xf32>
    %76 = arith.addf %74, %75 : vector<8x128xf32>
    %cst_23 = arith.constant 1.000000e+00 : f32
    %77 = vector.broadcast %cst_23 : f32 to vector<8x128xf32>
    %78 = arith.subf %77, %65 : vector<8x128xf32>
    %79 = arith.mulf %78, %71 : vector<8x128xf32>
    %80 = arith.mulf %65, %27 : vector<8x128xf32>
    %81 = arith.addf %79, %80 : vector<8x128xf32>
    %82 = arith.index_cast %17 : i32 to index
    %c0_24 = arith.constant 0 : index
    %83 = vector.load %arg11[%82, %c0_24] : memref<64x256xf32, #tpu.memory_space<vmem>>, vector<8x128xf32>
    tpu.vector_store %arg11[%82, %c0_24], %76 {strides = array<i32>} : memref<64x256xf32, #tpu.memory_space<vmem>>, vector<8x128xf32>,
    %84 = arith.index_cast %20 : i32 to index
    %c128 = arith.constant 128 : index
    %85 = vector.load %arg11[%84, %c128] : memref<64x256xf32, #tpu.memory_space<vmem>>, vector<8x128xf32>
    tpu.vector_store %arg11[%84, %c128], %81 {strides = array<i32>} : memref<64x256xf32, #tpu.memory_space<vmem>>, vector<8x128xf32>,
    %86 = tpu.concatenate %76, %81 in 1 : vector<8x128xf32>, vector<8x128xf32> -> vector<8x256xf32>
    %c1_i32 = arith.constant 1 : i32
    %c8_i32_25 = arith.constant 8 : i32
    %87 = arith.muli %c1_i32, %c8_i32_25 : i32
    %88 = tpu.assume_multiple %87, 8 : i32
    %c7_i32_26 = arith.constant 7 : i32
    %89 = arith.subi %c7_i32_26, %c1_i32 : i32
    %c8_i32_27 = arith.constant 8 : i32
    %90 = arith.muli %89, %c8_i32_27 : i32
    %91 = tpu.assume_multiple %90, 8 : i32
    %92 = arith.index_cast %88 : i32 to index
    %c0_28 = arith.constant 0 : index
    %93 = vector.load %arg10[%92, %c0_28] : memref<64x768xf32, #tpu.memory_space<vmem>>, vector<8x384xf32>
    %94 = arith.index_cast %91 : i32 to index
    %c384_29 = arith.constant 384 : index
    %95 = vector.load %arg10[%94, %c384_29] : memref<64x768xf32, #tpu.memory_space<vmem>>, vector<8x384xf32>
    %cst_30 = arith.constant dense<0.000000e+00> : vector<8x768xf32>
    %96 = tpu.matmul %86, %8, %cst_30 {dimension_numbers = #tpu.dot_dimension_numbers<[1], [0], [0], [1], [0, 0, 1, 1], [], []>} : vector<8x256xf32>, vector<256x768xf32>, vector<8x768xf32> -> vector<8x768xf32>
    %97 = vector.extract_strided_slice %86 {offsets = [0, 0], sizes = [8, 128], strides = [1, 1]} : vector<8x256xf32> to vector<8x128xf32>
    %98 = vector.extract_strided_slice %86 {offsets = [0, 128], sizes = [8, 128], strides = [1, 1]} : vector<8x256xf32> to vector<8x128xf32>
    %99 = vector.extract_strided_slice %93 {offsets = [0, 0], sizes = [8, 128], strides = [1, 1]} : vector<8x384xf32> to vector<8x128xf32>
    %100 = vector.extract_strided_slice %96 {offsets = [0, 0], sizes = [8, 128], strides = [1, 1]} : vector<8x768xf32> to vector<8x128xf32>
    %101 = arith.addf %99, %100 : vector<8x128xf32>
    %102 = arith.negf %101 : vector<8x128xf32>
    %103 = math.exp %102 : vector<8x128xf32>
    %cst_31 = arith.constant 1.000000e+00 : f32
    %104 = vector.broadcast %cst_31 : f32 to vector<8x128xf32>
    %105 = arith.addf %104, %103 : vector<8x128xf32>
    %106 = arith.divf %104, %105 : vector<8x128xf32>
    %107 = vector.extract_strided_slice %93 {offsets = [0, 128], sizes = [8, 128], strides = [1, 1]} : vector<8x384xf32> to vector<8x128xf32>
    %108 = vector.extract_strided_slice %96 {offsets = [0, 128], sizes = [8, 128], strides = [1, 1]} : vector<8x768xf32> to vector<8x128xf32>
    %109 = arith.addf %107, %108 : vector<8x128xf32>
    %110 = arith.negf %109 : vector<8x128xf32>
    %111 = math.exp %110 : vector<8x128xf32>
    %cst_32 = arith.constant 1.000000e+00 : f32
    %112 = vector.broadcast %cst_32 : f32 to vector<8x128xf32>
    %113 = arith.addf %112, %111 : vector<8x128xf32>
    %114 = arith.divf %112, %113 : vector<8x128xf32>
    %115 = vector.extract_strided_slice %93 {offsets = [0, 256], sizes = [8, 128], strides = [1, 1]} : vector<8x384xf32> to vector<8x128xf32>
    %116 = vector.extract_strided_slice %96 {offsets = [0, 256], sizes = [8, 128], strides = [1, 1]} : vector<8x768xf32> to vector<8x128xf32>
    %117 = arith.addf %116, %11 : vector<8x128xf32>
    %118 = arith.mulf %106, %117 : vector<8x128xf32>
    %119 = arith.addf %115, %118 : vector<8x128xf32>
    %120 = math.tanh %119 : vector<8x128xf32>
    %121 = vector.extract_strided_slice %95 {offsets = [0, 0], sizes = [8, 128], strides = [1, 1]} : vector<8x384xf32> to vector<8x128xf32>
    %122 = vector.extract_strided_slice %96 {offsets = [0, 384], sizes = [8, 128], strides = [1, 1]} : vector<8x768xf32> to vector<8x128xf32>
    %123 = arith.addf %121, %122 : vector<8x128xf32>
    %124 = arith.negf %123 : vector<8x128xf32>
    %125 = math.exp %124 : vector<8x128xf32>
    %cst_33 = arith.constant 1.000000e+00 : f32
    %126 = vector.broadcast %cst_33 : f32 to vector<8x128xf32>
    %127 = arith.addf %126, %125 : vector<8x128xf32>
    %128 = arith.divf %126, %127 : vector<8x128xf32>
    %129 = vector.extract_strided_slice %95 {offsets = [0, 128], sizes = [8, 128], strides = [1, 1]} : vector<8x384xf32> to vector<8x128xf32>
    %130 = vector.extract_strided_slice %96 {offsets = [0, 512], sizes = [8, 128], strides = [1, 1]} : vector<8x768xf32> to vector<8x128xf32>
    %131 = arith.addf %129, %130 : vector<8x128xf32>
    %132 = arith.negf %131 : vector<8x128xf32>
    %133 = math.exp %132 : vector<8x128xf32>
    %cst_34 = arith.constant 1.000000e+00 : f32
    %134 = vector.broadcast %cst_34 : f32 to vector<8x128xf32>
    %135 = arith.addf %134, %133 : vector<8x128xf32>
    %136 = arith.divf %134, %135 : vector<8x128xf32>
    %137 = vector.extract_strided_slice %95 {offsets = [0, 256], sizes = [8, 128], strides = [1, 1]} : vector<8x384xf32> to vector<8x128xf32>
    %138 = vector.extract_strided_slice %96 {offsets = [0, 640], sizes = [8, 128], strides = [1, 1]} : vector<8x768xf32> to vector<8x128xf32>
    %139 = arith.addf %138, %14 : vector<8x128xf32>
    %140 = arith.mulf %128, %139 : vector<8x128xf32>
    %141 = arith.addf %137, %140 : vector<8x128xf32>
    %142 = math.tanh %141 : vector<8x128xf32>
    %cst_35 = arith.constant 1.000000e+00 : f32
    %143 = vector.broadcast %cst_35 : f32 to vector<8x128xf32>
    %144 = arith.subf %143, %114 : vector<8x128xf32>
    %145 = arith.mulf %144, %120 : vector<8x128xf32>
    %146 = arith.mulf %114, %97 : vector<8x128xf32>
    %147 = arith.addf %145, %146 : vector<8x128xf32>
    %cst_36 = arith.constant 1.000000e+00 : f32
    %148 = vector.broadcast %cst_36 : f32 to vector<8x128xf32>
    %149 = arith.subf %148, %136 : vector<8x128xf32>
    %150 = arith.mulf %149, %142 : vector<8x128xf32>
    %151 = arith.mulf %136, %98 : vector<8x128xf32>
    %152 = arith.addf %150, %151 : vector<8x128xf32>
    %153 = arith.index_cast %88 : i32 to index
    %c0_37 = arith.constant 0 : index
    %154 = vector.load %arg11[%153, %c0_37] : memref<64x256xf32, #tpu.memory_space<vmem>>, vector<8x128xf32>
    tpu.vector_store %arg11[%153, %c0_37], %147 {strides = array<i32>} : memref<64x256xf32, #tpu.memory_space<vmem>>, vector<8x128xf32>,
    %155 = arith.index_cast %91 : i32 to index
    %c128_38 = arith.constant 128 : index
    %156 = vector.load %arg11[%155, %c128_38] : memref<64x256xf32, #tpu.memory_space<vmem>>, vector<8x128xf32>
    tpu.vector_store %arg11[%155, %c128_38], %152 {strides = array<i32>} : memref<64x256xf32, #tpu.memory_space<vmem>>, vector<8x128xf32>,
    %157 = tpu.concatenate %147, %152 in 1 : vector<8x128xf32>, vector<8x128xf32> -> vector<8x256xf32>
    %c2_i32 = arith.constant 2 : i32
    %c8_i32_39 = arith.constant 8 : i32
    %158 = arith.muli %c2_i32, %c8_i32_39 : i32
    %159 = tpu.assume_multiple %158, 8 : i32
    %c7_i32_40 = arith.constant 7 : i32
    %160 = arith.subi %c7_i32_40, %c2_i32 : i32
    %c8_i32_41 = arith.constant 8 : i32
    %161 = arith.muli %160, %c8_i32_41 : i32
    %162 = tpu.assume_multiple %161, 8 : i32
    %163 = arith.index_cast %159 : i32 to index
    %c0_42 = arith.constant 0 : index
    %164 = vector.load %arg10[%163, %c0_42] : memref<64x768xf32, #tpu.memory_space<vmem>>, vector<8x384xf32>
    %165 = arith.index_cast %162 : i32 to index
    %c384_43 = arith.constant 384 : index
    %166 = vector.load %arg10[%165, %c384_43] : memref<64x768xf32, #tpu.memory_space<vmem>>, vector<8x384xf32>
    %cst_44 = arith.constant dense<0.000000e+00> : vector<8x768xf32>
    %167 = tpu.matmul %157, %8, %cst_44 {dimension_numbers = #tpu.dot_dimension_numbers<[1], [0], [0], [1], [0, 0, 1, 1], [], []>} : vector<8x256xf32>, vector<256x768xf32>, vector<8x768xf32> -> vector<8x768xf32>
    %168 = vector.extract_strided_slice %157 {offsets = [0, 0], sizes = [8, 128], strides = [1, 1]} : vector<8x256xf32> to vector<8x128xf32>
    %169 = vector.extract_strided_slice %157 {offsets = [0, 128], sizes = [8, 128], strides = [1, 1]} : vector<8x256xf32> to vector<8x128xf32>
    %170 = vector.extract_strided_slice %164 {offsets = [0, 0], sizes = [8, 128], strides = [1, 1]} : vector<8x384xf32> to vector<8x128xf32>
    %171 = vector.extract_strided_slice %167 {offsets = [0, 0], sizes = [8, 128], strides = [1, 1]} : vector<8x768xf32> to vector<8x128xf32>
    %172 = arith.addf %170, %171 : vector<8x128xf32>
    %173 = arith.negf %172 : vector<8x128xf32>
    %174 = math.exp %173 : vector<8x128xf32>
    %cst_45 = arith.constant 1.000000e+00 : f32
    %175 = vector.broadcast %cst_45 : f32 to vector<8x128xf32>
    %176 = arith.addf %175, %174 : vector<8x128xf32>
    %177 = arith.divf %175, %176 : vector<8x128xf32>
    %178 = vector.extract_strided_slice %164 {offsets = [0, 128], sizes = [8, 128], strides = [1, 1]} : vector<8x384xf32> to vector<8x128xf32>
    %179 = vector.extract_strided_slice %167 {offsets = [0, 128], sizes = [8, 128], strides = [1, 1]} : vector<8x768xf32> to vector<8x128xf32>
    %180 = arith.addf %178, %179 : vector<8x128xf32>
    %181 = arith.negf %180 : vector<8x128xf32>
    %182 = math.exp %181 : vector<8x128xf32>
    %cst_46 = arith.constant 1.000000e+00 : f32
    %183 = vector.broadcast %cst_46 : f32 to vector<8x128xf32>
    %184 = arith.addf %183, %182 : vector<8x128xf32>
    %185 = arith.divf %183, %184 : vector<8x128xf32>
    %186 = vector.extract_strided_slice %164 {offsets = [0, 256], sizes = [8, 128], strides = [1, 1]} : vector<8x384xf32> to vector<8x128xf32>
    %187 = vector.extract_strided_slice %167 {offsets = [0, 256], sizes = [8, 128], strides = [1, 1]} : vector<8x768xf32> to vector<8x128xf32>
    %188 = arith.addf %187, %11 : vector<8x128xf32>
    %189 = arith.mulf %177, %188 : vector<8x128xf32>
    %190 = arith.addf %186, %189 : vector<8x128xf32>
    %191 = math.tanh %190 : vector<8x128xf32>
    %192 = vector.extract_strided_slice %166 {offsets = [0, 0], sizes = [8, 128], strides = [1, 1]} : vector<8x384xf32> to vector<8x128xf32>
    %193 = vector.extract_strided_slice %167 {offsets = [0, 384], sizes = [8, 128], strides = [1, 1]} : vector<8x768xf32> to vector<8x128xf32>
    %194 = arith.addf %192, %193 : vector<8x128xf32>
    %195 = arith.negf %194 : vector<8x128xf32>
    %196 = math.exp %195 : vector<8x128xf32>
    %cst_47 = arith.constant 1.000000e+00 : f32
    %197 = vector.broadcast %cst_47 : f32 to vector<8x128xf32>
    %198 = arith.addf %197, %196 : vector<8x128xf32>
    %199 = arith.divf %197, %198 : vector<8x128xf32>
    %200 = vector.extract_strided_slice %166 {offsets = [0, 128], sizes = [8, 128], strides = [1, 1]} : vector<8x384xf32> to vector<8x128xf32>
    %201 = vector.extract_strided_slice %167 {offsets = [0, 512], sizes = [8, 128], strides = [1, 1]} : vector<8x768xf32> to vector<8x128xf32>
    %202 = arith.addf %200, %201 : vector<8x128xf32>
    %203 = arith.negf %202 : vector<8x128xf32>
    %204 = math.exp %203 : vector<8x128xf32>
    %cst_48 = arith.constant 1.000000e+00 : f32
    %205 = vector.broadcast %cst_48 : f32 to vector<8x128xf32>
    %206 = arith.addf %205, %204 : vector<8x128xf32>
    %207 = arith.divf %205, %206 : vector<8x128xf32>
    %208 = vector.extract_strided_slice %166 {offsets = [0, 256], sizes = [8, 128], strides = [1, 1]} : vector<8x384xf32> to vector<8x128xf32>
    %209 = vector.extract_strided_slice %167 {offsets = [0, 640], sizes = [8, 128], strides = [1, 1]} : vector<8x768xf32> to vector<8x128xf32>
    %210 = arith.addf %209, %14 : vector<8x128xf32>
    %211 = arith.mulf %199, %210 : vector<8x128xf32>
    %212 = arith.addf %208, %211 : vector<8x128xf32>
    %213 = math.tanh %212 : vector<8x128xf32>
    %cst_49 = arith.constant 1.000000e+00 : f32
    %214 = vector.broadcast %cst_49 : f32 to vector<8x128xf32>
    %215 = arith.subf %214, %185 : vector<8x128xf32>
    %216 = arith.mulf %215, %191 : vector<8x128xf32>
    %217 = arith.mulf %185, %168 : vector<8x128xf32>
    %218 = arith.addf %216, %217 : vector<8x128xf32>
    %cst_50 = arith.constant 1.000000e+00 : f32
    %219 = vector.broadcast %cst_50 : f32 to vector<8x128xf32>
    %220 = arith.subf %219, %207 : vector<8x128xf32>
    %221 = arith.mulf %220, %213 : vector<8x128xf32>
    %222 = arith.mulf %207, %169 : vector<8x128xf32>
    %223 = arith.addf %221, %222 : vector<8x128xf32>
    %224 = arith.index_cast %159 : i32 to index
    %c0_51 = arith.constant 0 : index
    %225 = vector.load %arg11[%224, %c0_51] : memref<64x256xf32, #tpu.memory_space<vmem>>, vector<8x128xf32>
    tpu.vector_store %arg11[%224, %c0_51], %218 {strides = array<i32>} : memref<64x256xf32, #tpu.memory_space<vmem>>, vector<8x128xf32>,
    %226 = arith.index_cast %162 : i32 to index
    %c128_52 = arith.constant 128 : index
    %227 = vector.load %arg11[%226, %c128_52] : memref<64x256xf32, #tpu.memory_space<vmem>>, vector<8x128xf32>
    tpu.vector_store %arg11[%226, %c128_52], %223 {strides = array<i32>} : memref<64x256xf32, #tpu.memory_space<vmem>>, vector<8x128xf32>,
    %228 = tpu.concatenate %218, %223 in 1 : vector<8x128xf32>, vector<8x128xf32> -> vector<8x256xf32>
    %c3_i32 = arith.constant 3 : i32
    %c8_i32_53 = arith.constant 8 : i32
    %229 = arith.muli %c3_i32, %c8_i32_53 : i32
    %230 = tpu.assume_multiple %229, 8 : i32
    %c7_i32_54 = arith.constant 7 : i32
    %231 = arith.subi %c7_i32_54, %c3_i32 : i32
    %c8_i32_55 = arith.constant 8 : i32
    %232 = arith.muli %231, %c8_i32_55 : i32
    %233 = tpu.assume_multiple %232, 8 : i32
    %234 = arith.index_cast %230 : i32 to index
    %c0_56 = arith.constant 0 : index
    %235 = vector.load %arg10[%234, %c0_56] : memref<64x768xf32, #tpu.memory_space<vmem>>, vector<8x384xf32>
    %236 = arith.index_cast %233 : i32 to index
    %c384_57 = arith.constant 384 : index
    %237 = vector.load %arg10[%236, %c384_57] : memref<64x768xf32, #tpu.memory_space<vmem>>, vector<8x384xf32>
    %cst_58 = arith.constant dense<0.000000e+00> : vector<8x768xf32>
    %238 = tpu.matmul %228, %8, %cst_58 {dimension_numbers = #tpu.dot_dimension_numbers<[1], [0], [0], [1], [0, 0, 1, 1], [], []>} : vector<8x256xf32>, vector<256x768xf32>, vector<8x768xf32> -> vector<8x768xf32>
    %239 = vector.extract_strided_slice %228 {offsets = [0, 0], sizes = [8, 128], strides = [1, 1]} : vector<8x256xf32> to vector<8x128xf32>
    %240 = vector.extract_strided_slice %228 {offsets = [0, 128], sizes = [8, 128], strides = [1, 1]} : vector<8x256xf32> to vector<8x128xf32>
    %241 = vector.extract_strided_slice %235 {offsets = [0, 0], sizes = [8, 128], strides = [1, 1]} : vector<8x384xf32> to vector<8x128xf32>
    %242 = vector.extract_strided_slice %238 {offsets = [0, 0], sizes = [8, 128], strides = [1, 1]} : vector<8x768xf32> to vector<8x128xf32>
    %243 = arith.addf %241, %242 : vector<8x128xf32>
    %244 = arith.negf %243 : vector<8x128xf32>
    %245 = math.exp %244 : vector<8x128xf32>
    %cst_59 = arith.constant 1.000000e+00 : f32
    %246 = vector.broadcast %cst_59 : f32 to vector<8x128xf32>
    %247 = arith.addf %246, %245 : vector<8x128xf32>
    %248 = arith.divf %246, %247 : vector<8x128xf32>
    %249 = vector.extract_strided_slice %235 {offsets = [0, 128], sizes = [8, 128], strides = [1, 1]} : vector<8x384xf32> to vector<8x128xf32>
    %250 = vector.extract_strided_slice %238 {offsets = [0, 128], sizes = [8, 128], strides = [1, 1]} : vector<8x768xf32> to vector<8x128xf32>
    %251 = arith.addf %249, %250 : vector<8x128xf32>
    %252 = arith.negf %251 : vector<8x128xf32>
    %253 = math.exp %252 : vector<8x128xf32>
    %cst_60 = arith.constant 1.000000e+00 : f32
    %254 = vector.broadcast %cst_60 : f32 to vector<8x128xf32>
    %255 = arith.addf %254, %253 : vector<8x128xf32>
    %256 = arith.divf %254, %255 : vector<8x128xf32>
    %257 = vector.extract_strided_slice %235 {offsets = [0, 256], sizes = [8, 128], strides = [1, 1]} : vector<8x384xf32> to vector<8x128xf32>
    %258 = vector.extract_strided_slice %238 {offsets = [0, 256], sizes = [8, 128], strides = [1, 1]} : vector<8x768xf32> to vector<8x128xf32>
    %259 = arith.addf %258, %11 : vector<8x128xf32>
    %260 = arith.mulf %248, %259 : vector<8x128xf32>
    %261 = arith.addf %257, %260 : vector<8x128xf32>
    %262 = math.tanh %261 : vector<8x128xf32>
    %263 = vector.extract_strided_slice %237 {offsets = [0, 0], sizes = [8, 128], strides = [1, 1]} : vector<8x384xf32> to vector<8x128xf32>
    %264 = vector.extract_strided_slice %238 {offsets = [0, 384], sizes = [8, 128], strides = [1, 1]} : vector<8x768xf32> to vector<8x128xf32>
    %265 = arith.addf %263, %264 : vector<8x128xf32>
    %266 = arith.negf %265 : vector<8x128xf32>
    %267 = math.exp %266 : vector<8x128xf32>
    %cst_61 = arith.constant 1.000000e+00 : f32
    %268 = vector.broadcast %cst_61 : f32 to vector<8x128xf32>
    %269 = arith.addf %268, %267 : vector<8x128xf32>
    %270 = arith.divf %268, %269 : vector<8x128xf32>
    %271 = vector.extract_strided_slice %237 {offsets = [0, 128], sizes = [8, 128], strides = [1, 1]} : vector<8x384xf32> to vector<8x128xf32>
    %272 = vector.extract_strided_slice %238 {offsets = [0, 512], sizes = [8, 128], strides = [1, 1]} : vector<8x768xf32> to vector<8x128xf32>
    %273 = arith.addf %271, %272 : vector<8x128xf32>
    %274 = arith.negf %273 : vector<8x128xf32>
    %275 = math.exp %274 : vector<8x128xf32>
    %cst_62 = arith.constant 1.000000e+00 : f32
    %276 = vector.broadcast %cst_62 : f32 to vector<8x128xf32>
    %277 = arith.addf %276, %275 : vector<8x128xf32>
    %278 = arith.divf %276, %277 : vector<8x128xf32>
    %279 = vector.extract_strided_slice %237 {offsets = [0, 256], sizes = [8, 128], strides = [1, 1]} : vector<8x384xf32> to vector<8x128xf32>
    %280 = vector.extract_strided_slice %238 {offsets = [0, 640], sizes = [8, 128], strides = [1, 1]} : vector<8x768xf32> to vector<8x128xf32>
    %281 = arith.addf %280, %14 : vector<8x128xf32>
    %282 = arith.mulf %270, %281 : vector<8x128xf32>
    %283 = arith.addf %279, %282 : vector<8x128xf32>
    %284 = math.tanh %283 : vector<8x128xf32>
    %cst_63 = arith.constant 1.000000e+00 : f32
    %285 = vector.broadcast %cst_63 : f32 to vector<8x128xf32>
    %286 = arith.subf %285, %256 : vector<8x128xf32>
    %287 = arith.mulf %286, %262 : vector<8x128xf32>
    %288 = arith.mulf %256, %239 : vector<8x128xf32>
    %289 = arith.addf %287, %288 : vector<8x128xf32>
    %cst_64 = arith.constant 1.000000e+00 : f32
    %290 = vector.broadcast %cst_64 : f32 to vector<8x128xf32>
    %291 = arith.subf %290, %278 : vector<8x128xf32>
    %292 = arith.mulf %291, %284 : vector<8x128xf32>
    %293 = arith.mulf %278, %240 : vector<8x128xf32>
    %294 = arith.addf %292, %293 : vector<8x128xf32>
    %295 = arith.index_cast %230 : i32 to index
    %c0_65 = arith.constant 0 : index
    %296 = vector.load %arg11[%295, %c0_65] : memref<64x256xf32, #tpu.memory_space<vmem>>, vector<8x128xf32>
    tpu.vector_store %arg11[%295, %c0_65], %289 {strides = array<i32>} : memref<64x256xf32, #tpu.memory_space<vmem>>, vector<8x128xf32>,
    %297 = arith.index_cast %233 : i32 to index
    %c128_66 = arith.constant 128 : index
    %298 = vector.load %arg11[%297, %c128_66] : memref<64x256xf32, #tpu.memory_space<vmem>>, vector<8x128xf32>
    tpu.vector_store %arg11[%297, %c128_66], %294 {strides = array<i32>} : memref<64x256xf32, #tpu.memory_space<vmem>>, vector<8x128xf32>,
    %299 = tpu.concatenate %289, %294 in 1 : vector<8x128xf32>, vector<8x128xf32> -> vector<8x256xf32>
    %c4_i32 = arith.constant 4 : i32
    %c8_i32_67 = arith.constant 8 : i32
    %300 = arith.muli %c4_i32, %c8_i32_67 : i32
    %301 = tpu.assume_multiple %300, 8 : i32
    %c7_i32_68 = arith.constant 7 : i32
    %302 = arith.subi %c7_i32_68, %c4_i32 : i32
    %c8_i32_69 = arith.constant 8 : i32
    %303 = arith.muli %302, %c8_i32_69 : i32
    %304 = tpu.assume_multiple %303, 8 : i32
    %305 = arith.index_cast %301 : i32 to index
    %c0_70 = arith.constant 0 : index
    %306 = vector.load %arg10[%305, %c0_70] : memref<64x768xf32, #tpu.memory_space<vmem>>, vector<8x384xf32>
    %307 = arith.index_cast %304 : i32 to index
    %c384_71 = arith.constant 384 : index
    %308 = vector.load %arg10[%307, %c384_71] : memref<64x768xf32, #tpu.memory_space<vmem>>, vector<8x384xf32>
    %cst_72 = arith.constant dense<0.000000e+00> : vector<8x768xf32>
    %309 = tpu.matmul %299, %8, %cst_72 {dimension_numbers = #tpu.dot_dimension_numbers<[1], [0], [0], [1], [0, 0, 1, 1], [], []>} : vector<8x256xf32>, vector<256x768xf32>, vector<8x768xf32> -> vector<8x768xf32>
    %310 = vector.extract_strided_slice %299 {offsets = [0, 0], sizes = [8, 128], strides = [1, 1]} : vector<8x256xf32> to vector<8x128xf32>
    %311 = vector.extract_strided_slice %299 {offsets = [0, 128], sizes = [8, 128], strides = [1, 1]} : vector<8x256xf32> to vector<8x128xf32>
    %312 = vector.extract_strided_slice %306 {offsets = [0, 0], sizes = [8, 128], strides = [1, 1]} : vector<8x384xf32> to vector<8x128xf32>
    %313 = vector.extract_strided_slice %309 {offsets = [0, 0], sizes = [8, 128], strides = [1, 1]} : vector<8x768xf32> to vector<8x128xf32>
    %314 = arith.addf %312, %313 : vector<8x128xf32>
    %315 = arith.negf %314 : vector<8x128xf32>
    %316 = math.exp %315 : vector<8x128xf32>
    %cst_73 = arith.constant 1.000000e+00 : f32
    %317 = vector.broadcast %cst_73 : f32 to vector<8x128xf32>
    %318 = arith.addf %317, %316 : vector<8x128xf32>
    %319 = arith.divf %317, %318 : vector<8x128xf32>
    %320 = vector.extract_strided_slice %306 {offsets = [0, 128], sizes = [8, 128], strides = [1, 1]} : vector<8x384xf32> to vector<8x128xf32>
    %321 = vector.extract_strided_slice %309 {offsets = [0, 128], sizes = [8, 128], strides = [1, 1]} : vector<8x768xf32> to vector<8x128xf32>
    %322 = arith.addf %320, %321 : vector<8x128xf32>
    %323 = arith.negf %322 : vector<8x128xf32>
    %324 = math.exp %323 : vector<8x128xf32>
    %cst_74 = arith.constant 1.000000e+00 : f32
    %325 = vector.broadcast %cst_74 : f32 to vector<8x128xf32>
    %326 = arith.addf %325, %324 : vector<8x128xf32>
    %327 = arith.divf %325, %326 : vector<8x128xf32>
    %328 = vector.extract_strided_slice %306 {offsets = [0, 256], sizes = [8, 128], strides = [1, 1]} : vector<8x384xf32> to vector<8x128xf32>
    %329 = vector.extract_strided_slice %309 {offsets = [0, 256], sizes = [8, 128], strides = [1, 1]} : vector<8x768xf32> to vector<8x128xf32>
    %330 = arith.addf %329, %11 : vector<8x128xf32>
    %331 = arith.mulf %319, %330 : vector<8x128xf32>
    %332 = arith.addf %328, %331 : vector<8x128xf32>
    %333 = math.tanh %332 : vector<8x128xf32>
    %334 = vector.extract_strided_slice %308 {offsets = [0, 0], sizes = [8, 128], strides = [1, 1]} : vector<8x384xf32> to vector<8x128xf32>
    %335 = vector.extract_strided_slice %309 {offsets = [0, 384], sizes = [8, 128], strides = [1, 1]} : vector<8x768xf32> to vector<8x128xf32>
    %336 = arith.addf %334, %335 : vector<8x128xf32>
    %337 = arith.negf %336 : vector<8x128xf32>
    %338 = math.exp %337 : vector<8x128xf32>
    %cst_75 = arith.constant 1.000000e+00 : f32
    %339 = vector.broadcast %cst_75 : f32 to vector<8x128xf32>
    %340 = arith.addf %339, %338 : vector<8x128xf32>
    %341 = arith.divf %339, %340 : vector<8x128xf32>
    %342 = vector.extract_strided_slice %308 {offsets = [0, 128], sizes = [8, 128], strides = [1, 1]} : vector<8x384xf32> to vector<8x128xf32>
    %343 = vector.extract_strided_slice %309 {offsets = [0, 512], sizes = [8, 128], strides = [1, 1]} : vector<8x768xf32> to vector<8x128xf32>
    %344 = arith.addf %342, %343 : vector<8x128xf32>
    %345 = arith.negf %344 : vector<8x128xf32>
    %346 = math.exp %345 : vector<8x128xf32>
    %cst_76 = arith.constant 1.000000e+00 : f32
    %347 = vector.broadcast %cst_76 : f32 to vector<8x128xf32>
    %348 = arith.addf %347, %346 : vector<8x128xf32>
    %349 = arith.divf %347, %348 : vector<8x128xf32>
    %350 = vector.extract_strided_slice %308 {offsets = [0, 256], sizes = [8, 128], strides = [1, 1]} : vector<8x384xf32> to vector<8x128xf32>
    %351 = vector.extract_strided_slice %309 {offsets = [0, 640], sizes = [8, 128], strides = [1, 1]} : vector<8x768xf32> to vector<8x128xf32>
    %352 = arith.addf %351, %14 : vector<8x128xf32>
    %353 = arith.mulf %341, %352 : vector<8x128xf32>
    %354 = arith.addf %350, %353 : vector<8x128xf32>
    %355 = math.tanh %354 : vector<8x128xf32>
    %cst_77 = arith.constant 1.000000e+00 : f32
    %356 = vector.broadcast %cst_77 : f32 to vector<8x128xf32>
    %357 = arith.subf %356, %327 : vector<8x128xf32>
    %358 = arith.mulf %357, %333 : vector<8x128xf32>
    %359 = arith.mulf %327, %310 : vector<8x128xf32>
    %360 = arith.addf %358, %359 : vector<8x128xf32>
    %cst_78 = arith.constant 1.000000e+00 : f32
    %361 = vector.broadcast %cst_78 : f32 to vector<8x128xf32>
    %362 = arith.subf %361, %349 : vector<8x128xf32>
    %363 = arith.mulf %362, %355 : vector<8x128xf32>
    %364 = arith.mulf %349, %311 : vector<8x128xf32>
    %365 = arith.addf %363, %364 : vector<8x128xf32>
    %366 = arith.index_cast %301 : i32 to index
    %c0_79 = arith.constant 0 : index
    %367 = vector.load %arg11[%366, %c0_79] : memref<64x256xf32, #tpu.memory_space<vmem>>, vector<8x128xf32>
    tpu.vector_store %arg11[%366, %c0_79], %360 {strides = array<i32>} : memref<64x256xf32, #tpu.memory_space<vmem>>, vector<8x128xf32>,
    %368 = arith.index_cast %304 : i32 to index
    %c128_80 = arith.constant 128 : index
    %369 = vector.load %arg11[%368, %c128_80] : memref<64x256xf32, #tpu.memory_space<vmem>>, vector<8x128xf32>
    tpu.vector_store %arg11[%368, %c128_80], %365 {strides = array<i32>} : memref<64x256xf32, #tpu.memory_space<vmem>>, vector<8x128xf32>,
    %370 = tpu.concatenate %360, %365 in 1 : vector<8x128xf32>, vector<8x128xf32> -> vector<8x256xf32>
    %c5_i32 = arith.constant 5 : i32
    %c8_i32_81 = arith.constant 8 : i32
    %371 = arith.muli %c5_i32, %c8_i32_81 : i32
    %372 = tpu.assume_multiple %371, 8 : i32
    %c7_i32_82 = arith.constant 7 : i32
    %373 = arith.subi %c7_i32_82, %c5_i32 : i32
    %c8_i32_83 = arith.constant 8 : i32
    %374 = arith.muli %373, %c8_i32_83 : i32
    %375 = tpu.assume_multiple %374, 8 : i32
    %376 = arith.index_cast %372 : i32 to index
    %c0_84 = arith.constant 0 : index
    %377 = vector.load %arg10[%376, %c0_84] : memref<64x768xf32, #tpu.memory_space<vmem>>, vector<8x384xf32>
    %378 = arith.index_cast %375 : i32 to index
    %c384_85 = arith.constant 384 : index
    %379 = vector.load %arg10[%378, %c384_85] : memref<64x768xf32, #tpu.memory_space<vmem>>, vector<8x384xf32>
    %cst_86 = arith.constant dense<0.000000e+00> : vector<8x768xf32>
    %380 = tpu.matmul %370, %8, %cst_86 {dimension_numbers = #tpu.dot_dimension_numbers<[1], [0], [0], [1], [0, 0, 1, 1], [], []>} : vector<8x256xf32>, vector<256x768xf32>, vector<8x768xf32> -> vector<8x768xf32>
    %381 = vector.extract_strided_slice %370 {offsets = [0, 0], sizes = [8, 128], strides = [1, 1]} : vector<8x256xf32> to vector<8x128xf32>
    %382 = vector.extract_strided_slice %370 {offsets = [0, 128], sizes = [8, 128], strides = [1, 1]} : vector<8x256xf32> to vector<8x128xf32>
    %383 = vector.extract_strided_slice %377 {offsets = [0, 0], sizes = [8, 128], strides = [1, 1]} : vector<8x384xf32> to vector<8x128xf32>
    %384 = vector.extract_strided_slice %380 {offsets = [0, 0], sizes = [8, 128], strides = [1, 1]} : vector<8x768xf32> to vector<8x128xf32>
    %385 = arith.addf %383, %384 : vector<8x128xf32>
    %386 = arith.negf %385 : vector<8x128xf32>
    %387 = math.exp %386 : vector<8x128xf32>
    %cst_87 = arith.constant 1.000000e+00 : f32
    %388 = vector.broadcast %cst_87 : f32 to vector<8x128xf32>
    %389 = arith.addf %388, %387 : vector<8x128xf32>
    %390 = arith.divf %388, %389 : vector<8x128xf32>
    %391 = vector.extract_strided_slice %377 {offsets = [0, 128], sizes = [8, 128], strides = [1, 1]} : vector<8x384xf32> to vector<8x128xf32>
    %392 = vector.extract_strided_slice %380 {offsets = [0, 128], sizes = [8, 128], strides = [1, 1]} : vector<8x768xf32> to vector<8x128xf32>
    %393 = arith.addf %391, %392 : vector<8x128xf32>
    %394 = arith.negf %393 : vector<8x128xf32>
    %395 = math.exp %394 : vector<8x128xf32>
    %cst_88 = arith.constant 1.000000e+00 : f32
    %396 = vector.broadcast %cst_88 : f32 to vector<8x128xf32>
    %397 = arith.addf %396, %395 : vector<8x128xf32>
    %398 = arith.divf %396, %397 : vector<8x128xf32>
    %399 = vector.extract_strided_slice %377 {offsets = [0, 256], sizes = [8, 128], strides = [1, 1]} : vector<8x384xf32> to vector<8x128xf32>
    %400 = vector.extract_strided_slice %380 {offsets = [0, 256], sizes = [8, 128], strides = [1, 1]} : vector<8x768xf32> to vector<8x128xf32>
    %401 = arith.addf %400, %11 : vector<8x128xf32>
    %402 = arith.mulf %390, %401 : vector<8x128xf32>
    %403 = arith.addf %399, %402 : vector<8x128xf32>
    %404 = math.tanh %403 : vector<8x128xf32>
    %405 = vector.extract_strided_slice %379 {offsets = [0, 0], sizes = [8, 128], strides = [1, 1]} : vector<8x384xf32> to vector<8x128xf32>
    %406 = vector.extract_strided_slice %380 {offsets = [0, 384], sizes = [8, 128], strides = [1, 1]} : vector<8x768xf32> to vector<8x128xf32>
    %407 = arith.addf %405, %406 : vector<8x128xf32>
    %408 = arith.negf %407 : vector<8x128xf32>
    %409 = math.exp %408 : vector<8x128xf32>
    %cst_89 = arith.constant 1.000000e+00 : f32
    %410 = vector.broadcast %cst_89 : f32 to vector<8x128xf32>
    %411 = arith.addf %410, %409 : vector<8x128xf32>
    %412 = arith.divf %410, %411 : vector<8x128xf32>
    %413 = vector.extract_strided_slice %379 {offsets = [0, 128], sizes = [8, 128], strides = [1, 1]} : vector<8x384xf32> to vector<8x128xf32>
    %414 = vector.extract_strided_slice %380 {offsets = [0, 512], sizes = [8, 128], strides = [1, 1]} : vector<8x768xf32> to vector<8x128xf32>
    %415 = arith.addf %413, %414 : vector<8x128xf32>
    %416 = arith.negf %415 : vector<8x128xf32>
    %417 = math.exp %416 : vector<8x128xf32>
    %cst_90 = arith.constant 1.000000e+00 : f32
    %418 = vector.broadcast %cst_90 : f32 to vector<8x128xf32>
    %419 = arith.addf %418, %417 : vector<8x128xf32>
    %420 = arith.divf %418, %419 : vector<8x128xf32>
    %421 = vector.extract_strided_slice %379 {offsets = [0, 256], sizes = [8, 128], strides = [1, 1]} : vector<8x384xf32> to vector<8x128xf32>
    %422 = vector.extract_strided_slice %380 {offsets = [0, 640], sizes = [8, 128], strides = [1, 1]} : vector<8x768xf32> to vector<8x128xf32>
    %423 = arith.addf %422, %14 : vector<8x128xf32>
    %424 = arith.mulf %412, %423 : vector<8x128xf32>
    %425 = arith.addf %421, %424 : vector<8x128xf32>
    %426 = math.tanh %425 : vector<8x128xf32>
    %cst_91 = arith.constant 1.000000e+00 : f32
    %427 = vector.broadcast %cst_91 : f32 to vector<8x128xf32>
    %428 = arith.subf %427, %398 : vector<8x128xf32>
    %429 = arith.mulf %428, %404 : vector<8x128xf32>
    %430 = arith.mulf %398, %381 : vector<8x128xf32>
    %431 = arith.addf %429, %430 : vector<8x128xf32>
    %cst_92 = arith.constant 1.000000e+00 : f32
    %432 = vector.broadcast %cst_92 : f32 to vector<8x128xf32>
    %433 = arith.subf %432, %420 : vector<8x128xf32>
    %434 = arith.mulf %433, %426 : vector<8x128xf32>
    %435 = arith.mulf %420, %382 : vector<8x128xf32>
    %436 = arith.addf %434, %435 : vector<8x128xf32>
    %437 = arith.index_cast %372 : i32 to index
    %c0_93 = arith.constant 0 : index
    %438 = vector.load %arg11[%437, %c0_93] : memref<64x256xf32, #tpu.memory_space<vmem>>, vector<8x128xf32>
    tpu.vector_store %arg11[%437, %c0_93], %431 {strides = array<i32>} : memref<64x256xf32, #tpu.memory_space<vmem>>, vector<8x128xf32>,
    %439 = arith.index_cast %375 : i32 to index
    %c128_94 = arith.constant 128 : index
    %440 = vector.load %arg11[%439, %c128_94] : memref<64x256xf32, #tpu.memory_space<vmem>>, vector<8x128xf32>
    tpu.vector_store %arg11[%439, %c128_94], %436 {strides = array<i32>} : memref<64x256xf32, #tpu.memory_space<vmem>>, vector<8x128xf32>,
    %441 = tpu.concatenate %431, %436 in 1 : vector<8x128xf32>, vector<8x128xf32> -> vector<8x256xf32>
    %c6_i32 = arith.constant 6 : i32
    %c8_i32_95 = arith.constant 8 : i32
    %442 = arith.muli %c6_i32, %c8_i32_95 : i32
    %443 = tpu.assume_multiple %442, 8 : i32
    %c7_i32_96 = arith.constant 7 : i32
    %444 = arith.subi %c7_i32_96, %c6_i32 : i32
    %c8_i32_97 = arith.constant 8 : i32
    %445 = arith.muli %444, %c8_i32_97 : i32
    %446 = tpu.assume_multiple %445, 8 : i32
    %447 = arith.index_cast %443 : i32 to index
    %c0_98 = arith.constant 0 : index
    %448 = vector.load %arg10[%447, %c0_98] : memref<64x768xf32, #tpu.memory_space<vmem>>, vector<8x384xf32>
    %449 = arith.index_cast %446 : i32 to index
    %c384_99 = arith.constant 384 : index
    %450 = vector.load %arg10[%449, %c384_99] : memref<64x768xf32, #tpu.memory_space<vmem>>, vector<8x384xf32>
    %cst_100 = arith.constant dense<0.000000e+00> : vector<8x768xf32>
    %451 = tpu.matmul %441, %8, %cst_100 {dimension_numbers = #tpu.dot_dimension_numbers<[1], [0], [0], [1], [0, 0, 1, 1], [], []>} : vector<8x256xf32>, vector<256x768xf32>, vector<8x768xf32> -> vector<8x768xf32>
    %452 = vector.extract_strided_slice %441 {offsets = [0, 0], sizes = [8, 128], strides = [1, 1]} : vector<8x256xf32> to vector<8x128xf32>
    %453 = vector.extract_strided_slice %441 {offsets = [0, 128], sizes = [8, 128], strides = [1, 1]} : vector<8x256xf32> to vector<8x128xf32>
    %454 = vector.extract_strided_slice %448 {offsets = [0, 0], sizes = [8, 128], strides = [1, 1]} : vector<8x384xf32> to vector<8x128xf32>
    %455 = vector.extract_strided_slice %451 {offsets = [0, 0], sizes = [8, 128], strides = [1, 1]} : vector<8x768xf32> to vector<8x128xf32>
    %456 = arith.addf %454, %455 : vector<8x128xf32>
    %457 = arith.negf %456 : vector<8x128xf32>
    %458 = math.exp %457 : vector<8x128xf32>
    %cst_101 = arith.constant 1.000000e+00 : f32
    %459 = vector.broadcast %cst_101 : f32 to vector<8x128xf32>
    %460 = arith.addf %459, %458 : vector<8x128xf32>
    %461 = arith.divf %459, %460 : vector<8x128xf32>
    %462 = vector.extract_strided_slice %448 {offsets = [0, 128], sizes = [8, 128], strides = [1, 1]} : vector<8x384xf32> to vector<8x128xf32>
    %463 = vector.extract_strided_slice %451 {offsets = [0, 128], sizes = [8, 128], strides = [1, 1]} : vector<8x768xf32> to vector<8x128xf32>
    %464 = arith.addf %462, %463 : vector<8x128xf32>
    %465 = arith.negf %464 : vector<8x128xf32>
    %466 = math.exp %465 : vector<8x128xf32>
    %cst_102 = arith.constant 1.000000e+00 : f32
    %467 = vector.broadcast %cst_102 : f32 to vector<8x128xf32>
    %468 = arith.addf %467, %466 : vector<8x128xf32>
    %469 = arith.divf %467, %468 : vector<8x128xf32>
    %470 = vector.extract_strided_slice %448 {offsets = [0, 256], sizes = [8, 128], strides = [1, 1]} : vector<8x384xf32> to vector<8x128xf32>
    %471 = vector.extract_strided_slice %451 {offsets = [0, 256], sizes = [8, 128], strides = [1, 1]} : vector<8x768xf32> to vector<8x128xf32>
    %472 = arith.addf %471, %11 : vector<8x128xf32>
    %473 = arith.mulf %461, %472 : vector<8x128xf32>
    %474 = arith.addf %470, %473 : vector<8x128xf32>
    %475 = math.tanh %474 : vector<8x128xf32>
    %476 = vector.extract_strided_slice %450 {offsets = [0, 0], sizes = [8, 128], strides = [1, 1]} : vector<8x384xf32> to vector<8x128xf32>
    %477 = vector.extract_strided_slice %451 {offsets = [0, 384], sizes = [8, 128], strides = [1, 1]} : vector<8x768xf32> to vector<8x128xf32>
    %478 = arith.addf %476, %477 : vector<8x128xf32>
    %479 = arith.negf %478 : vector<8x128xf32>
    %480 = math.exp %479 : vector<8x128xf32>
    %cst_103 = arith.constant 1.000000e+00 : f32
    %481 = vector.broadcast %cst_103 : f32 to vector<8x128xf32>
    %482 = arith.addf %481, %480 : vector<8x128xf32>
    %483 = arith.divf %481, %482 : vector<8x128xf32>
    %484 = vector.extract_strided_slice %450 {offsets = [0, 128], sizes = [8, 128], strides = [1, 1]} : vector<8x384xf32> to vector<8x128xf32>
    %485 = vector.extract_strided_slice %451 {offsets = [0, 512], sizes = [8, 128], strides = [1, 1]} : vector<8x768xf32> to vector<8x128xf32>
    %486 = arith.addf %484, %485 : vector<8x128xf32>
    %487 = arith.negf %486 : vector<8x128xf32>
    %488 = math.exp %487 : vector<8x128xf32>
    %cst_104 = arith.constant 1.000000e+00 : f32
    %489 = vector.broadcast %cst_104 : f32 to vector<8x128xf32>
    %490 = arith.addf %489, %488 : vector<8x128xf32>
    %491 = arith.divf %489, %490 : vector<8x128xf32>
    %492 = vector.extract_strided_slice %450 {offsets = [0, 256], sizes = [8, 128], strides = [1, 1]} : vector<8x384xf32> to vector<8x128xf32>
    %493 = vector.extract_strided_slice %451 {offsets = [0, 640], sizes = [8, 128], strides = [1, 1]} : vector<8x768xf32> to vector<8x128xf32>
    %494 = arith.addf %493, %14 : vector<8x128xf32>
    %495 = arith.mulf %483, %494 : vector<8x128xf32>
    %496 = arith.addf %492, %495 : vector<8x128xf32>
    %497 = math.tanh %496 : vector<8x128xf32>
    %cst_105 = arith.constant 1.000000e+00 : f32
    %498 = vector.broadcast %cst_105 : f32 to vector<8x128xf32>
    %499 = arith.subf %498, %469 : vector<8x128xf32>
    %500 = arith.mulf %499, %475 : vector<8x128xf32>
    %501 = arith.mulf %469, %452 : vector<8x128xf32>
    %502 = arith.addf %500, %501 : vector<8x128xf32>
    %cst_106 = arith.constant 1.000000e+00 : f32
    %503 = vector.broadcast %cst_106 : f32 to vector<8x128xf32>
    %504 = arith.subf %503, %491 : vector<8x128xf32>
    %505 = arith.mulf %504, %497 : vector<8x128xf32>
    %506 = arith.mulf %491, %453 : vector<8x128xf32>
    %507 = arith.addf %505, %506 : vector<8x128xf32>
    %508 = arith.index_cast %443 : i32 to index
    %c0_107 = arith.constant 0 : index
    %509 = vector.load %arg11[%508, %c0_107] : memref<64x256xf32, #tpu.memory_space<vmem>>, vector<8x128xf32>
    tpu.vector_store %arg11[%508, %c0_107], %502 {strides = array<i32>} : memref<64x256xf32, #tpu.memory_space<vmem>>, vector<8x128xf32>,
    %510 = arith.index_cast %446 : i32 to index
    %c128_108 = arith.constant 128 : index
    %511 = vector.load %arg11[%510, %c128_108] : memref<64x256xf32, #tpu.memory_space<vmem>>, vector<8x128xf32>
    tpu.vector_store %arg11[%510, %c128_108], %507 {strides = array<i32>} : memref<64x256xf32, #tpu.memory_space<vmem>>, vector<8x128xf32>,
    %512 = tpu.concatenate %502, %507 in 1 : vector<8x128xf32>, vector<8x128xf32> -> vector<8x256xf32>
    %c7_i32_109 = arith.constant 7 : i32
    %c8_i32_110 = arith.constant 8 : i32
    %513 = arith.muli %c7_i32_109, %c8_i32_110 : i32
    %514 = tpu.assume_multiple %513, 8 : i32
    %c7_i32_111 = arith.constant 7 : i32
    %515 = arith.subi %c7_i32_111, %c7_i32_109 : i32
    %c8_i32_112 = arith.constant 8 : i32
    %516 = arith.muli %515, %c8_i32_112 : i32
    %517 = tpu.assume_multiple %516, 8 : i32
    %518 = arith.index_cast %514 : i32 to index
    %c0_113 = arith.constant 0 : index
    %519 = vector.load %arg10[%518, %c0_113] : memref<64x768xf32, #tpu.memory_space<vmem>>, vector<8x384xf32>
    %520 = arith.index_cast %517 : i32 to index
    %c384_114 = arith.constant 384 : index
    %521 = vector.load %arg10[%520, %c384_114] : memref<64x768xf32, #tpu.memory_space<vmem>>, vector<8x384xf32>
    %cst_115 = arith.constant dense<0.000000e+00> : vector<8x768xf32>
    %522 = tpu.matmul %512, %8, %cst_115 {dimension_numbers = #tpu.dot_dimension_numbers<[1], [0], [0], [1], [0, 0, 1, 1], [], []>} : vector<8x256xf32>, vector<256x768xf32>, vector<8x768xf32> -> vector<8x768xf32>
    %523 = vector.extract_strided_slice %512 {offsets = [0, 0], sizes = [8, 128], strides = [1, 1]} : vector<8x256xf32> to vector<8x128xf32>
    %524 = vector.extract_strided_slice %512 {offsets = [0, 128], sizes = [8, 128], strides = [1, 1]} : vector<8x256xf32> to vector<8x128xf32>
    %525 = vector.extract_strided_slice %519 {offsets = [0, 0], sizes = [8, 128], strides = [1, 1]} : vector<8x384xf32> to vector<8x128xf32>
    %526 = vector.extract_strided_slice %522 {offsets = [0, 0], sizes = [8, 128], strides = [1, 1]} : vector<8x768xf32> to vector<8x128xf32>
    %527 = arith.addf %525, %526 : vector<8x128xf32>
    %528 = arith.negf %527 : vector<8x128xf32>
    %529 = math.exp %528 : vector<8x128xf32>
    %cst_116 = arith.constant 1.000000e+00 : f32
    %530 = vector.broadcast %cst_116 : f32 to vector<8x128xf32>
    %531 = arith.addf %530, %529 : vector<8x128xf32>
    %532 = arith.divf %530, %531 : vector<8x128xf32>
    %533 = vector.extract_strided_slice %519 {offsets = [0, 128], sizes = [8, 128], strides = [1, 1]} : vector<8x384xf32> to vector<8x128xf32>
    %534 = vector.extract_strided_slice %522 {offsets = [0, 128], sizes = [8, 128], strides = [1, 1]} : vector<8x768xf32> to vector<8x128xf32>
    %535 = arith.addf %533, %534 : vector<8x128xf32>
    %536 = arith.negf %535 : vector<8x128xf32>
    %537 = math.exp %536 : vector<8x128xf32>
    %cst_117 = arith.constant 1.000000e+00 : f32
    %538 = vector.broadcast %cst_117 : f32 to vector<8x128xf32>
    %539 = arith.addf %538, %537 : vector<8x128xf32>
    %540 = arith.divf %538, %539 : vector<8x128xf32>
    %541 = vector.extract_strided_slice %519 {offsets = [0, 256], sizes = [8, 128], strides = [1, 1]} : vector<8x384xf32> to vector<8x128xf32>
    %542 = vector.extract_strided_slice %522 {offsets = [0, 256], sizes = [8, 128], strides = [1, 1]} : vector<8x768xf32> to vector<8x128xf32>
    %543 = arith.addf %542, %11 : vector<8x128xf32>
    %544 = arith.mulf %532, %543 : vector<8x128xf32>
    %545 = arith.addf %541, %544 : vector<8x128xf32>
    %546 = math.tanh %545 : vector<8x128xf32>
    %547 = vector.extract_strided_slice %521 {offsets = [0, 0], sizes = [8, 128], strides = [1, 1]} : vector<8x384xf32> to vector<8x128xf32>
    %548 = vector.extract_strided_slice %522 {offsets = [0, 384], sizes = [8, 128], strides = [1, 1]} : vector<8x768xf32> to vector<8x128xf32>
    %549 = arith.addf %547, %548 : vector<8x128xf32>
    %550 = arith.negf %549 : vector<8x128xf32>
    %551 = math.exp %550 : vector<8x128xf32>
    %cst_118 = arith.constant 1.000000e+00 : f32
    %552 = vector.broadcast %cst_118 : f32 to vector<8x128xf32>
    %553 = arith.addf %552, %551 : vector<8x128xf32>
    %554 = arith.divf %552, %553 : vector<8x128xf32>
    %555 = vector.extract_strided_slice %521 {offsets = [0, 128], sizes = [8, 128], strides = [1, 1]} : vector<8x384xf32> to vector<8x128xf32>
    %556 = vector.extract_strided_slice %522 {offsets = [0, 512], sizes = [8, 128], strides = [1, 1]} : vector<8x768xf32> to vector<8x128xf32>
    %557 = arith.addf %555, %556 : vector<8x128xf32>
    %558 = arith.negf %557 : vector<8x128xf32>
    %559 = math.exp %558 : vector<8x128xf32>
    %cst_119 = arith.constant 1.000000e+00 : f32
    %560 = vector.broadcast %cst_119 : f32 to vector<8x128xf32>
    %561 = arith.addf %560, %559 : vector<8x128xf32>
    %562 = arith.divf %560, %561 : vector<8x128xf32>
    %563 = vector.extract_strided_slice %521 {offsets = [0, 256], sizes = [8, 128], strides = [1, 1]} : vector<8x384xf32> to vector<8x128xf32>
    %564 = vector.extract_strided_slice %522 {offsets = [0, 640], sizes = [8, 128], strides = [1, 1]} : vector<8x768xf32> to vector<8x128xf32>
    %565 = arith.addf %564, %14 : vector<8x128xf32>
    %566 = arith.mulf %554, %565 : vector<8x128xf32>
    %567 = arith.addf %563, %566 : vector<8x128xf32>
    %568 = math.tanh %567 : vector<8x128xf32>
    %cst_120 = arith.constant 1.000000e+00 : f32
    %569 = vector.broadcast %cst_120 : f32 to vector<8x128xf32>
    %570 = arith.subf %569, %540 : vector<8x128xf32>
    %571 = arith.mulf %570, %546 : vector<8x128xf32>
    %572 = arith.mulf %540, %523 : vector<8x128xf32>
    %573 = arith.addf %571, %572 : vector<8x128xf32>
    %cst_121 = arith.constant 1.000000e+00 : f32
    %574 = vector.broadcast %cst_121 : f32 to vector<8x128xf32>
    %575 = arith.subf %574, %562 : vector<8x128xf32>
    %576 = arith.mulf %575, %568 : vector<8x128xf32>
    %577 = arith.mulf %562, %524 : vector<8x128xf32>
    %578 = arith.addf %576, %577 : vector<8x128xf32>
    %579 = arith.index_cast %514 : i32 to index
    %c0_122 = arith.constant 0 : index
    %580 = vector.load %arg11[%579, %c0_122] : memref<64x256xf32, #tpu.memory_space<vmem>>, vector<8x128xf32>
    tpu.vector_store %arg11[%579, %c0_122], %573 {strides = array<i32>} : memref<64x256xf32, #tpu.memory_space<vmem>>, vector<8x128xf32>,
    %581 = arith.index_cast %517 : i32 to index
    %c128_123 = arith.constant 128 : index
    %582 = vector.load %arg11[%581, %c128_123] : memref<64x256xf32, #tpu.memory_space<vmem>>, vector<8x128xf32>
    tpu.vector_store %arg11[%581, %c128_123], %578 {strides = array<i32>} : memref<64x256xf32, #tpu.memory_space<vmem>>, vector<8x128xf32>,
    %583 = tpu.concatenate %573, %578 in 1 : vector<8x128xf32>, vector<8x128xf32> -> vector<8x256xf32>
    %c8_i32_124 = arith.constant 8 : i32
    %c0_125 = arith.constant 0 : index
    %c0_126 = arith.constant 0 : index
    %584 = vector.load %arg11[%c0_125, %c0_126] : memref<64x256xf32, #tpu.memory_space<vmem>>, vector<64x256xf32>
    %c0_127 = arith.constant 0 : index
    %c0_128 = arith.constant 0 : index
    %585 = vector.load %arg7[%c0_127, %c0_128] : memref<256x128xf32, #tpu.memory_space<vmem>>, vector<256x128xf32>
    %cst_129 = arith.constant dense<0.000000e+00> : vector<64x128xf32>
    %586 = tpu.matmul %584, %585, %cst_129 {dimension_numbers = #tpu.dot_dimension_numbers<[1], [0], [0], [1], [0, 0, 1, 1], [], []>} : vector<64x256xf32>, vector<256x128xf32>, vector<64x128xf32> -> vector<64x128xf32>
    %c0_130 = arith.constant 0 : index
    %c0_131 = arith.constant 0 : index
    %587 = vector.load %arg8[%c0_130, %c0_131] : memref<1x128xf32, #tpu.memory_space<vmem>>, vector<1x128xf32>
    %588 = vector.broadcast %587 : vector<1x128xf32> to vector<64x128xf32>
    %589 = arith.addf %586, %588 : vector<64x128xf32>
    %cst_132 = arith.constant 0.000000e+00 : f32
    %590 = vector.broadcast %cst_132 : f32 to vector<64x128xf32>
    %591 = arith.maximumf %589, %590 : vector<64x128xf32>
    %592 = vector.shape_cast %591 : vector<64x128xf32> to vector<8x8x128xf32>
    %c0_133 = arith.constant 0 : index
    %c0_134 = arith.constant 0 : index
    %c0_135 = arith.constant 0 : index
    %593 = vector.load %arg9[%c0_133, %c0_134, %c0_135] : memref<8x8x128xf32, #tpu.memory_space<vmem>>, vector<8x8x128xf32>
    tpu.vector_store %arg9[%c0_133, %c0_134, %c0_135], %592 {strides = array<i32>} : memref<8x8x128xf32, #tpu.memory_space<vmem>>, vector<8x8x128xf32>,
    return
  }
  func.func @transform_0(%arg0: i32) -> (i32, i32, i32) {
    %c0_i32 = arith.constant 0 : i32
    %c0_i32_0 = arith.constant 0 : i32
    %c0_i32_1 = arith.constant 0 : i32
    return %c0_i32, %arg0, %c0_i32_0 : i32, i32, i32
  }
  func.func @transform_1(%arg0: i32) -> (i32, i32) {
    %c0_i32 = arith.constant 0 : i32
    %c0_i32_0 = arith.constant 0 : i32
    %c0_i32_1 = arith.constant 0 : i32
    return %c0_i32, %c0_i32_0 : i32, i32
  }
  func.func @transform_2(%arg0: i32) -> (i32, i32) {
    %c0_i32 = arith.constant 0 : i32
    %c0_i32_0 = arith.constant 0 : i32
    %c0_i32_1 = arith.constant 0 : i32
    return %c0_i32, %c0_i32_0 : i32, i32
  }
  func.func @transform_3(%arg0: i32) -> (i32, i32) {
    %c0_i32 = arith.constant 0 : i32
    %c0_i32_0 = arith.constant 0 : i32
    %c0_i32_1 = arith.constant 0 : i32
    return %c0_i32, %c0_i32_0 : i32, i32
  }
  func.func @transform_4(%arg0: i32) -> (i32, i32) {
    %c0_i32 = arith.constant 0 : i32
    %c0_i32_0 = arith.constant 0 : i32
    %c0_i32_1 = arith.constant 0 : i32
    return %c0_i32, %c0_i32_0 : i32, i32
  }
  func.func @transform_5(%arg0: i32) -> (i32, i32) {
    %c0_i32 = arith.constant 0 : i32
    %c0_i32_0 = arith.constant 0 : i32
    %c0_i32_1 = arith.constant 0 : i32
    return %c0_i32, %c0_i32_0 : i32, i32
  }
  func.func @transform_6(%arg0: i32) -> (i32, i32) {
    %c0_i32 = arith.constant 0 : i32
    %c0_i32_0 = arith.constant 0 : i32
    %c0_i32_1 = arith.constant 0 : i32
    return %c0_i32, %c0_i32_0 : i32, i32
  }
  func.func @transform_7(%arg0: i32) -> (i32, i32) {
    %c0_i32 = arith.constant 0 : i32
    %c0_i32_0 = arith.constant 0 : i32
    %c0_i32_1 = arith.constant 0 : i32
    return %c0_i32, %c0_i32_0 : i32, i32
  }
  func.func @transform_8(%arg0: i32) -> (i32, i32, i32) {
    %c0_i32 = arith.constant 0 : i32
    %c0_i32_0 = arith.constant 0 : i32
    %c0_i32_1 = arith.constant 0 : i32
    return %c0_i32, %arg0, %c0_i32_0 : i32, i32, i32
  }
}

</mosaic_0001>

<llo_original>
// kernel: tpu_custom_call.1
$region0: #{tpu_custom_call.1}
  #allocation0 [shape = 'u32[]', space=smem, size = 0x4, offset = 0x4, fixed_abs, tag = 'smem constant byte address 0x4 - core index']
  #allocation1 [shape = 'u32[144,128]{1,0:T(1,128)}', space=vmem, size = 0x12000, scoped, tag = 'internal scratch']
  #allocation2 [shape = 'f32[64,768]{1,0:T(8,128)}', space=vmem, size = 0x30000, scoped, tag = 'scratch operand']
  #allocation3 [shape = 'f32[64,256]{1,0:T(8,128)}', space=vmem, size = 0x10000, scoped, tag = 'scratch operand']
  %s0 = inlined_call_operand.hbm [shape: f32[8,8,128], index: 0, kind: input, shape index: {}]
  %s1 = inlined_call_operand.hbm [shape: f32[128,768], index: 1, kind: input, shape index: {}]
  %s2 = inlined_call_operand.vmem [shape: f32[1,768], index: 2, kind: input, shape index: {}]
  %s3 = inlined_call_operand.hbm [shape: f32[256,768], index: 3, kind: input, shape index: {}]
  %s4 = inlined_call_operand.vmem [shape: f32[1,128], index: 4, kind: input, shape index: {}]
  %s5 = inlined_call_operand.vmem [shape: f32[1,128], index: 5, kind: input, shape index: {}]
  %s6 = inlined_call_operand.hbm [shape: f32[256,128], index: 6, kind: input, shape index: {}]
  %s7 = inlined_call_operand.vmem [shape: f32[1,128], index: 7, kind: input, shape index: {}]
  %s8 = inlined_call_operand.hbm [shape: f32[8,8,128], index: 8, kind: output, shape index: {}]
  %s9 = sld [smem:[#allocation0]]
  $region58: #{tpu_custom_call.1} parent=0
    _
  %s11 = ssub.s32 1, %s9
  %s12 = scalar_select 0, %s11, %s9
  $region1: #{tpu_custom_call.1} parent=0
    #allocation4 [shape = 'u8[32768]{0}', space=vmem, size = 0x8000, scoped, tag = 'input window, operand 0, single buffered']
    #allocation5 [shape = 's32[1]{0}', space=sflag, size = 0x4, scoped, tag = 'scoped memory for tpu_custom_call.1']
    #allocation6 [shape = 's32[1]{0}', space=sflag, size = 0x4, scoped, tag = 'scoped memory for tpu_custom_call.1']
    #allocation7 [shape = 'u8[393216]{0}', space=vmem, size = 0x60000, scoped, tag = 'input window, operand 1, single buffered']
    #allocation8 [shape = 's32[1]{0}', space=sflag, size = 0x4, scoped, tag = 'scoped memory for tpu_custom_call.1']
    #allocation9 [shape = 'u8[786432]{0}', space=vmem, size = 0xc0000, scoped, tag = 'input window, operand 3, single buffered']
    #allocation10 [shape = 'u8[131072]{0}', space=vmem, size = 0x20000, scoped, tag = 'input window, operand 6, single buffered']
    #allocation11 [shape = 's32[1]{0}', space=sflag, size = 0x4, scoped, tag = 'scoped memory for tpu_custom_call.1']
    #allocation12 [shape = 'u8[32768]{0}', space=vmem, size = 0x8000, scoped, tag = 'output window, operand 0, single buffered']
    %13 = vsyncpa [#allocation5], 0
    %14 = vsyncpa [#allocation8], 0
    %15 = vsyncpa [#allocation11], 0
    %16 = vsyncpa [#allocation6], 0
    // Predicated region
    $region2: #{tpu_custom_call.1} parent=1 // pred_check
      _
    $region3: #{tpu_custom_call.1} parent=1 // pred_check_branch
      %18 = sbr.rel (0) target = $region5
    $region4: #{tpu_custom_call.1} parent=1 // pred_region
      %s20 = ssub.s32 1024, 1024
      %21 = vsyncadd [#allocation5], %s20
      %s22 = sshll.u32 [#allocation4], 4
      %s23 = int_to_ptr.vmem [resolvable:$true] %s22
      %28 = dma.hbm_to_vmem [thread:$0]  %s0, 1024, %s23, [#allocation5], 128, 128, 8
    $region5: #{tpu_custom_call.1} parent=1 // pred_fallthru
      _
    // Predicated region
    $region6: #{tpu_custom_call.1} parent=1 // pred_check
      _
    $region7: #{tpu_custom_call.1} parent=1 // pred_check_branch
      %30 = sbr.rel (0) target = $region9
    $region8: #{tpu_custom_call.1} parent=1 // pred_region
      %s32 = ssub.s32 12288, 12288
      %33 = vsyncadd [#allocation8], %s32
      %s34 = sshll.u32 [#allocation7], 4
      %s35 = int_to_ptr.vmem [resolvable:$true] %s34
      %40 = dma.hbm_to_vmem [thread:$0]  %s1, 12288, %s35, [#allocation8], 768, 768, 48
    $region9: #{tpu_custom_call.1} parent=1 // pred_fallthru
      _
    // Predicated region
    $region10: #{tpu_custom_call.1} parent=1 // pred_check
      _
    $region11: #{tpu_custom_call.1} parent=1 // pred_check_branch
      %42 = sbr.rel (0) target = $region13
    $region12: #{tpu_custom_call.1} parent=1 // pred_region
      _
    $region13: #{tpu_custom_call.1} parent=1 // pred_fallthru
      _
    // Predicated region
    $region14: #{tpu_custom_call.1} parent=1 // pred_check
      _
    $region15: #{tpu_custom_call.1} parent=1 // pred_check_branch
      %44 = sbr.rel (0) target = $region17
    $region16: #{tpu_custom_call.1} parent=1 // pred_region
      %s46 = ssub.s32 24576, 24576
      %47 = vsyncadd [#allocation8], %s46
      %s48 = sshll.u32 [#allocation9], 4
      %s49 = int_to_ptr.vmem [resolvable:$true] %s48
      %54 = dma.hbm_to_vmem [thread:$0]  %s3, 24576, %s49, [#allocation8], 768, 768, 48
    $region17: #{tpu_custom_call.1} parent=1 // pred_fallthru
      _
    // Predicated region
    $region18: #{tpu_custom_call.1} parent=1 // pred_check
      _
    $region19: #{tpu_custom_call.1} parent=1 // pred_check_branch
      %56 = sbr.rel (0) target = $region21
    $region20: #{tpu_custom_call.1} parent=1 // pred_region
      _
    $region21: #{tpu_custom_call.1} parent=1 // pred_fallthru
      _
    // Predicated region
    $region22: #{tpu_custom_call.1} parent=1 // pred_check
      _
    $region23: #{tpu_custom_call.1} parent=1 // pred_check_branch
      %58 = sbr.rel (0) target = $region25
    $region24: #{tpu_custom_call.1} parent=1 // pred_region
      _
    $region25: #{tpu_custom_call.1} parent=1 // pred_fallthru
      _
    // Predicated region
    $region26: #{tpu_custom_call.1} parent=1 // pred_check
      _
    $region27: #{tpu_custom_call.1} parent=1 // pred_check_branch
      %60 = sbr.rel (0) target = $region29
    $region28: #{tpu_custom_call.1} parent=1 // pred_region
      %s62 = ssub.s32 4096, 4096
      %63 = vsyncadd [#allocation11], %s62
      %s64 = sshll.u32 [#allocation10], 4
      %s65 = int_to_ptr.vmem [resolvable:$true] %s64
      %70 = dma.hbm_to_vmem [thread:$0]  %s6, 4096, %s65, [#allocation11], 128, 128, 8
    $region29: #{tpu_custom_call.1} parent=1 // pred_fallthru
      _
    // Predicated region
    $region30: #{tpu_custom_call.1} parent=1 // pred_check
      _
    $region31: #{tpu_custom_call.1} parent=1 // pred_check_branch
      %72 = sbr.rel (0) target = $region33
    $region32: #{tpu_custom_call.1} parent=1 // pred_region
      _
    $region33: #{tpu_custom_call.1} parent=1 // pred_fallthru
      _
    // Predicated region
    $region34: #{tpu_custom_call.1} parent=1 // pred_check
      _
    $region35: #{tpu_custom_call.1} parent=1 // pred_check_branch
      %74 = sbr.rel (0) target = $region37
    $region36: #{tpu_custom_call.1} parent=1 // pred_region
      %75 = dma.done [#allocation5], 1024
    $region37: #{tpu_custom_call.1} parent=1 // pred_fallthru
      _
    // Predicated region
    $region38: #{tpu_custom_call.1} parent=1 // pred_check
      _
    $region39: #{tpu_custom_call.1} parent=1 // pred_check_branch
      %77 = sbr.rel (0) target = $region41
    $region40: #{tpu_custom_call.1} parent=1 // pred_region
      %78 = dma.done [#allocation8], 12288
    $region41: #{tpu_custom_call.1} parent=1 // pred_fallthru
      _
    // Predicated region
    $region42: #{tpu_custom_call.1} parent=1 // pred_check
      _
    $region43: #{tpu_custom_call.1} parent=1 // pred_check_branch
      %80 = sbr.rel (0) target = $region45
    $region44: #{tpu_custom_call.1} parent=1 // pred_region
      %81 = dma.done [#allocation8], 24576
    $region45: #{tpu_custom_call.1} parent=1 // pred_fallthru
      _
    // Predicated region
    $region46: #{tpu_custom_call.1} parent=1 // pred_check
      _
    $region47: #{tpu_custom_call.1} parent=1 // pred_check_branch
      %83 = sbr.rel (0) target = $region49
    $region48: #{tpu_custom_call.1} parent=1 // pred_region
      %84 = dma.done [#allocation11], 4096
    $region49: #{tpu_custom_call.1} parent=1 // pred_fallthru
      _
    %v85 = vld [vmem:[#allocation4] sm:$0xff]
    %v86 = vld [vmem:[#allocation4 + $0x8] sm:$0xff]
    %v87 = vld [vmem:[#allocation4 + $0x10] sm:$0xff]
    %v88 = vld [vmem:[#allocation4 + $0x18] sm:$0xff]
    %v89 = vld [vmem:[#allocation4 + $0x20] sm:$0xff]
    %v90 = vld [vmem:[#allocation4 + $0x28] sm:$0xff]
    %v91 = vld [vmem:[#allocation4 + $0x30] sm:$0xff]
    %v92 = vld [vmem:[#allocation4 + $0x38] sm:$0xff]
    %v93 = vld [vmem:[#allocation7] sm:$0xff]
    %v94 = vld [vmem:[#allocation7 + $0x8] sm:$0xff]
    %v95 = vld [vmem:[#allocation7 + $0x10] sm:$0xff]
    %v96 = vld [vmem:[#allocation7 + $0x18] sm:$0xff]
    %v97 = vld [vmem:[#allocation7 + $0x20] sm:$0xff]
    %v98 = vld [vmem:[#allocation7 + $0x28] sm:$0xff]
    %v99 = vld [vmem:[#allocation7 + $0x30] sm:$0xff]
    %v100 = vld [vmem:[#allocation7 + $0x38] sm:$0xff]
    %v101 = vld [vmem:[#allocation7 + $0x40] sm:$0xff]
    %v102 = vld [vmem:[#allocation7 + $0x48] sm:$0xff]
    %v103 = vld [vmem:[#allocation7 + $0x50] sm:$0xff]
    %v104 = vld [vmem:[#allocation7 + $0x58] sm:$0xff]
    %v105 = vld [vmem:[#allocation7 + $0x60] sm:$0xff]
    %v106 = vld [vmem:[#allocation7 + $0x68] sm:$0xff]
    %v107 = vld [vmem:[#allocation7 + $0x70] sm:$0xff]
    %v108 = vld [vmem:[#allocation7 + $0x78] sm:$0xff]
    %v109 = vld [vmem:[#allocation7 + $0x80] sm:$0xff]
    %v110 = vld [vmem:[#allocation7 + $0x88] sm:$0xff]
    %v111 = vld [vmem:[#allocation7 + $0x90] sm:$0xff]
    %v112 = vld [vmem:[#allocation7 + $0x98] sm:$0xff]
    %v113 = vld [vmem:[#allocation7 + $0xa0] sm:$0xff]
    %v114 = vld [vmem:[#allocation7 + $0xa8] sm:$0xff]
    %v115 = vld [vmem:[#allocation7 + $0xb0] sm:$0xff]
    %v116 = vld [vmem:[#allocation7 + $0xb8] sm:$0xff]
    %v117 = vld [vmem:[#allocation7 + $0xc0] sm:$0xff]
    %v118 = vld [vmem:[#allocation7 + $0xc8] sm:$0xff]
    %v119 = vld [vmem:[#allocation7 + $0xd0] sm:$0xff]
    %v120 = vld [vmem:[#allocation7 + $0xd8] sm:$0xff]
    %v121 = vld [vmem:[#allocation7 + $0xe0] sm:$0xff]
    %v122 = vld [vmem:[#allocation7 + $0xe8] sm:$0xff]
    %v123 = vld [vmem:[#allocation7 + $0xf0] sm:$0xff]
    %v124 = vld [vmem:[#allocation7 + $0xf8] sm:$0xff]
    %v125 = vld [vmem:[#allocation7 + $0x100] sm:$0xff]
    %v126 = vld [vmem:[#allocation7 + $0x108] sm:$0xff]
    %v127 = vld [vmem:[#allocation7 + $0x110] sm:$0xff]
    %v128 = vld [vmem:[#allocation7 + $0x118] sm:$0xff]
    %v129 = vld [vmem:[#allocation7 + $0x120] sm:$0xff]
    %v130 = vld [vmem:[#allocation7 + $0x128] sm:$0xff]
    %v131 = vld [vmem:[#allocation7 + $0x130] sm:$0xff]
    %v132 = vld [vmem:[#allocation7 + $0x138] sm:$0xff]
    %v133 = vld [vmem:[#allocation7 + $0x140] sm:$0xff]
    %v134 = vld [vmem:[#allocation7 + $0x148] sm:$0xff]
    %v135 = vld [vmem:[#allocation7 + $0x150] sm:$0xff]
    %v136 = vld [vmem:[#allocation7 + $0x158] sm:$0xff]
    %v137 = vld [vmem:[#allocation7 + $0x160] sm:$0xff]
    %v138 = vld [vmem:[#allocation7 + $0x168] sm:$0xff]
    %v139 = vld [vmem:[#allocation7 + $0x170] sm:$0xff]
    %v140 = vld [vmem:[#allocation7 + $0x178] sm:$0xff]
    %v141 = vld [vmem:[#allocation7 + $0x180] sm:$0xff]
    %v142 = vld [vmem:[#allocation7 + $0x188] sm:$0xff]
    %v143 = vld [vmem:[#allocation7 + $0x190] sm:$0xff]
    %v144 = vld [vmem:[#allocation7 + $0x198] sm:$0xff]
    %v145 = vld [vmem:[#allocation7 + $0x1a0] sm:$0xff]
    %v146 = vld [vmem:[#allocation7 + $0x1a8] sm:$0xff]
    %v147 = vld [vmem:[#allocation7 + $0x1b0] sm:$0xff]
    %v148 = vld [vmem:[#allocation7 + $0x1b8] sm:$0xff]
    %v149 = vld [vmem:[#allocation7 + $0x1c0] sm:$0xff]
    %v150 = vld [vmem:[#allocation7 + $0x1c8] sm:$0xff]
    %v151 = vld [vmem:[#allocation7 + $0x1d0] sm:$0xff]
    %v152 = vld [vmem:[#allocation7 + $0x1d8] sm:$0xff]
    %v153 = vld [vmem:[#allocation7 + $0x1e0] sm:$0xff]
    %v154 = vld [vmem:[#allocation7 + $0x1e8] sm:$0xff]
    %v155 = vld [vmem:[#allocation7 + $0x1f0] sm:$0xff]
    %v156 = vld [vmem:[#allocation7 + $0x1f8] sm:$0xff]
    %v157 = vld [vmem:[#allocation7 + $0x200] sm:$0xff]
    %v158 = vld [vmem:[#allocation7 + $0x208] sm:$0xff]
    %v159 = vld [vmem:[#allocation7 + $0x210] sm:$0xff]
    %v160 = vld [vmem:[#allocation7 + $0x218] sm:$0xff]
    %v161 = vld [vmem:[#allocation7 + $0x220] sm:$0xff]
    %v162 = vld [vmem:[#allocation7 + $0x228] sm:$0xff]
    %v163 = vld [vmem:[#allocation7 + $0x230] sm:$0xff]
    %v164 = vld [vmem:[#allocation7 + $0x238] sm:$0xff]
    %v165 = vld [vmem:[#allocation7 + $0x240] sm:$0xff]
    %v166 = vld [vmem:[#allocation7 + $0x248] sm:$0xff]
    %v167 = vld [vmem:[#allocation7 + $0x250] sm:$0xff]
    %v168 = vld [vmem:[#allocation7 + $0x258] sm:$0xff]
    %v169 = vld [vmem:[#allocation7 + $0x260] sm:$0xff]
    %v170 = vld [vmem:[#allocation7 + $0x268] sm:$0xff]
    %v171 = vld [vmem:[#allocation7 + $0x270] sm:$0xff]
    %v172 = vld [vmem:[#allocation7 + $0x278] sm:$0xff]
    %v173 = vld [vmem:[#allocation7 + $0x280] sm:$0xff]
    %v174 = vld [vmem:[#allocation7 + $0x288] sm:$0xff]
    %v175 = vld [vmem:[#allocation7 + $0x290] sm:$0xff]
    %v176 = vld [vmem:[#allocation7 + $0x298] sm:$0xff]
    %v177 = vld [vmem:[#allocation7 + $0x2a0] sm:$0xff]
    %v178 = vld [vmem:[#allocation7 + $0x2a8] sm:$0xff]
    %v179 = vld [vmem:[#allocation7 + $0x2b0] sm:$0xff]
    %v180 = vld [vmem:[#allocation7 + $0x2b8] sm:$0xff]
    %v181 = vld [vmem:[#allocation7 + $0x2c0] sm:$0xff]
    %v182 = vld [vmem:[#allocation7 + $0x2c8] sm:$0xff]
    %v183 = vld [vmem:[#allocation7 + $0x2d0] sm:$0xff]
    %v184 = vld [vmem:[#allocation7 + $0x2d8] sm:$0xff]
    %v185 = vld [vmem:[#allocation7 + $0x2e0] sm:$0xff]
    %v186 = vld [vmem:[#allocation7 + $0x2e8] sm:$0xff]
    %v187 = vld [vmem:[#allocation7 + $0x2f0] sm:$0xff]
    %v188 = vld [vmem:[#allocation7 + $0x2f8] sm:$0xff]
    %v189 = vld [vmem:[%s2] sm:$0x3f]
    %v191 = vlaneseq
    %v192 = vshrl.u32 %v191, 7
    %v193 = vsub.s32 0, %v192
    %v194 = vrot.slane %v189, %v193
    %v195 = vlaneseq
    %v196 = vshrl.u32 %v195, 7
    %v197 = vsub.s32 1, %v196
    %v198 = vrot.slane %v189, %v197
    %v199 = vlaneseq
    %v200 = vshrl.u32 %v199, 7
    %v201 = vsub.s32 2, %v200
    %v202 = vrot.slane %v189, %v201
    %v203 = vlaneseq
    %v204 = vshrl.u32 %v203, 7
    %v205 = vsub.s32 3, %v204
    %v206 = vrot.slane %v189, %v205
    %v207 = vlaneseq
    %v208 = vshrl.u32 %v207, 7
    %v209 = vsub.s32 4, %v208
    %v210 = vrot.slane %v189, %v209
    %v211 = vlaneseq
    %v212 = vshrl.u32 %v211, 7
    %v213 = vsub.s32 5, %v212
    %v214 = vrot.slane %v189, %v213
    %221 = vmatprep.subr.mxu0 %v94
    %222 = vmatpush1.msra.mxu0 %v93
    %223 = vmatprep.subr.mxu0 %v100
    %224 = vmatpush1.msra.mxu0 %v99
    %225 = vmatprep.subr.mxu0 %v106
    %226 = vmatpush1.msra.mxu0 %v105
    %227 = vmatprep.subr.mxu0 %v112
    %228 = vmatpush1.msra.mxu0 %v111
    %229 = vmatprep.subr.mxu0 %v118
    %230 = vmatpush1.msra.mxu0 %v117
    %231 = vmatprep.subr.mxu0 %v124
    %232 = vmatpush1.msra.mxu0 %v123
    %233 = vmatprep.subr.mxu0 %v130
    %234 = vmatpush1.msra.mxu0 %v129
    %235 = vmatprep.subr.mxu0 %v136
    %236 = vmatpush1.msra.mxu0 %v135
    %237 = vmatprep.subr.mxu0 %v142
    %238 = vmatpush1.msra.mxu0 %v141
    %239 = vmatprep.subr.mxu0 %v148
    %240 = vmatpush1.msra.mxu0 %v147
    %241 = vmatprep.subr.mxu0 %v154
    %242 = vmatpush1.msra.mxu0 %v153
    %243 = vmatprep.subr.mxu0 %v160
    %244 = vmatpush1.msra.mxu0 %v159
    %245 = vmatprep.subr.mxu0 %v166
    %246 = vmatpush1.msra.mxu0 %v165
    %247 = vmatprep.subr.mxu0 %v172
    %248 = vmatpush1.msra.mxu0 %v171
    %249 = vmatprep.subr.mxu0 %v178
    %250 = vmatpush1.msra.mxu0 %v177
    %251 = vmatprep.subr.mxu0 %v184
    %252 = vmatpush1.msra.mxu0 %v183
    %253 = vmatprep.subr.mxu0 0.0
    %254 = vmatpush1.msra.mxu0 0.0
    %255 = vmatprep.subr.mxu0 0.0
    %256 = vmatpush1.msra.mxu0 0.0
    %257 = vmatprep.subr.mxu0 0.0
    %258 = vmatpush1.msra.mxu0 0.0
    %259 = vmatprep.subr.mxu0 0.0
    %260 = vmatpush1.msra.mxu0 0.0
    %261 = vmatprep.subr.mxu0 0.0
    %262 = vmatpush1.msra.mxu0 0.0
    %263 = vmatprep.subr.mxu0 0.0
    %264 = vmatpush1.msra.mxu0 0.0
    %265 = vmatprep.subr.mxu0 0.0
    %266 = vmatpush1.msra.mxu0 0.0
    %267 = vmatprep.subr.mxu0 0.0
    %268 = vmatpush1.msra.mxu0 0.0
    %269 = vmatprep.subr.mxu0 0.0
    %270 = vmatpush1.msra.mxu0 0.0
    %271 = vmatprep.subr.mxu0 0.0
    %272 = vmatpush1.msra.mxu0 0.0
    %273 = vmatprep.subr.mxu0 0.0
    %274 = vmatpush1.msra.mxu0 0.0
    %275 = vmatprep.subr.mxu0 0.0
    %276 = vmatpush1.msra.mxu0 0.0
    %277 = vmatprep.subr.mxu0 0.0
    %278 = vmatpush1.msra.mxu0 0.0
    %279 = vmatprep.subr.mxu0 0.0
    %280 = vmatpush1.msra.mxu0 0.0
    %281 = vmatprep.subr.mxu0 0.0
    %282 = vmatpush1.msra.mxu0 0.0
    %283 = vmatprep.subr.mxu0 0.0
    %284 = vmatpush1.msra.mxu0 0.0
    %285 = vmatprep.mubr.f32.mxu0 0.0
    %286 = vmatmul.mubr.f32.gmra.mrb[0].mxu0 %v85
    %v287 = vpop.f32.mrb[0].mxu0
    %v288 = vadd.f32 %v194, %v287
    %v289 = vpop.f32.mrb[0].mxu0
    %v290 = vadd.f32 %v198, %v289
    %291 = vmatprep.mubr.f32.mxu0 0.0
    %292 = vmatmul.mubr.f32.gmra.mrb[0].mxu0 %v86
    %v293 = vpop.f32.mrb[0].mxu0
    %v294 = vadd.f32 %v194, %v293
    %v295 = vpop.f32.mrb[0].mxu0
    %v296 = vadd.f32 %v198, %v295
    %297 = vmatprep.mubr.f32.mxu0 0.0
    %298 = vmatmul.mubr.f32.gmra.mrb[0].mxu0 %v87
    %v299 = vpop.f32.mrb[0].mxu0
    %v300 = vadd.f32 %v194, %v299
    %v301 = vpop.f32.mrb[0].mxu0
    %v302 = vadd.f32 %v198, %v301
    %303 = vmatprep.mubr.f32.mxu0 0.0
    %304 = vmatmul.mubr.f32.gmra.mrb[0].mxu0 %v88
    %v305 = vpop.f32.mrb[0].mxu0
    %v306 = vadd.f32 %v194, %v305
    %v307 = vpop.f32.mrb[0].mxu0
    %v308 = vadd.f32 %v198, %v307
    %309 = vmatprep.mubr.f32.mxu0 0.0
    %310 = vmatmul.mubr.f32.gmra.mrb[0].mxu0 %v89
    %v311 = vpop.f32.mrb[0].mxu0
    %v312 = vadd.f32 %v194, %v311
    %v313 = vpop.f32.mrb[0].mxu0
    %v314 = vadd.f32 %v198, %v313
    %315 = vmatprep.mubr.f32.mxu0 0.0
    %316 = vmatmul.mubr.f32.gmra.mrb[0].mxu0 %v90
    %v317 = vpop.f32.mrb[0].mxu0
    %v318 = vadd.f32 %v194, %v317
    %v319 = vpop.f32.mrb[0].mxu0
    %v320 = vadd.f32 %v198, %v319
    %321 = vmatprep.mubr.f32.mxu0 0.0
    %322 = vmatmul.mubr.f32.gmra.mrb[0].mxu0 %v91
    %v323 = vpop.f32.mrb[0].mxu0
    %v324 = vadd.f32 %v194, %v323
    %v325 = vpop.f32.mrb[0].mxu0
    %v326 = vadd.f32 %v198, %v325
    %327 = vmatprep.mubr.f32.mxu0 0.0
    %328 = vmatmul.mubr.f32.gmra.mrb[0].mxu0 %v92
    %v329 = vpop.f32.mrb[0].mxu0
    %v330 = vadd.f32 %v194, %v329
    %v331 = vpop.f32.mrb[0].mxu0
    %v332 = vadd.f32 %v198, %v331
    %333 = vdwg.mxu0
    %334 = vmatprep.subr.mxu0 %v96
    %335 = vmatpush1.msra.mxu0 %v95
    %336 = vmatprep.subr.mxu0 %v102
    %337 = vmatpush1.msra.mxu0 %v101
    %338 = vmatprep.subr.mxu0 %v108
    %339 = vmatpush1.msra.mxu0 %v107
    %340 = vmatprep.subr.mxu0 %v114
    %341 = vmatpush1.msra.mxu0 %v113
    %342 = vmatprep.subr.mxu0 %v120
    %343 = vmatpush1.msra.mxu0 %v119
    %344 = vmatprep.subr.mxu0 %v126
    %345 = vmatpush1.msra.mxu0 %v125
    %346 = vmatprep.subr.mxu0 %v132
    %347 = vmatpush1.msra.mxu0 %v131
    %348 = vmatprep.subr.mxu0 %v138
    %349 = vmatpush1.msra.mxu0 %v137
    %350 = vmatprep.subr.mxu0 %v144
    %351 = vmatpush1.msra.mxu0 %v143
    %352 = vmatprep.subr.mxu0 %v150
    %353 = vmatpush1.msra.mxu0 %v149
    %354 = vmatprep.subr.mxu0 %v156
    %355 = vmatpush1.msra.mxu0 %v155
    %356 = vmatprep.subr.mxu0 %v162
    %357 = vmatpush1.msra.mxu0 %v161
    %358 = vmatprep.subr.mxu0 %v168
    %359 = vmatpush1.msra.mxu0 %v167
    %360 = vmatprep.subr.mxu0 %v174
    %361 = vmatpush1.msra.mxu0 %v173
    %362 = vmatprep.subr.mxu0 %v180
    %363 = vmatpush1.msra.mxu0 %v179
    %364 = vmatprep.subr.mxu0 %v186
    %365 = vmatpush1.msra.mxu0 %v185
    %366 = vmatprep.subr.mxu0 0.0
    %367 = vmatpush1.msra.mxu0 0.0
    %368 = vmatprep.subr.mxu0 0.0
    %369 = vmatpush1.msra.mxu0 0.0
    %370 = vmatprep.subr.mxu0 0.0
    %371 = vmatpush1.msra.mxu0 0.0
    %372 = vmatprep.subr.mxu0 0.0
    %373 = vmatpush1.msra.mxu0 0.0
    %374 = vmatprep.subr.mxu0 0.0
    %375 = vmatpush1.msra.mxu0 0.0
    %376 = vmatprep.subr.mxu0 0.0
    %377 = vmatpush1.msra.mxu0 0.0
    %378 = vmatprep.subr.mxu0 0.0
    %379 = vmatpush1.msra.mxu0 0.0
    %380 = vmatprep.subr.mxu0 0.0
    %381 = vmatpush1.msra.mxu0 0.0
    %382 = vmatprep.subr.mxu0 0.0
    %383 = vmatpush1.msra.mxu0 0.0
    %384 = vmatprep.subr.mxu0 0.0
    %385 = vmatpush1.msra.mxu0 0.0
    %386 = vmatprep.subr.mxu0 0.0
    %387 = vmatpush1.msra.mxu0 0.0
    %388 = vmatprep.subr.mxu0 0.0
    %389 = vmatpush1.msra.mxu0 0.0
    %390 = vmatprep.subr.mxu0 0.0
    %391 = vmatpush1.msra.mxu0 0.0
    %392 = vmatprep.subr.mxu0 0.0
    %393 = vmatpush1.msra.mxu0 0.0
    %394 = vmatprep.subr.mxu0 0.0
    %395 = vmatpush1.msra.mxu0 0.0
    %396 = vmatprep.subr.mxu0 0.0
    %397 = vmatpush1.msra.mxu0 0.0
    %398 = vmatprep.mubr.f32.mxu0 0.0
    %399 = vmatmul.mubr.f32.gmra.mrb[0].mxu0 %v85
    %v400 = vpop.f32.mrb[0].mxu0
    %v401 = vadd.f32 %v202, %v400
    %v402 = vpop.f32.mrb[0].mxu0
    %v403 = vadd.f32 %v206, %v402
    %404 = vmatprep.mubr.f32.mxu0 0.0
    %405 = vmatmul.mubr.f32.gmra.mrb[0].mxu0 %v86
    %v406 = vpop.f32.mrb[0].mxu0
    %v407 = vadd.f32 %v202, %v406
    %v408 = vpop.f32.mrb[0].mxu0
    %v409 = vadd.f32 %v206, %v408
    %410 = vmatprep.mubr.f32.mxu0 0.0
    %411 = vmatmul.mubr.f32.gmra.mrb[0].mxu0 %v87
    %v412 = vpop.f32.mrb[0].mxu0
    %v413 = vadd.f32 %v202, %v412
    %v414 = vpop.f32.mrb[0].mxu0
    %v415 = vadd.f32 %v206, %v414
    %416 = vmatprep.mubr.f32.mxu0 0.0
    %417 = vmatmul.mubr.f32.gmra.mrb[0].mxu0 %v88
    %v418 = vpop.f32.mrb[0].mxu0
    %v419 = vadd.f32 %v202, %v418
    %v420 = vpop.f32.mrb[0].mxu0
    %v421 = vadd.f32 %v206, %v420
    %422 = vmatprep.mubr.f32.mxu0 0.0
    %423 = vmatmul.mubr.f32.gmra.mrb[0].mxu0 %v89
    %v424 = vpop.f32.mrb[0].mxu0
    %v425 = vadd.f32 %v202, %v424
    %v426 = vpop.f32.mrb[0].mxu0
    %v427 = vadd.f32 %v206, %v426
    %428 = vmatprep.mubr.f32.mxu0 0.0
    %429 = vmatmul.mubr.f32.gmra.mrb[0].mxu0 %v90
    %v430 = vpop.f32.mrb[0].mxu0
    %v431 = vadd.f32 %v202, %v430
    %v432 = vpop.f32.mrb[0].mxu0
    %v433 = vadd.f32 %v206, %v432
    %434 = vmatprep.mubr.f32.mxu0 0.0
    %435 = vmatmul.mubr.f32.gmra.mrb[0].mxu0 %v91
    %v436 = vpop.f32.mrb[0].mxu0
    %v437 = vadd.f32 %v202, %v436
    %v438 = vpop.f32.mrb[0].mxu0
    %v439 = vadd.f32 %v206, %v438
    %440 = vmatprep.mubr.f32.mxu0 0.0
    %441 = vmatmul.mubr.f32.gmra.mrb[0].mxu0 %v92
    %v442 = vpop.f32.mrb[0].mxu0
    %v443 = vadd.f32 %v202, %v442
    %v444 = vpop.f32.mrb[0].mxu0
    %v445 = vadd.f32 %v206, %v444
    %446 = vdwg.mxu0
    %447 = vmatprep.subr.mxu0 %v98
    %448 = vmatpush1.msra.mxu0 %v97
    %449 = vmatprep.subr.mxu0 %v104
    %450 = vmatpush1.msra.mxu0 %v103
    %451 = vmatprep.subr.mxu0 %v110
    %452 = vmatpush1.msra.mxu0 %v109
    %453 = vmatprep.subr.mxu0 %v116
    %454 = vmatpush1.msra.mxu0 %v115
    %455 = vmatprep.subr.mxu0 %v122
    %456 = vmatpush1.msra.mxu0 %v121
    %457 = vmatprep.subr.mxu0 %v128
    %458 = vmatpush1.msra.mxu0 %v127
    %459 = vmatprep.subr.mxu0 %v134
    %460 = vmatpush1.msra.mxu0 %v133
    %461 = vmatprep.subr.mxu0 %v140
    %462 = vmatpush1.msra.mxu0 %v139
    %463 = vmatprep.subr.mxu0 %v146
    %464 = vmatpush1.msra.mxu0 %v145
    %465 = vmatprep.subr.mxu0 %v152
    %466 = vmatpush1.msra.mxu0 %v151
    %467 = vmatprep.subr.mxu0 %v158
    %468 = vmatpush1.msra.mxu0 %v157
    %469 = vmatprep.subr.mxu0 %v164
    %470 = vmatpush1.msra.mxu0 %v163
    %471 = vmatprep.subr.mxu0 %v170
    %472 = vmatpush1.msra.mxu0 %v169
    %473 = vmatprep.subr.mxu0 %v176
    %474 = vmatpush1.msra.mxu0 %v175
    %475 = vmatprep.subr.mxu0 %v182
    %476 = vmatpush1.msra.mxu0 %v181
    %477 = vmatprep.subr.mxu0 %v188
    %478 = vmatpush1.msra.mxu0 %v187
    %479 = vmatprep.subr.mxu0 0.0
    %480 = vmatpush1.msra.mxu0 0.0
    %481 = vmatprep.subr.mxu0 0.0
    %482 = vmatpush1.msra.mxu0 0.0
    %483 = vmatprep.subr.mxu0 0.0
    %484 = vmatpush1.msra.mxu0 0.0
    %485 = vmatprep.subr.mxu0 0.0
    %486 = vmatpush1.msra.mxu0 0.0
    %487 = vmatprep.subr.mxu0 0.0
    %488 = vmatpush1.msra.mxu0 0.0
    %489 = vmatprep.subr.mxu0 0.0
    %490 = vmatpush1.msra.mxu0 0.0
    %491 = vmatprep.subr.mxu0 0.0
    %492 = vmatpush1.msra.mxu0 0.0
    %493 = vmatprep.subr.mxu0 0.0
    %494 = vmatpush1.msra.mxu0 0.0
    %495 = vmatprep.subr.mxu0 0.0
    %496 = vmatpush1.msra.mxu0 0.0
    %497 = vmatprep.subr.mxu0 0.0
    %498 = vmatpush1.msra.mxu0 0.0
    %499 = vmatprep.subr.mxu0 0.0
    %500 = vmatpush1.msra.mxu0 0.0
    %501 = vmatprep.subr.mxu0 0.0
    %502 = vmatpush1.msra.mxu0 0.0
    %503 = vmatprep.subr.mxu0 0.0
    %504 = vmatpush1.msra.mxu0 0.0
    %505 = vmatprep.subr.mxu0 0.0
    %506 = vmatpush1.msra.mxu0 0.0
    %507 = vmatprep.subr.mxu0 0.0
    %508 = vmatpush1.msra.mxu0 0.0
    %509 = vmatprep.subr.mxu0 0.0
    %510 = vmatpush1.msra.mxu0 0.0
    %511 = vmatprep.mubr.f32.mxu0 0.0
    %512 = vmatmul.mubr.f32.gmra.mrb[0].mxu0 %v85
    %v513 = vpop.f32.mrb[0].mxu0
    %v514 = vadd.f32 %v210, %v513
    %v515 = vpop.f32.mrb[0].mxu0
    %v516 = vadd.f32 %v214, %v515
    %517 = vmatprep.mubr.f32.mxu0 0.0
    %518 = vmatmul.mubr.f32.gmra.mrb[0].mxu0 %v86
    %v519 = vpop.f32.mrb[0].mxu0
    %v520 = vadd.f32 %v210, %v519
    %v521 = vpop.f32.mrb[0].mxu0
    %v522 = vadd.f32 %v214, %v521
    %523 = vmatprep.mubr.f32.mxu0 0.0
    %524 = vmatmul.mubr.f32.gmra.mrb[0].mxu0 %v87
    %v525 = vpop.f32.mrb[0].mxu0
    %v526 = vadd.f32 %v210, %v525
    %v527 = vpop.f32.mrb[0].mxu0
    %v528 = vadd.f32 %v214, %v527
    %529 = vmatprep.mubr.f32.mxu0 0.0
    %530 = vmatmul.mubr.f32.gmra.mrb[0].mxu0 %v88
    %v531 = vpop.f32.mrb[0].mxu0
    %v532 = vadd.f32 %v210, %v531
    %v533 = vpop.f32.mrb[0].mxu0
    %v534 = vadd.f32 %v214, %v533
    %535 = vmatprep.mubr.f32.mxu0 0.0
    %536 = vmatmul.mubr.f32.gmra.mrb[0].mxu0 %v89
    %v537 = vpop.f32.mrb[0].mxu0
    %v538 = vadd.f32 %v210, %v537
    %v539 = vpop.f32.mrb[0].mxu0
    %v540 = vadd.f32 %v214, %v539
    %541 = vmatprep.mubr.f32.mxu0 0.0
    %542 = vmatmul.mubr.f32.gmra.mrb[0].mxu0 %v90
    %v543 = vpop.f32.mrb[0].mxu0
    %v544 = vadd.f32 %v210, %v543
    %v545 = vpop.f32.mrb[0].mxu0
    %v546 = vadd.f32 %v214, %v545
    %547 = vmatprep.mubr.f32.mxu0 0.0
    %548 = vmatmul.mubr.f32.gmra.mrb[0].mxu0 %v91
    %v549 = vpop.f32.mrb[0].mxu0
    %v550 = vadd.f32 %v210, %v549
    %v551 = vpop.f32.mrb[0].mxu0
    %v552 = vadd.f32 %v214, %v551
    %553 = vmatprep.mubr.f32.mxu0 0.0
    %554 = vmatmul.mubr.f32.gmra.mrb[0].mxu0 %v92
    %v555 = vpop.f32.mrb[0].mxu0
    %v556 = vadd.f32 %v210, %v555
    %v557 = vpop.f32.mrb[0].mxu0
    %v558 = vadd.f32 %v214, %v557
    %559 = vdwg.mxu0
    %560 = vst [vmem:[#allocation2] sm:$0xff] %v288
    %561 = vst [vmem:[#allocation2 + $0x8] sm:$0xff] %v290
    %562 = vst [vmem:[#allocation2 + $0x10] sm:$0xff] %v401
    %563 = vst [vmem:[#allocation2 + $0x18] sm:$0xff] %v403
    %564 = vst [vmem:[#allocation2 + $0x20] sm:$0xff] %v514
    %565 = vst [vmem:[#allocation2 + $0x28] sm:$0xff] %v516
    %566 = vst [vmem:[#allocation2 + $0x30] sm:$0xff] %v294
    %567 = vst [vmem:[#allocation2 + $0x38] sm:$0xff] %v296
    %568 = vst [vmem:[#allocation2 + $0x40] sm:$0xff] %v407
    %569 = vst [vmem:[#allocation2 + $0x48] sm:$0xff] %v409
    %570 = vst [vmem:[#allocation2 + $0x50] sm:$0xff] %v520
    %571 = vst [vmem:[#allocation2 + $0x58] sm:$0xff] %v522
    %572 = vst [vmem:[#allocation2 + $0x60] sm:$0xff] %v300
    %573 = vst [vmem:[#allocation2 + $0x68] sm:$0xff] %v302
    %574 = vst [vmem:[#allocation2 + $0x70] sm:$0xff] %v413
    %575 = vst [vmem:[#allocation2 + $0x78] sm:$0xff] %v415
    %576 = vst [vmem:[#allocation2 + $0x80] sm:$0xff] %v526
    %577 = vst [vmem:[#allocation2 + $0x88] sm:$0xff] %v528
    %578 = vst [vmem:[#allocation2 + $0x90] sm:$0xff] %v306
    %579 = vst [vmem:[#allocation2 + $0x98] sm:$0xff] %v308
    %580 = vst [vmem:[#allocation2 + $0xa0] sm:$0xff] %v419
    %581 = vst [vmem:[#allocation2 + $0xa8] sm:$0xff] %v421
    %582 = vst [vmem:[#allocation2 + $0xb0] sm:$0xff] %v532
    %583 = vst [vmem:[#allocation2 + $0xb8] sm:$0xff] %v534
    %584 = vst [vmem:[#allocation2 + $0xc0] sm:$0xff] %v312
    %585 = vst [vmem:[#allocation2 + $0xc8] sm:$0xff] %v314
    %586 = vst [vmem:[#allocation2 + $0xd0] sm:$0xff] %v425
    %587 = vst [vmem:[#allocation2 + $0xd8] sm:$0xff] %v427
    %588 = vst [vmem:[#allocation2 + $0xe0] sm:$0xff] %v538
    %589 = vst [vmem:[#allocation2 + $0xe8] sm:$0xff] %v540
    %590 = vst [vmem:[#allocation2 + $0xf0] sm:$0xff] %v318
    %591 = vst [vmem:[#allocation2 + $0xf8] sm:$0xff] %v320
    %592 = vst [vmem:[#allocation2 + $0x100] sm:$0xff] %v431
    %593 = vst [vmem:[#allocation2 + $0x108] sm:$0xff] %v433
    %594 = vst [vmem:[#allocation2 + $0x110] sm:$0xff] %v544
    %595 = vst [vmem:[#allocation2 + $0x118] sm:$0xff] %v546
    %596 = vst [vmem:[#allocation2 + $0x120] sm:$0xff] %v324
    %597 = vst [vmem:[#allocation2 + $0x128] sm:$0xff] %v326
    %598 = vst [vmem:[#allocation2 + $0x130] sm:$0xff] %v437
    %599 = vst [vmem:[#allocation2 + $0x138] sm:$0xff] %v439
    %600 = vst [vmem:[#allocation2 + $0x140] sm:$0xff] %v550
    %601 = vst [vmem:[#allocation2 + $0x148] sm:$0xff] %v552
    %602 = vst [vmem:[#allocation2 + $0x150] sm:$0xff] %v330
    %603 = vst [vmem:[#allocation2 + $0x158] sm:$0xff] %v332
    %604 = vst [vmem:[#allocation2 + $0x160] sm:$0xff] %v443
    %605 = vst [vmem:[#allocation2 + $0x168] sm:$0xff] %v445
    %606 = vst [vmem:[#allocation2 + $0x170] sm:$0xff] %v556
    %607 = vst [vmem:[#allocation2 + $0x178] sm:$0xff] %v558
    %v608 = vld [vmem:[#allocation9] sm:$0xff]
    %v609 = vld [vmem:[#allocation9 + $0x8] sm:$0xff]
    %v610 = vld [vmem:[#allocation9 + $0x10] sm:$0xff]
    %v611 = vld [vmem:[#allocation9 + $0x18] sm:$0xff]
    %v612 = vld [vmem:[#allocation9 + $0x20] sm:$0xff]
    %v613 = vld [vmem:[#allocation9 + $0x28] sm:$0xff]
    %v614 = vld [vmem:[#allocation9 + $0x30] sm:$0xff]
    %v615 = vld [vmem:[#allocation9 + $0x38] sm:$0xff]
    %v616 = vld [vmem:[#allocation9 + $0x40] sm:$0xff]
    %v617 = vld [vmem:[#allocation9 + $0x48] sm:$0xff]
    %v618 = vld [vmem:[#allocation9 + $0x50] sm:$0xff]
    %v619 = vld [vmem:[#allocation9 + $0x58] sm:$0xff]
    %v620 = vld [vmem:[#allocation9 + $0x60] sm:$0xff]
    %v621 = vld [vmem:[#allocation9 + $0x68] sm:$0xff]
    %v622 = vld [vmem:[#allocation9 + $0x70] sm:$0xff]
    %v623 = vld [vmem:[#allocation9 + $0x78] sm:$0xff]
    %v624 = vld [vmem:[#allocation9 + $0x80] sm:$0xff]
    %v625 = vld [vmem:[#allocation9 + $0x88] sm:$0xff]
    %v626 = vld [vmem:[#allocation9 + $0x90] sm:$0xff]
    %v627 = vld [vmem:[#allocation9 + $0x98] sm:$0xff]
    %v628 = vld [vmem:[#allocation9 + $0xa0] sm:$0xff]
    %v629 = vld [vmem:[#allocation9 + $0xa8] sm:$0xff]
    %v630 = vld [vmem:[#allocation9 + $0xb0] sm:$0xff]
    %v631 = vld [vmem:[#allocation9 + $0xb8] sm:$0xff]
    %v632 = vld [vmem:[#allocation9 + $0xc0] sm:$0xff]
    %v633 = vld [vmem:[#allocation9 + $0xc8] sm:$0xff]
    %v634 = vld [vmem:[#allocation9 + $0xd0] sm:$0xff]
    %v635 = vld [vmem:[#allocation9 + $0xd8] sm:$0xff]
    %v636 = vld [vmem:[#allocation9 + $0xe0] sm:$0xff]
    %v637 = vld [vmem:[#allocation9 + $0xe8] sm:$0xff]
    %v638 = vld [vmem:[#allocation9 + $0xf0] sm:$0xff]
    %v639 = vld [vmem:[#allocation9 + $0xf8] sm:$0xff]
    %v640 = vld [vmem:[#allocation9 + $0x100] sm:$0xff]
    %v641 = vld [vmem:[#allocation9 + $0x108] sm:$0xff]
    %v642 = vld [vmem:[#allocation9 + $0x110] sm:$0xff]
    %v643 = vld [vmem:[#allocation9 + $0x118] sm:$0xff]
    %v644 = vld [vmem:[#allocation9 + $0x120] sm:$0xff]
    %v645 = vld [vmem:[#allocation9 + $0x128] sm:$0xff]
    %v646 = vld [vmem:[#allocation9 + $0x130] sm:$0xff]
    %v647 = vld [vmem:[#allocation9 + $0x138] sm:$0xff]
    %v648 = vld [vmem:[#allocation9 + $0x140] sm:$0xff]
    %v649 = vld [vmem:[#allocation9 + $0x148] sm:$0xff]
    %v650 = vld [vmem:[#allocation9 + $0x150] sm:$0xff]
    %v651 = vld [vmem:[#allocation9 + $0x158] sm:$0xff]
    %v652 = vld [vmem:[#allocation9 + $0x160] sm:$0xff]
    %v653 = vld [vmem:[#allocation9 + $0x168] sm:$0xff]
    %v654 = vld [vmem:[#allocation9 + $0x170] sm:$0xff]
    %v655 = vld [vmem:[#allocation9 + $0x178] sm:$0xff]
    %v656 = vld [vmem:[#allocation9 + $0x180] sm:$0xff]
    %v657 = vld [vmem:[#allocation9 + $0x188] sm:$0xff]
    %v658 = vld [vmem:[#allocation9 + $0x190] sm:$0xff]
    %v659 = vld [vmem:[#allocation9 + $0x198] sm:$0xff]
    %v660 = vld [vmem:[#allocation9 + $0x1a0] sm:$0xff]
    %v661 = vld [vmem:[#allocation9 + $0x1a8] sm:$0xff]
    %v662 = vld [vmem:[#allocation9 + $0x1b0] sm:$0xff]
    %v663 = vld [vmem:[#allocation9 + $0x1b8] sm:$0xff]
    %v664 = vld [vmem:[#allocation9 + $0x1c0] sm:$0xff]
    %v665 = vld [vmem:[#allocation9 + $0x1c8] sm:$0xff]
    %v666 = vld [vmem:[#allocation9 + $0x1d0] sm:$0xff]
    %v667 = vld [vmem:[#allocation9 + $0x1d8] sm:$0xff]
    %v668 = vld [vmem:[#allocation9 + $0x1e0] sm:$0xff]
    %v669 = vld [vmem:[#allocation9 + $0x1e8] sm:$0xff]
    %v670 = vld [vmem:[#allocation9 + $0x1f0] sm:$0xff]
    %v671 = vld [vmem:[#allocation9 + $0x1f8] sm:$0xff]
    %v672 = vld [vmem:[#allocation9 + $0x200] sm:$0xff]
    %v673 = vld [vmem:[#allocation9 + $0x208] sm:$0xff]
    %v674 = vld [vmem:[#allocation9 + $0x210] sm:$0xff]
    %v675 = vld [vmem:[#allocation9 + $0x218] sm:$0xff]
    %v676 = vld [vmem:[#allocation9 + $0x220] sm:$0xff]
    %v677 = vld [vmem:[#allocation9 + $0x228] sm:$0xff]
    %v678 = vld [vmem:[#allocation9 + $0x230] sm:$0xff]
    %v679 = vld [vmem:[#allocation9 + $0x238] sm:$0xff]
    %v680 = vld [vmem:[#allocation9 + $0x240] sm:$0xff]
    %v681 = vld [vmem:[#allocation9 + $0x248] sm:$0xff]
    %v682 = vld [vmem:[#allocation9 + $0x250] sm:$0xff]
    %v683 = vld [vmem:[#allocation9 + $0x258] sm:$0xff]
    %v684 = vld [vmem:[#allocation9 + $0x260] sm:$0xff]
    %v685 = vld [vmem:[#allocation9 + $0x268] sm:$0xff]
    %v686 = vld [vmem:[#allocation9 + $0x270] sm:$0xff]
    %v687 = vld [vmem:[#allocation9 + $0x278] sm:$0xff]
    %v688 = vld [vmem:[#allocation9 + $0x280] sm:$0xff]
    %v689 = vld [vmem:[#allocation9 + $0x288] sm:$0xff]
    %v690 = vld [vmem:[#allocation9 + $0x290] sm:$0xff]
    %v691 = vld [vmem:[#allocation9 + $0x298] sm:$0xff]
    %v692 = vld [vmem:[#allocation9 + $0x2a0] sm:$0xff]
    %v693 = vld [vmem:[#allocation9 + $0x2a8] sm:$0xff]
    %v694 = vld [vmem:[#allocation9 + $0x2b0] sm:$0xff]
    %v695 = vld [vmem:[#allocation9 + $0x2b8] sm:$0xff]
    %v696 = vld [vmem:[#allocation9 + $0x2c0] sm:$0xff]
    %v697 = vld [vmem:[#allocation9 + $0x2c8] sm:$0xff]
    %v698 = vld [vmem:[#allocation9 + $0x2d0] sm:$0xff]
    %v699 = vld [vmem:[#allocation9 + $0x2d8] sm:$0xff]
    %v700 = vld [vmem:[#allocation9 + $0x2e0] sm:$0xff]
    %v701 = vld [vmem:[#allocation9 + $0x2e8] sm:$0xff]
    %v702 = vld [vmem:[#allocation9 + $0x2f0] sm:$0xff]
    %v703 = vld [vmem:[#allocation9 + $0x2f8] sm:$0xff]
    %v704 = vld [vmem:[#allocation9 + $0x300] sm:$0xff]
    %v705 = vld [vmem:[#allocation9 + $0x308] sm:$0xff]
    %v706 = vld [vmem:[#allocation9 + $0x310] sm:$0xff]
    %v707 = vld [vmem:[#allocation9 + $0x318] sm:$0xff]
    %v708 = vld [vmem:[#allocation9 + $0x320] sm:$0xff]
    %v709 = vld [vmem:[#allocation9 + $0x328] sm:$0xff]
    %v710 = vld [vmem:[#allocation9 + $0x330] sm:$0xff]
    %v711 = vld [vmem:[#allocation9 + $0x338] sm:$0xff]
    %v712 = vld [vmem:[#allocation9 + $0x340] sm:$0xff]
    %v713 = vld [vmem:[#allocation9 + $0x348] sm:$0xff]
    %v714 = vld [vmem:[#allocation9 + $0x350] sm:$0xff]
    %v715 = vld [vmem:[#allocation9 + $0x358] sm:$0xff]
    %v716 = vld [vmem:[#allocation9 + $0x360] sm:$0xff]
    %v717 = vld [vmem:[#allocation9 + $0x368] sm:$0xff]
    %v718 = vld [vmem:[#allocation9 + $0x370] sm:$0xff]
    %v719 = vld [vmem:[#allocation9 + $0x378] sm:$0xff]
    %v720 = vld [vmem:[#allocation9 + $0x380] sm:$0xff]
    %v721 = vld [vmem:[#allocation9 + $0x388] sm:$0xff]
    %v722 = vld [vmem:[#allocation9 + $0x390] sm:$0xff]
    %v723 = vld [vmem:[#allocation9 + $0x398] sm:$0xff]
    %v724 = vld [vmem:[#allocation9 + $0x3a0] sm:$0xff]
    %v725 = vld [vmem:[#allocation9 + $0x3a8] sm:$0xff]
    %v726 = vld [vmem:[#allocation9 + $0x3b0] sm:$0xff]
    %v727 = vld [vmem:[#allocation9 + $0x3b8] sm:$0xff]
    %v728 = vld [vmem:[#allocation9 + $0x3c0] sm:$0xff]
    %v729 = vld [vmem:[#allocation9 + $0x3c8] sm:$0xff]
    %v730 = vld [vmem:[#allocation9 + $0x3d0] sm:$0xff]
    %v731 = vld [vmem:[#allocation9 + $0x3d8] sm:$0xff]
    %v732 = vld [vmem:[#allocation9 + $0x3e0] sm:$0xff]
    %v733 = vld [vmem:[#allocation9 + $0x3e8] sm:$0xff]
    %v734 = vld [vmem:[#allocation9 + $0x3f0] sm:$0xff]
    %v735 = vld [vmem:[#allocation9 + $0x3f8] sm:$0xff]
    %v736 = vld [vmem:[#allocation9 + $0x400] sm:$0xff]
    %v737 = vld [vmem:[#allocation9 + $0x408] sm:$0xff]
    %v738 = vld [vmem:[#allocation9 + $0x410] sm:$0xff]
    %v739 = vld [vmem:[#allocation9 + $0x418] sm:$0xff]
    %v740 = vld [vmem:[#allocation9 + $0x420] sm:$0xff]
    %v741 = vld [vmem:[#allocation9 + $0x428] sm:$0xff]
    %v742 = vld [vmem:[#allocation9 + $0x430] sm:$0xff]
    %v743 = vld [vmem:[#allocation9 + $0x438] sm:$0xff]
    %v744 = vld [vmem:[#allocation9 + $0x440] sm:$0xff]
    %v745 = vld [vmem:[#allocation9 + $0x448] sm:$0xff]
    %v746 = vld [vmem:[#allocation9 + $0x450] sm:$0xff]
    %v747 = vld [vmem:[#allocation9 + $0x458] sm:$0xff]
    %v748 = vld [vmem:[#allocation9 + $0x460] sm:$0xff]
    %v749 = vld [vmem:[#allocation9 + $0x468] sm:$0xff]
    %v750 = vld [vmem:[#allocation9 + $0x470] sm:$0xff]
    %v751 = vld [vmem:[#allocation9 + $0x478] sm:$0xff]
    %v752 = vld [vmem:[#allocation9 + $0x480] sm:$0xff]
    %v753 = vld [vmem:[#allocation9 + $0x488] sm:$0xff]
    %v754 = vld [vmem:[#allocation9 + $0x490] sm:$0xff]
    %v755 = vld [vmem:[#allocation9 + $0x498] sm:$0xff]
    %v756 = vld [vmem:[#allocation9 + $0x4a0] sm:$0xff]
    %v757 = vld [vmem:[#allocation9 + $0x4a8] sm:$0xff]
    %v758 = vld [vmem:[#allocation9 + $0x4b0] sm:$0xff]
    %v759 = vld [vmem:[#allocation9 + $0x4b8] sm:$0xff]
    %v760 = vld [vmem:[#allocation9 + $0x4c0] sm:$0xff]
    %v761 = vld [vmem:[#allocation9 + $0x4c8] sm:$0xff]
    %v762 = vld [vmem:[#allocation9 + $0x4d0] sm:$0xff]
    %v763 = vld [vmem:[#allocation9 + $0x4d8] sm:$0xff]
    %v764 = vld [vmem:[#allocation9 + $0x4e0] sm:$0xff]
    %v765 = vld [vmem:[#allocation9 + $0x4e8] sm:$0xff]
    %v766 = vld [vmem:[#allocation9 + $0x4f0] sm:$0xff]
    %v767 = vld [vmem:[#allocation9 + $0x4f8] sm:$0xff]
    %v768 = vld [vmem:[#allocation9 + $0x500] sm:$0xff]
    %v769 = vld [vmem:[#allocation9 + $0x508] sm:$0xff]
    %v770 = vld [vmem:[#allocation9 + $0x510] sm:$0xff]
    %v771 = vld [vmem:[#allocation9 + $0x518] sm:$0xff]
    %v772 = vld [vmem:[#allocation9 + $0x520] sm:$0xff]
    %v773 = vld [vmem:[#allocation9 + $0x528] sm:$0xff]
    %v774 = vld [vmem:[#allocation9 + $0x530] sm:$0xff]
    %v775 = vld [vmem:[#allocation9 + $0x538] sm:$0xff]
    %v776 = vld [vmem:[#allocation9 + $0x540] sm:$0xff]
    %v777 = vld [vmem:[#allocation9 + $0x548] sm:$0xff]
    %v778 = vld [vmem:[#allocation9 + $0x550] sm:$0xff]
    %v779 = vld [vmem:[#allocation9 + $0x558] sm:$0xff]
    %v780 = vld [vmem:[#allocation9 + $0x560] sm:$0xff]
    %v781 = vld [vmem:[#allocation9 + $0x568] sm:$0xff]
    %v782 = vld [vmem:[#allocation9 + $0x570] sm:$0xff]
    %v783 = vld [vmem:[#allocation9 + $0x578] sm:$0xff]
    %v784 = vld [vmem:[#allocation9 + $0x580] sm:$0xff]
    %v785 = vld [vmem:[#allocation9 + $0x588] sm:$0xff]
    %v786 = vld [vmem:[#allocation9 + $0x590] sm:$0xff]
    %v787 = vld [vmem:[#allocation9 + $0x598] sm:$0xff]
    %v788 = vld [vmem:[#allocation9 + $0x5a0] sm:$0xff]
    %v789 = vld [vmem:[#allocation9 + $0x5a8] sm:$0xff]
    %v790 = vld [vmem:[#allocation9 + $0x5b0] sm:$0xff]
    %v791 = vld [vmem:[#allocation9 + $0x5b8] sm:$0xff]
    %v792 = vld [vmem:[#allocation9 + $0x5c0] sm:$0xff]
    %v793 = vld [vmem:[#allocation9 + $0x5c8] sm:$0xff]
    %v794 = vld [vmem:[#allocation9 + $0x5d0] sm:$0xff]
    %v795 = vld [vmem:[#allocation9 + $0x5d8] sm:$0xff]
    %v796 = vld [vmem:[#allocation9 + $0x5e0] sm:$0xff]
    %v797 = vld [vmem:[#allocation9 + $0x5e8] sm:$0xff]
    %v798 = vld [vmem:[#allocation9 + $0x5f0] sm:$0xff]
    %v799 = vld [vmem:[#allocation9 + $0x5f8] sm:$0xff]
    %v800 = vld [vmem:[%s4] sm:$0x1]
    %v802 = vlaneseq
    %v803 = vshrl.u32 %v802, 7
    %v804 = vsub.s32 0, %v803
    %v805 = vrot.slane %v800, %v804
    %v807 = vld [vmem:[%s5] sm:$0x1]
    %v809 = vlaneseq
    %v810 = vshrl.u32 %v809, 7
    %v811 = vsub.s32 0, %v810
    %v812 = vrot.slane %v807, %v811
    %s814 = smul.u32 0, 6
    %s815 = smul.addr %s814, 8
    %s816 = scalar_lea.vmem [#allocation2], %s815
    %v817 = vld [vmem:[%s816] sm:$0xff]
    %v818 = vld [vmem:[%s816 + $0x8] sm:$0xff]
    %v819 = vld [vmem:[%s816 + $0x10] sm:$0xff]
    %s820 = smul.u32 7, 6
    %s821 = smul.addr %s820, 8
    %s822 = scalar_lea.vmem [#allocation2], %s821
    %v823 = vld [vmem:[%s822 + $0x18] sm:$0xff]
    %v824 = vld [vmem:[%s822 + $0x20] sm:$0xff]
    %v825 = vld [vmem:[%s822 + $0x28] sm:$0xff]
    %826 = vmatprep.subr.mxu0 %v609
    %827 = vmatpush1.msra.mxu0 %v608
    %828 = vmatprep.subr.mxu0 %v615
    %829 = vmatpush1.msra.mxu0 %v614
    %830 = vmatprep.subr.mxu0 %v621
    %831 = vmatpush1.msra.mxu0 %v620
    %832 = vmatprep.subr.mxu0 %v627
    %833 = vmatpush1.msra.mxu0 %v626
    %834 = vmatprep.subr.mxu0 %v633
    %835 = vmatpush1.msra.mxu0 %v632
    %836 = vmatprep.subr.mxu0 %v639
    %837 = vmatpush1.msra.mxu0 %v638
    %838 = vmatprep.subr.mxu0 %v645
    %839 = vmatpush1.msra.mxu0 %v644
    %840 = vmatprep.subr.mxu0 %v651
    %841 = vmatpush1.msra.mxu0 %v650
    %842 = vmatprep.subr.mxu0 %v657
    %843 = vmatpush1.msra.mxu0 %v656
    %844 = vmatprep.subr.mxu0 %v663
    %845 = vmatpush1.msra.mxu0 %v662
    %846 = vmatprep.subr.mxu0 %v669
    %847 = vmatpush1.msra.mxu0 %v668
    %848 = vmatprep.subr.mxu0 %v675
    %849 = vmatpush1.msra.mxu0 %v674
    %850 = vmatprep.subr.mxu0 %v681
    %851 = vmatpush1.msra.mxu0 %v680
    %852 = vmatprep.subr.mxu0 %v687
    %853 = vmatpush1.msra.mxu0 %v686
    %854 = vmatprep.subr.mxu0 %v693
    %855 = vmatpush1.msra.mxu0 %v692
    %856 = vmatprep.subr.mxu0 %v699
    %857 = vmatpush1.msra.mxu0 %v698
    %858 = vmatprep.subr.mxu0 %v705
    %859 = vmatpush1.msra.mxu0 %v704
    %860 = vmatprep.subr.mxu0 %v711
    %861 = vmatpush1.msra.mxu0 %v710
    %862 = vmatprep.subr.mxu0 %v717
    %863 = vmatpush1.msra.mxu0 %v716
    %864 = vmatprep.subr.mxu0 %v723
    %865 = vmatpush1.msra.mxu0 %v722
    %866 = vmatprep.subr.mxu0 %v729
    %867 = vmatpush1.msra.mxu0 %v728
    %868 = vmatprep.subr.mxu0 %v735
    %869 = vmatpush1.msra.mxu0 %v734
    %870 = vmatprep.subr.mxu0 %v741
    %871 = vmatpush1.msra.mxu0 %v740
    %872 = vmatprep.subr.mxu0 %v747
    %873 = vmatpush1.msra.mxu0 %v746
    %874 = vmatprep.subr.mxu0 %v753
    %875 = vmatpush1.msra.mxu0 %v752
    %876 = vmatprep.subr.mxu0 %v759
    %877 = vmatpush1.msra.mxu0 %v758
    %878 = vmatprep.subr.mxu0 %v765
    %879 = vmatpush1.msra.mxu0 %v764
    %880 = vmatprep.subr.mxu0 %v771
    %881 = vmatpush1.msra.mxu0 %v770
    %882 = vmatprep.subr.mxu0 %v777
    %883 = vmatpush1.msra.mxu0 %v776
    %884 = vmatprep.subr.mxu0 %v783
    %885 = vmatpush1.msra.mxu0 %v782
    %886 = vmatprep.subr.mxu0 %v789
    %887 = vmatpush1.msra.mxu0 %v788
    %888 = vmatprep.subr.mxu0 %v795
    %889 = vmatpush1.msra.mxu0 %v794
    %890 = vmatprep.mubr.f32.mxu0 0.0
    %891 = vmatmul.mubr.f32.gmra.mrb[0].mxu0 0.0
    %v892 = vpop.f32.mrb[0].mxu0
    %v893 = vadd.f32 0.0, %v892
    %v894 = vpop.f32.mrb[0].mxu0
    %v895 = vadd.f32 0.0, %v894
    %896 = vdwg.mxu0
    %897 = vmatprep.subr.mxu0 %v611
    %898 = vmatpush1.msra.mxu0 %v610
    %899 = vmatprep.subr.mxu0 %v617
    %900 = vmatpush1.msra.mxu0 %v616
    %901 = vmatprep.subr.mxu0 %v623
    %902 = vmatpush1.msra.mxu0 %v622
    %903 = vmatprep.subr.mxu0 %v629
    %904 = vmatpush1.msra.mxu0 %v628
    %905 = vmatprep.subr.mxu0 %v635
    %906 = vmatpush1.msra.mxu0 %v634
    %907 = vmatprep.subr.mxu0 %v641
    %908 = vmatpush1.msra.mxu0 %v640
    %909 = vmatprep.subr.mxu0 %v647
    %910 = vmatpush1.msra.mxu0 %v646
    %911 = vmatprep.subr.mxu0 %v653
    %912 = vmatpush1.msra.mxu0 %v652
    %913 = vmatprep.subr.mxu0 %v659
    %914 = vmatpush1.msra.mxu0 %v658
    %915 = vmatprep.subr.mxu0 %v665
    %916 = vmatpush1.msra.mxu0 %v664
    %917 = vmatprep.subr.mxu0 %v671
    %918 = vmatpush1.msra.mxu0 %v670
    %919 = vmatprep.subr.mxu0 %v677
    %920 = vmatpush1.msra.mxu0 %v676
    %921 = vmatprep.subr.mxu0 %v683
    %922 = vmatpush1.msra.mxu0 %v682
    %923 = vmatprep.subr.mxu0 %v689
    %924 = vmatpush1.msra.mxu0 %v688
    %925 = vmatprep.subr.mxu0 %v695
    %926 = vmatpush1.msra.mxu0 %v694
    %927 = vmatprep.subr.mxu0 %v701
    %928 = vmatpush1.msra.mxu0 %v700
    %929 = vmatprep.subr.mxu0 %v707
    %930 = vmatpush1.msra.mxu0 %v706
    %931 = vmatprep.subr.mxu0 %v713
    %932 = vmatpush1.msra.mxu0 %v712
    %933 = vmatprep.subr.mxu0 %v719
    %934 = vmatpush1.msra.mxu0 %v718
    %935 = vmatprep.subr.mxu0 %v725
    %936 = vmatpush1.msra.mxu0 %v724
    %937 = vmatprep.subr.mxu0 %v731
    %938 = vmatpush1.msra.mxu0 %v730
    %939 = vmatprep.subr.mxu0 %v737
    %940 = vmatpush1.msra.mxu0 %v736
    %941 = vmatprep.subr.mxu0 %v743
    %942 = vmatpush1.msra.mxu0 %v742
    %943 = vmatprep.subr.mxu0 %v749
    %944 = vmatpush1.msra.mxu0 %v748
    %945 = vmatprep.subr.mxu0 %v755
    %946 = vmatpush1.msra.mxu0 %v754
    %947 = vmatprep.subr.mxu0 %v761
    %948 = vmatpush1.msra.mxu0 %v760
    %949 = vmatprep.subr.mxu0 %v767
    %950 = vmatpush1.msra.mxu0 %v766
    %951 = vmatprep.subr.mxu0 %v773
    %952 = vmatpush1.msra.mxu0 %v772
    %953 = vmatprep.subr.mxu0 %v779
    %954 = vmatpush1.msra.mxu0 %v778
    %955 = vmatprep.subr.mxu0 %v785
    %956 = vmatpush1.msra.mxu0 %v784
    %957 = vmatprep.subr.mxu0 %v791
    %958 = vmatpush1.msra.mxu0 %v790
    %959 = vmatprep.subr.mxu0 %v797
    %960 = vmatpush1.msra.mxu0 %v796
    %961 = vmatprep.mubr.f32.mxu0 0.0
    %962 = vmatmul.mubr.f32.gmra.mrb[0].mxu0 0.0
    %v963 = vpop.f32.mrb[0].mxu0
    %v964 = vadd.f32 0.0, %v963
    %v965 = vpop.f32.mrb[0].mxu0
    %v966 = vadd.f32 0.0, %v965
    %967 = vdwg.mxu0
    %968 = vmatprep.subr.mxu0 %v613
    %969 = vmatpush1.msra.mxu0 %v612
    %970 = vmatprep.subr.mxu0 %v619
    %971 = vmatpush1.msra.mxu0 %v618
    %972 = vmatprep.subr.mxu0 %v625
    %973 = vmatpush1.msra.mxu0 %v624
    %974 = vmatprep.subr.mxu0 %v631
    %975 = vmatpush1.msra.mxu0 %v630
    %976 = vmatprep.subr.mxu0 %v637
    %977 = vmatpush1.msra.mxu0 %v636
    %978 = vmatprep.subr.mxu0 %v643
    %979 = vmatpush1.msra.mxu0 %v642
    %980 = vmatprep.subr.mxu0 %v649
    %981 = vmatpush1.msra.mxu0 %v648
    %982 = vmatprep.subr.mxu0 %v655
    %983 = vmatpush1.msra.mxu0 %v654
    %984 = vmatprep.subr.mxu0 %v661
    %985 = vmatpush1.msra.mxu0 %v660
    %986 = vmatprep.subr.mxu0 %v667
    %987 = vmatpush1.msra.mxu0 %v666
    %988 = vmatprep.subr.mxu0 %v673
    %989 = vmatpush1.msra.mxu0 %v672
    %990 = vmatprep.subr.mxu0 %v679
    %991 = vmatpush1.msra.mxu0 %v678
    %992 = vmatprep.subr.mxu0 %v685
    %993 = vmatpush1.msra.mxu0 %v684
    %994 = vmatprep.subr.mxu0 %v691
    %995 = vmatpush1.msra.mxu0 %v690
    %996 = vmatprep.subr.mxu0 %v697
    %997 = vmatpush1.msra.mxu0 %v696
    %998 = vmatprep.subr.mxu0 %v703
    %999 = vmatpush1.msra.mxu0 %v702
    %1000 = vmatprep.subr.mxu0 %v709
    %1001 = vmatpush1.msra.mxu0 %v708
    %1002 = vmatprep.subr.mxu0 %v715
    %1003 = vmatpush1.msra.mxu0 %v714
    %1004 = vmatprep.subr.mxu0 %v721
    %1005 = vmatpush1.msra.mxu0 %v720
    %1006 = vmatprep.subr.mxu0 %v727
    %1007 = vmatpush1.msra.mxu0 %v726
    %1008 = vmatprep.subr.mxu0 %v733
    %1009 = vmatpush1.msra.mxu0 %v732
    %1010 = vmatprep.subr.mxu0 %v739
    %1011 = vmatpush1.msra.mxu0 %v738
    %1012 = vmatprep.subr.mxu0 %v745
    %1013 = vmatpush1.msra.mxu0 %v744
    %1014 = vmatprep.subr.mxu0 %v751
    %1015 = vmatpush1.msra.mxu0 %v750
    %1016 = vmatprep.subr.mxu0 %v757
    %1017 = vmatpush1.msra.mxu0 %v756
    %1018 = vmatprep.subr.mxu0 %v763
    %1019 = vmatpush1.msra.mxu0 %v762
    %1020 = vmatprep.subr.mxu0 %v769
    %1021 = vmatpush1.msra.mxu0 %v768
    %1022 = vmatprep.subr.mxu0 %v775
    %1023 = vmatpush1.msra.mxu0 %v774
    %1024 = vmatprep.subr.mxu0 %v781
    %1025 = vmatpush1.msra.mxu0 %v780
    %1026 = vmatprep.subr.mxu0 %v787
    %1027 = vmatpush1.msra.mxu0 %v786
    %1028 = vmatprep.subr.mxu0 %v793
    %1029 = vmatpush1.msra.mxu0 %v792
    %1030 = vmatprep.subr.mxu0 %v799
    %1031 = vmatpush1.msra.mxu0 %v798
    %1032 = vmatprep.mubr.f32.mxu0 0.0
    %1033 = vmatmul.mubr.f32.gmra.mrb[0].mxu0 0.0
    %v1034 = vpop.f32.mrb[0].mxu0
    %v1035 = vadd.f32 0.0, %v1034
    %v1036 = vpop.f32.mrb[0].mxu0
    %v1037 = vadd.f32 0.0, %v1036
    %1038 = vdwg.mxu0
    %v1039 = vadd.f32 %v817, %v893
    %v1040 = vxor.u32 %v1039, 2147483648
    %v1041 = vmul.f32 %v1040, 1.442695
    %v1042 = vpow.pop %v1041
    %v1043 = vadd.f32 %v1042, 1.0
    %v1044 = vrcp.pop %v1043
    %v1045 = vmul.f32 1.0, %v1044
    %v1046 = vadd.f32 %v818, %v895
    %v1047 = vxor.u32 %v1046, 2147483648
    %v1048 = vmul.f32 %v1047, 1.442695
    %v1049 = vpow.pop %v1048
    %v1050 = vadd.f32 %v1049, 1.0
    %v1051 = vrcp.pop %v1050
    %v1052 = vmul.f32 1.0, %v1051
    %v1053 = vadd.f32 %v964, %v805
    %v1054 = vmul.f32 %v1045, %v1053
    %v1055 = vadd.f32 %v819, %v1054
    %v1056 = vtanh.pop %v1055
    %v1057 = vadd.f32 %v823, %v966
    %v1058 = vxor.u32 %v1057, 2147483648
    %v1059 = vmul.f32 %v1058, 1.442695
    %v1060 = vpow.pop %v1059
    %v1061 = vadd.f32 %v1060, 1.0
    %v1062 = vrcp.pop %v1061
    %v1063 = vmul.f32 1.0, %v1062
    %v1064 = vadd.f32 %v824, %v1035
    %v1065 = vxor.u32 %v1064, 2147483648
    %v1066 = vmul.f32 %v1065, 1.442695
    %v1067 = vpow.pop %v1066
    %v1068 = vadd.f32 %v1067, 1.0
    %v1069 = vrcp.pop %v1068
    %v1070 = vmul.f32 1.0, %v1069
    %v1071 = vadd.f32 %v1037, %v812
    %v1072 = vmul.f32 %v1063, %v1071
    %v1073 = vadd.f32 %v825, %v1072
    %v1074 = vtanh.pop %v1073
    %v1075 = vsub.f32 1.0, %v1052
    %v1076 = vmul.f32 %v1075, %v1056
    %v1077 = vmul.f32 %v1052, 0.0
    %v1078 = vadd.f32 %v1076, %v1077
    %v1079 = vsub.f32 1.0, %v1070
    %v1080 = vmul.f32 %v1079, %v1074
    %v1081 = vmul.f32 %v1070, 0.0
    %v1082 = vadd.f32 %v1080, %v1081
    %s1083 = smul.u32 0, 2
    %s1084 = smul.addr %s1083, 8
    %s1085 = scalar_lea.vmem [#allocation3], %s1084
    %1086 = vst [vmem:[%s1085] sm:$0xff] %v1078
    %s1087 = smul.u32 7, 2
    %s1088 = smul.addr %s1087, 8
    %s1089 = scalar_lea.vmem [#allocation3], %s1088
    %1090 = vst [vmem:[%s1089 + $0x8] sm:$0xff] %v1082
    %s1091 = smul.u32 1, 6
    %s1092 = smul.addr %s1091, 8
    %s1093 = scalar_lea.vmem [#allocation2], %s1092
    %v1094 = vld [vmem:[%s1093] sm:$0xff]
    %v1095 = vld [vmem:[%s1093 + $0x8] sm:$0xff]
    %v1096 = vld [vmem:[%s1093 + $0x10] sm:$0xff]
    %s1097 = smul.u32 6, 6
    %s1098 = smul.addr %s1097, 8
    %s1099 = scalar_lea.vmem [#allocation2], %s1098
    %v1100 = vld [vmem:[%s1099 + $0x18] sm:$0xff]
    %v1101 = vld [vmem:[%s1099 + $0x20] sm:$0xff]
    %v1102 = vld [vmem:[%s1099 + $0x28] sm:$0xff]
    %1103 = vmatprep.subr.mxu0 %v609
    %1104 = vmatpush1.msra.mxu0 %v608
    %1105 = vmatprep.subr.mxu0 %v615
    %1106 = vmatpush1.msra.mxu0 %v614
    %1107 = vmatprep.subr.mxu0 %v621
    %1108 = vmatpush1.msra.mxu0 %v620
    %1109 = vmatprep.subr.mxu0 %v627
    %1110 = vmatpush1.msra.mxu0 %v626
    %1111 = vmatprep.subr.mxu0 %v633
    %1112 = vmatpush1.msra.mxu0 %v632
    %1113 = vmatprep.subr.mxu0 %v639
    %1114 = vmatpush1.msra.mxu0 %v638
    %1115 = vmatprep.subr.mxu0 %v645
    %1116 = vmatpush1.msra.mxu0 %v644
    %1117 = vmatprep.subr.mxu0 %v651
    %1118 = vmatpush1.msra.mxu0 %v650
    %1119 = vmatprep.subr.mxu0 %v657
    %1120 = vmatpush1.msra.mxu0 %v656
    %1121 = vmatprep.subr.mxu0 %v663
    %1122 = vmatpush1.msra.mxu0 %v662
    %1123 = vmatprep.subr.mxu0 %v669
    %1124 = vmatpush1.msra.mxu0 %v668
    %1125 = vmatprep.subr.mxu0 %v675
    %1126 = vmatpush1.msra.mxu0 %v674
    %1127 = vmatprep.subr.mxu0 %v681
    %1128 = vmatpush1.msra.mxu0 %v680
    %1129 = vmatprep.subr.mxu0 %v687
    %1130 = vmatpush1.msra.mxu0 %v686
    %1131 = vmatprep.subr.mxu0 %v693
    %1132 = vmatpush1.msra.mxu0 %v692
    %1133 = vmatprep.subr.mxu0 %v699
    %1134 = vmatpush1.msra.mxu0 %v698
    %1135 = vmatprep.subr.mxu0 %v705
    %1136 = vmatpush1.msra.mxu0 %v704
    %1137 = vmatprep.subr.mxu0 %v711
    %1138 = vmatpush1.msra.mxu0 %v710
    %1139 = vmatprep.subr.mxu0 %v717
    %1140 = vmatpush1.msra.mxu0 %v716
    %1141 = vmatprep.subr.mxu0 %v723
    %1142 = vmatpush1.msra.mxu0 %v722
    %1143 = vmatprep.subr.mxu0 %v729
    %1144 = vmatpush1.msra.mxu0 %v728
    %1145 = vmatprep.subr.mxu0 %v735
    %1146 = vmatpush1.msra.mxu0 %v734
    %1147 = vmatprep.subr.mxu0 %v741
    %1148 = vmatpush1.msra.mxu0 %v740
    %1149 = vmatprep.subr.mxu0 %v747
    %1150 = vmatpush1.msra.mxu0 %v746
    %1151 = vmatprep.subr.mxu0 %v753
    %1152 = vmatpush1.msra.mxu0 %v752
    %1153 = vmatprep.subr.mxu0 %v759
    %1154 = vmatpush1.msra.mxu0 %v758
    %1155 = vmatprep.subr.mxu0 %v765
    %1156 = vmatpush1.msra.mxu0 %v764
    %1157 = vmatprep.subr.mxu0 %v771
    %1158 = vmatpush1.msra.mxu0 %v770
    %1159 = vmatprep.subr.mxu0 %v777
    %1160 = vmatpush1.msra.mxu0 %v776
    %1161 = vmatprep.subr.mxu0 %v783
    %1162 = vmatpush1.msra.mxu0 %v782
    %1163 = vmatprep.subr.mxu0 %v789
    %1164 = vmatpush1.msra.mxu0 %v788
    %1165 = vmatprep.subr.mxu0 %v795
    %1166 = vmatpush1.msra.mxu0 %v794
    %1167 = vmatprep.mubr.f32.mxu0 %v1082
    %1168 = vmatmul.mubr.f32.gmra.mrb[0].mxu0 %v1078
    %v1169 = vpop.f32.mrb[0].mxu0
    %v1170 = vadd.f32 0.0, %v1169
    %v1171 = vpop.f32.mrb[0].mxu0
    %v1172 = vadd.f32 0.0, %v1171
    %1173 = vdwg.mxu0
    %1174 = vmatprep.subr.mxu0 %v611
    %1175 = vmatpush1.msra.mxu0 %v610
    %1176 = vmatprep.subr.mxu0 %v617
    %1177 = vmatpush1.msra.mxu0 %v616
    %1178 = vmatprep.subr.mxu0 %v623
    %1179 = vmatpush1.msra.mxu0 %v622
    %1180 = vmatprep.subr.mxu0 %v629
    %1181 = vmatpush1.msra.mxu0 %v628
    %1182 = vmatprep.subr.mxu0 %v635
    %1183 = vmatpush1.msra.mxu0 %v634
    %1184 = vmatprep.subr.mxu0 %v641
    %1185 = vmatpush1.msra.mxu0 %v640
    %1186 = vmatprep.subr.mxu0 %v647
    %1187 = vmatpush1.msra.mxu0 %v646
    %1188 = vmatprep.subr.mxu0 %v653
    %1189 = vmatpush1.msra.mxu0 %v652
    %1190 = vmatprep.subr.mxu0 %v659
    %1191 = vmatpush1.msra.mxu0 %v658
    %1192 = vmatprep.subr.mxu0 %v665
    %1193 = vmatpush1.msra.mxu0 %v664
    %1194 = vmatprep.subr.mxu0 %v671
    %1195 = vmatpush1.msra.mxu0 %v670
    %1196 = vmatprep.subr.mxu0 %v677
    %1197 = vmatpush1.msra.mxu0 %v676
    %1198 = vmatprep.subr.mxu0 %v683
    %1199 = vmatpush1.msra.mxu0 %v682
    %1200 = vmatprep.subr.mxu0 %v689
    %1201 = vmatpush1.msra.mxu0 %v688
    %1202 = vmatprep.subr.mxu0 %v695
    %1203 = vmatpush1.msra.mxu0 %v694
    %1204 = vmatprep.subr.mxu0 %v701
    %1205 = vmatpush1.msra.mxu0 %v700
    %1206 = vmatprep.subr.mxu0 %v707
    %1207 = vmatpush1.msra.mxu0 %v706
    %1208 = vmatprep.subr.mxu0 %v713
    %1209 = vmatpush1.msra.mxu0 %v712
    %1210 = vmatprep.subr.mxu0 %v719
    %1211 = vmatpush1.msra.mxu0 %v718
    %1212 = vmatprep.subr.mxu0 %v725
    %1213 = vmatpush1.msra.mxu0 %v724
    %1214 = vmatprep.subr.mxu0 %v731
    %1215 = vmatpush1.msra.mxu0 %v730
    %1216 = vmatprep.subr.mxu0 %v737
    %1217 = vmatpush1.msra.mxu0 %v736
    %1218 = vmatprep.subr.mxu0 %v743
    %1219 = vmatpush1.msra.mxu0 %v742
    %1220 = vmatprep.subr.mxu0 %v749
    %1221 = vmatpush1.msra.mxu0 %v748
    %1222 = vmatprep.subr.mxu0 %v755
    %1223 = vmatpush1.msra.mxu0 %v754
    %1224 = vmatprep.subr.mxu0 %v761
    %1225 = vmatpush1.msra.mxu0 %v760
    %1226 = vmatprep.subr.mxu0 %v767
    %1227 = vmatpush1.msra.mxu0 %v766
    %1228 = vmatprep.subr.mxu0 %v773
    %1229 = vmatpush1.msra.mxu0 %v772
    %1230 = vmatprep.subr.mxu0 %v779
    %1231 = vmatpush1.msra.mxu0 %v778
    %1232 = vmatprep.subr.mxu0 %v785
    %1233 = vmatpush1.msra.mxu0 %v784
    %1234 = vmatprep.subr.mxu0 %v791
    %1235 = vmatpush1.msra.mxu0 %v790
    %1236 = vmatprep.subr.mxu0 %v797
    %1237 = vmatpush1.msra.mxu0 %v796
    %1238 = vmatprep.mubr.f32.mxu0 %v1082
    %1239 = vmatmul.mubr.f32.gmra.mrb[0].mxu0 %v1078
    %v1240 = vpop.f32.mrb[0].mxu0
    %v1241 = vadd.f32 0.0, %v1240
    %v1242 = vpop.f32.mrb[0].mxu0
    %v1243 = vadd.f32 0.0, %v1242
    %1244 = vdwg.mxu0
    %1245 = vmatprep.subr.mxu0 %v613
    %1246 = vmatpush1.msra.mxu0 %v612
    %1247 = vmatprep.subr.mxu0 %v619
    %1248 = vmatpush1.msra.mxu0 %v618
    %1249 = vmatprep.subr.mxu0 %v625
    %1250 = vmatpush1.msra.mxu0 %v624
    %1251 = vmatprep.subr.mxu0 %v631
    %1252 = vmatpush1.msra.mxu0 %v630
    %1253 = vmatprep.subr.mxu0 %v637
    %1254 = vmatpush1.msra.mxu0 %v636
    %1255 = vmatprep.subr.mxu0 %v643
    %1256 = vmatpush1.msra.mxu0 %v642
    %1257 = vmatprep.subr.mxu0 %v649
    %1258 = vmatpush1.msra.mxu0 %v648
    %1259 = vmatprep.subr.mxu0 %v655
    %1260 = vmatpush1.msra.mxu0 %v654
    %1261 = vmatprep.subr.mxu0 %v661
    %1262 = vmatpush1.msra.mxu0 %v660
    %1263 = vmatprep.subr.mxu0 %v667
    %1264 = vmatpush1.msra.mxu0 %v666
    %1265 = vmatprep.subr.mxu0 %v673
    %1266 = vmatpush1.msra.mxu0 %v672
    %1267 = vmatprep.subr.mxu0 %v679
    %1268 = vmatpush1.msra.mxu0 %v678
    %1269 = vmatprep.subr.mxu0 %v685
    %1270 = vmatpush1.msra.mxu0 %v684
    %1271 = vmatprep.subr.mxu0 %v691
    %1272 = vmatpush1.msra.mxu0 %v690
    %1273 = vmatprep.subr.mxu0 %v697
    %1274 = vmatpush1.msra.mxu0 %v696
    %1275 = vmatprep.subr.mxu0 %v703
    %1276 = vmatpush1.msra.mxu0 %v702
    %1277 = vmatprep.subr.mxu0 %v709
    %1278 = vmatpush1.msra.mxu0 %v708
    %1279 = vmatprep.subr.mxu0 %v715
    %1280 = vmatpush1.msra.mxu0 %v714
    %1281 = vmatprep.subr.mxu0 %v721
    %1282 = vmatpush1.msra.mxu0 %v720
    %1283 = vmatprep.subr.mxu0 %v727
    %1284 = vmatpush1.msra.mxu0 %v726
    %1285 = vmatprep.subr.mxu0 %v733
    %1286 = vmatpush1.msra.mxu0 %v732
    %1287 = vmatprep.subr.mxu0 %v739
    %1288 = vmatpush1.msra.mxu0 %v738
    %1289 = vmatprep.subr.mxu0 %v745
    %1290 = vmatpush1.msra.mxu0 %v744
    %1291 = vmatprep.subr.mxu0 %v751
    %1292 = vmatpush1.msra.mxu0 %v750
    %1293 = vmatprep.subr.mxu0 %v757
    %1294 = vmatpush1.msra.mxu0 %v756
    %1295 = vmatprep.subr.mxu0 %v763
    %1296 = vmatpush1.msra.mxu0 %v762
    %1297 = vmatprep.subr.mxu0 %v769
    %1298 = vmatpush1.msra.mxu0 %v768
    %1299 = vmatprep.subr.mxu0 %v775
    %1300 = vmatpush1.msra.mxu0 %v774
    %1301 = vmatprep.subr.mxu0 %v781
    %1302 = vmatpush1.msra.mxu0 %v780
    %1303 = vmatprep.subr.mxu0 %v787
    %1304 = vmatpush1.msra.mxu0 %v786
    %1305 = vmatprep.subr.mxu0 %v793
    %1306 = vmatpush1.msra.mxu0 %v792
    %1307 = vmatprep.subr.mxu0 %v799
    %1308 = vmatpush1.msra.mxu0 %v798
    %1309 = vmatprep.mubr.f32.mxu0 %v1082
    %1310 = vmatmul.mubr.f32.gmra.mrb[0].mxu0 %v1078
    %v1311 = vpop.f32.mrb[0].mxu0
    %v1312 = vadd.f32 0.0, %v1311
    %v1313 = vpop.f32.mrb[0].mxu0
    %v1314 = vadd.f32 0.0, %v1313
    %1315 = vdwg.mxu0
    %v1316 = vadd.f32 %v1094, %v1170
    %v1317 = vxor.u32 %v1316, 2147483648
    %v1318 = vmul.f32 %v1317, 1.442695
    %v1319 = vpow.pop %v1318
    %v1320 = vadd.f32 %v1319, 1.0
    %v1321 = vrcp.pop %v1320
    %v1322 = vmul.f32 1.0, %v1321
    %v1323 = vadd.f32 %v1095, %v1172
    %v1324 = vxor.u32 %v1323, 2147483648
    %v1325 = vmul.f32 %v1324, 1.442695
    %v1326 = vpow.pop %v1325
    %v1327 = vadd.f32 %v1326, 1.0
    %v1328 = vrcp.pop %v1327
    %v1329 = vmul.f32 1.0, %v1328
    %v1330 = vadd.f32 %v1241, %v805
    %v1331 = vmul.f32 %v1322, %v1330
    %v1332 = vadd.f32 %v1096, %v1331
    %v1333 = vtanh.pop %v1332
    %v1334 = vadd.f32 %v1100, %v1243
    %v1335 = vxor.u32 %v1334, 2147483648
    %v1336 = vmul.f32 %v1335, 1.442695
    %v1337 = vpow.pop %v1336
    %v1338 = vadd.f32 %v1337, 1.0
    %v1339 = vrcp.pop %v1338
    %v1340 = vmul.f32 1.0, %v1339
    %v1341 = vadd.f32 %v1101, %v1312
    %v1342 = vxor.u32 %v1341, 2147483648
    %v1343 = vmul.f32 %v1342, 1.442695
    %v1344 = vpow.pop %v1343
    %v1345 = vadd.f32 %v1344, 1.0
    %v1346 = vrcp.pop %v1345
    %v1347 = vmul.f32 1.0, %v1346
    %v1348 = vadd.f32 %v1314, %v812
    %v1349 = vmul.f32 %v1340, %v1348
    %v1350 = vadd.f32 %v1102, %v1349
    %v1351 = vtanh.pop %v1350
    %v1352 = vsub.f32 1.0, %v1329
    %v1353 = vmul.f32 %v1352, %v1333
    %v1354 = vmul.f32 %v1329, %v1078
    %v1355 = vadd.f32 %v1353, %v1354
    %v1356 = vsub.f32 1.0, %v1347
    %v1357 = vmul.f32 %v1356, %v1351
    %v1358 = vmul.f32 %v1347, %v1082
    %v1359 = vadd.f32 %v1357, %v1358
    %s1360 = smul.u32 1, 2
    %s1361 = smul.addr %s1360, 8
    %s1362 = scalar_lea.vmem [#allocation3], %s1361
    %1363 = vst [vmem:[%s1362] sm:$0xff] %v1355
    %s1364 = smul.u32 6, 2
    %s1365 = smul.addr %s1364, 8
    %s1366 = scalar_lea.vmem [#allocation3], %s1365
    %1367 = vst [vmem:[%s1366 + $0x8] sm:$0xff] %v1359
    %s1368 = smul.u32 2, 6
    %s1369 = smul.addr %s1368, 8
    %s1370 = scalar_lea.vmem [#allocation2], %s1369
    %v1371 = vld [vmem:[%s1370] sm:$0xff]
    %v1372 = vld [vmem:[%s1370 + $0x8] sm:$0xff]
    %v1373 = vld [vmem:[%s1370 + $0x10] sm:$0xff]
    %s1374 = smul.u32 5, 6
    %s1375 = smul.addr %s1374, 8
    %s1376 = scalar_lea.vmem [#allocation2], %s1375
    %v1377 = vld [vmem:[%s1376 + $0x18] sm:$0xff]
    %v1378 = vld [vmem:[%s1376 + $0x20] sm:$0xff]
    %v1379 = vld [vmem:[%s1376 + $0x28] sm:$0xff]
    %1380 = vmatprep.subr.mxu0 %v609
    %1381 = vmatpush1.msra.mxu0 %v608
    %1382 = vmatprep.subr.mxu0 %v615
    %1383 = vmatpush1.msra.mxu0 %v614
    %1384 = vmatprep.subr.mxu0 %v621
    %1385 = vmatpush1.msra.mxu0 %v620
    %1386 = vmatprep.subr.mxu0 %v627
    %1387 = vmatpush1.msra.mxu0 %v626
    %1388 = vmatprep.subr.mxu0 %v633
    %1389 = vmatpush1.msra.mxu0 %v632
    %1390 = vmatprep.subr.mxu0 %v639
    %1391 = vmatpush1.msra.mxu0 %v638
    %1392 = vmatprep.subr.mxu0 %v645
    %1393 = vmatpush1.msra.mxu0 %v644
    %1394 = vmatprep.subr.mxu0 %v651
    %1395 = vmatpush1.msra.mxu0 %v650
    %1396 = vmatprep.subr.mxu0 %v657
    %1397 = vmatpush1.msra.mxu0 %v656
    %1398 = vmatprep.subr.mxu0 %v663
    %1399 = vmatpush1.msra.mxu0 %v662
    %1400 = vmatprep.subr.mxu0 %v669
    %1401 = vmatpush1.msra.mxu0 %v668
    %1402 = vmatprep.subr.mxu0 %v675
    %1403 = vmatpush1.msra.mxu0 %v674
    %1404 = vmatprep.subr.mxu0 %v681
    %1405 = vmatpush1.msra.mxu0 %v680
    %1406 = vmatprep.subr.mxu0 %v687
    %1407 = vmatpush1.msra.mxu0 %v686
    %1408 = vmatprep.subr.mxu0 %v693
    %1409 = vmatpush1.msra.mxu0 %v692
    %1410 = vmatprep.subr.mxu0 %v699
    %1411 = vmatpush1.msra.mxu0 %v698
    %1412 = vmatprep.subr.mxu0 %v705
    %1413 = vmatpush1.msra.mxu0 %v704
    %1414 = vmatprep.subr.mxu0 %v711
    %1415 = vmatpush1.msra.mxu0 %v710
    %1416 = vmatprep.subr.mxu0 %v717
    %1417 = vmatpush1.msra.mxu0 %v716
    %1418 = vmatprep.subr.mxu0 %v723
    %1419 = vmatpush1.msra.mxu0 %v722
    %1420 = vmatprep.subr.mxu0 %v729
    %1421 = vmatpush1.msra.mxu0 %v728
    %1422 = vmatprep.subr.mxu0 %v735
    %1423 = vmatpush1.msra.mxu0 %v734
    %1424 = vmatprep.subr.mxu0 %v741
    %1425 = vmatpush1.msra.mxu0 %v740
    %1426 = vmatprep.subr.mxu0 %v747
    %1427 = vmatpush1.msra.mxu0 %v746
    %1428 = vmatprep.subr.mxu0 %v753
    %1429 = vmatpush1.msra.mxu0 %v752
    %1430 = vmatprep.subr.mxu0 %v759
    %1431 = vmatpush1.msra.mxu0 %v758
    %1432 = vmatprep.subr.mxu0 %v765
    %1433 = vmatpush1.msra.mxu0 %v764
    %1434 = vmatprep.subr.mxu0 %v771
    %1435 = vmatpush1.msra.mxu0 %v770
    %1436 = vmatprep.subr.mxu0 %v777
    %1437 = vmatpush1.msra.mxu0 %v776
    %1438 = vmatprep.subr.mxu0 %v783
    %1439 = vmatpush1.msra.mxu0 %v782
    %1440 = vmatprep.subr.mxu0 %v789
    %1441 = vmatpush1.msra.mxu0 %v788
    %1442 = vmatprep.subr.mxu0 %v795
    %1443 = vmatpush1.msra.mxu0 %v794
    %1444 = vmatprep.mubr.f32.mxu0 %v1359
    %1445 = vmatmul.mubr.f32.gmra.mrb[0].mxu0 %v1355
    %v1446 = vpop.f32.mrb[0].mxu0
    %v1447 = vadd.f32 0.0, %v1446
    %v1448 = vpop.f32.mrb[0].mxu0
    %v1449 = vadd.f32 0.0, %v1448
    %1450 = vdwg.mxu0
    %1451 = vmatprep.subr.mxu0 %v611
    %1452 = vmatpush1.msra.mxu0 %v610
    %1453 = vmatprep.subr.mxu0 %v617
    %1454 = vmatpush1.msra.mxu0 %v616
    %1455 = vmatprep.subr.mxu0 %v623
    %1456 = vmatpush1.msra.mxu0 %v622
    %1457 = vmatprep.subr.mxu0 %v629
    %1458 = vmatpush1.msra.mxu0 %v628
    %1459 = vmatprep.subr.mxu0 %v635
    %1460 = vmatpush1.msra.mxu0 %v634
    %1461 = vmatprep.subr.mxu0 %v641
    %1462 = vmatpush1.msra.mxu0 %v640
    %1463 = vmatprep.subr.mxu0 %v647
    %1464 = vmatpush1.msra.mxu0 %v646
    %1465 = vmatprep.subr.mxu0 %v653
    %1466 = vmatpush1.msra.mxu0 %v652
    %1467 = vmatprep.subr.mxu0 %v659
    %1468 = vmatpush1.msra.mxu0 %v658
    %1469 = vmatprep.subr.mxu0 %v665
    %1470 = vmatpush1.msra.mxu0 %v664
    %1471 = vmatprep.subr.mxu0 %v671
    %1472 = vmatpush1.msra.mxu0 %v670
    %1473 = vmatprep.subr.mxu0 %v677
    %1474 = vmatpush1.msra.mxu0 %v676
    %1475 = vmatprep.subr.mxu0 %v683
    %1476 = vmatpush1.msra.mxu0 %v682
    %1477 = vmatprep.subr.mxu0 %v689
    %1478 = vmatpush1.msra.mxu0 %v688
    %1479 = vmatprep.subr.mxu0 %v695
    %1480 = vmatpush1.msra.mxu0 %v694
    %1481 = vmatprep.subr.mxu0 %v701
    %1482 = vmatpush1.msra.mxu0 %v700
    %1483 = vmatprep.subr.mxu0 %v707
    %1484 = vmatpush1.msra.mxu0 %v706
    %1485 = vmatprep.subr.mxu0 %v713
    %1486 = vmatpush1.msra.mxu0 %v712
    %1487 = vmatprep.subr.mxu0 %v719
    %1488 = vmatpush1.msra.mxu0 %v718
    %1489 = vmatprep.subr.mxu0 %v725
    %1490 = vmatpush1.msra.mxu0 %v724
    %1491 = vmatprep.subr.mxu0 %v731
    %1492 = vmatpush1.msra.mxu0 %v730
    %1493 = vmatprep.subr.mxu0 %v737
    %1494 = vmatpush1.msra.mxu0 %v736
    %1495 = vmatprep.subr.mxu0 %v743
    %1496 = vmatpush1.msra.mxu0 %v742
    %1497 = vmatprep.subr.mxu0 %v749
    %1498 = vmatpush1.msra.mxu0 %v748
    %1499 = vmatprep.subr.mxu0 %v755
    %1500 = vmatpush1.msra.mxu0 %v754
    %1501 = vmatprep.subr.mxu0 %v761
    %1502 = vmatpush1.msra.mxu0 %v760
    %1503 = vmatprep.subr.mxu0 %v767
    %1504 = vmatpush1.msra.mxu0 %v766
    %1505 = vmatprep.subr.mxu0 %v773
    %1506 = vmatpush1.msra.mxu0 %v772
    %1507 = vmatprep.subr.mxu0 %v779
    %1508 = vmatpush1.msra.mxu0 %v778
    %1509 = vmatprep.subr.mxu0 %v785
    %1510 = vmatpush1.msra.mxu0 %v784
    %1511 = vmatprep.subr.mxu0 %v791
    %1512 = vmatpush1.msra.mxu0 %v790
    %1513 = vmatprep.subr.mxu0 %v797
    %1514 = vmatpush1.msra.mxu0 %v796
    %1515 = vmatprep.mubr.f32.mxu0 %v1359
    %1516 = vmatmul.mubr.f32.gmra.mrb[0].mxu0 %v1355
    %v1517 = vpop.f32.mrb[0].mxu0
    %v1518 = vadd.f32 0.0, %v1517
    %v1519 = vpop.f32.mrb[0].mxu0
    %v1520 = vadd.f32 0.0, %v1519
    %1521 = vdwg.mxu0
    %1522 = vmatprep.subr.mxu0 %v613
    %1523 = vmatpush1.msra.mxu0 %v612
    %1524 = vmatprep.subr.mxu0 %v619
    %1525 = vmatpush1.msra.mxu0 %v618
    %1526 = vmatprep.subr.mxu0 %v625
    %1527 = vmatpush1.msra.mxu0 %v624
    %1528 = vmatprep.subr.mxu0 %v631
    %1529 = vmatpush1.msra.mxu0 %v630
    %1530 = vmatprep.subr.mxu0 %v637
    %1531 = vmatpush1.msra.mxu0 %v636
    %1532 = vmatprep.subr.mxu0 %v643
    %1533 = vmatpush1.msra.mxu0 %v642
    %1534 = vmatprep.subr.mxu0 %v649
    %1535 = vmatpush1.msra.mxu0 %v648
    %1536 = vmatprep.subr.mxu0 %v655
    %1537 = vmatpush1.msra.mxu0 %v654
    %1538 = vmatprep.subr.mxu0 %v661
    %1539 = vmatpush1.msra.mxu0 %v660
    %1540 = vmatprep.subr.mxu0 %v667
    %1541 = vmatpush1.msra.mxu0 %v666
    %1542 = vmatprep.subr.mxu0 %v673
    %1543 = vmatpush1.msra.mxu0 %v672
    %1544 = vmatprep.subr.mxu0 %v679
    %1545 = vmatpush1.msra.mxu0 %v678
    %1546 = vmatprep.subr.mxu0 %v685
    %1547 = vmatpush1.msra.mxu0 %v684
    %1548 = vmatprep.subr.mxu0 %v691
    %1549 = vmatpush1.msra.mxu0 %v690
    %1550 = vmatprep.subr.mxu0 %v697
    %1551 = vmatpush1.msra.mxu0 %v696
    %1552 = vmatprep.subr.mxu0 %v703
    %1553 = vmatpush1.msra.mxu0 %v702
    %1554 = vmatprep.subr.mxu0 %v709
    %1555 = vmatpush1.msra.mxu0 %v708
    %1556 = vmatprep.subr.mxu0 %v715
    %1557 = vmatpush1.msra.mxu0 %v714
    %1558 = vmatprep.subr.mxu0 %v721
    %1559 = vmatpush1.msra.mxu0 %v720
    %1560 = vmatprep.subr.mxu0 %v727
    %1561 = vmatpush1.msra.mxu0 %v726
    %1562 = vmatprep.subr.mxu0 %v733
    %1563 = vmatpush1.msra.mxu0 %v732
    %1564 = vmatprep.subr.mxu0 %v739
    %1565 = vmatpush1.msra.mxu0 %v738
    %1566 = vmatprep.subr.mxu0 %v745
    %1567 = vmatpush1.msra.mxu0 %v744
    %1568 = vmatprep.subr.mxu0 %v751
    %1569 = vmatpush1.msra.mxu0 %v750
    %1570 = vmatprep.subr.mxu0 %v757
    %1571 = vmatpush1.msra.mxu0 %v756
    %1572 = vmatprep.subr.mxu0 %v763
    %1573 = vmatpush1.msra.mxu0 %v762
    %1574 = vmatprep.subr.mxu0 %v769
    %1575 = vmatpush1.msra.mxu0 %v768
    %1576 = vmatprep.subr.mxu0 %v775
    %1577 = vmatpush1.msra.mxu0 %v774
    %1578 = vmatprep.subr.mxu0 %v781
    %1579 = vmatpush1.msra.mxu0 %v780
    %1580 = vmatprep.subr.mxu0 %v787
    %1581 = vmatpush1.msra.mxu0 %v786
    %1582 = vmatprep.subr.mxu0 %v793
    %1583 = vmatpush1.msra.mxu0 %v792
    %1584 = vmatprep.subr.mxu0 %v799
    %1585 = vmatpush1.msra.mxu0 %v798
    %1586 = vmatprep.mubr.f32.mxu0 %v1359
    %1587 = vmatmul.mubr.f32.gmra.mrb[0].mxu0 %v1355
    %v1588 = vpop.f32.mrb[0].mxu0
    %v1589 = vadd.f32 0.0, %v1588
    %v1590 = vpop.f32.mrb[0].mxu0
    %v1591 = vadd.f32 0.0, %v1590
    %1592 = vdwg.mxu0
    %v1593 = vadd.f32 %v1371, %v1447
    %v1594 = vxor.u32 %v1593, 2147483648
    %v1595 = vmul.f32 %v1594, 1.442695
    %v1596 = vpow.pop %v1595
    %v1597 = vadd.f32 %v1596, 1.0
    %v1598 = vrcp.pop %v1597
    %v1599 = vmul.f32 1.0, %v1598
    %v1600 = vadd.f32 %v1372, %v1449
    %v1601 = vxor.u32 %v1600, 2147483648
    %v1602 = vmul.f32 %v1601, 1.442695
    %v1603 = vpow.pop %v1602
    %v1604 = vadd.f32 %v1603, 1.0
    %v1605 = vrcp.pop %v1604
    %v1606 = vmul.f32 1.0, %v1605
    %v1607 = vadd.f32 %v1518, %v805
    %v1608 = vmul.f32 %v1599, %v1607
    %v1609 = vadd.f32 %v1373, %v1608
    %v1610 = vtanh.pop %v1609
    %v1611 = vadd.f32 %v1377, %v1520
    %v1612 = vxor.u32 %v1611, 2147483648
    %v1613 = vmul.f32 %v1612, 1.442695
    %v1614 = vpow.pop %v1613
    %v1615 = vadd.f32 %v1614, 1.0
    %v1616 = vrcp.pop %v1615
    %v1617 = vmul.f32 1.0, %v1616
    %v1618 = vadd.f32 %v1378, %v1589
    %v1619 = vxor.u32 %v1618, 2147483648
    %v1620 = vmul.f32 %v1619, 1.442695
    %v1621 = vpow.pop %v1620
    %v1622 = vadd.f32 %v1621, 1.0
    %v1623 = vrcp.pop %v1622
    %v1624 = vmul.f32 1.0, %v1623
    %v1625 = vadd.f32 %v1591, %v812
    %v1626 = vmul.f32 %v1617, %v1625
    %v1627 = vadd.f32 %v1379, %v1626
    %v1628 = vtanh.pop %v1627
    %v1629 = vsub.f32 1.0, %v1606
    %v1630 = vmul.f32 %v1629, %v1610
    %v1631 = vmul.f32 %v1606, %v1355
    %v1632 = vadd.f32 %v1630, %v1631
    %v1633 = vsub.f32 1.0, %v1624
    %v1634 = vmul.f32 %v1633, %v1628
    %v1635 = vmul.f32 %v1624, %v1359
    %v1636 = vadd.f32 %v1634, %v1635
    %s1637 = smul.u32 2, 2
    %s1638 = smul.addr %s1637, 8
    %s1639 = scalar_lea.vmem [#allocation3], %s1638
    %1640 = vst [vmem:[%s1639] sm:$0xff] %v1632
    %s1641 = smul.u32 5, 2
    %s1642 = smul.addr %s1641, 8
    %s1643 = scalar_lea.vmem [#allocation3], %s1642
    %1644 = vst [vmem:[%s1643 + $0x8] sm:$0xff] %v1636
    %s1645 = smul.u32 3, 6
    %s1646 = smul.addr %s1645, 8
    %s1647 = scalar_lea.vmem [#allocation2], %s1646
    %v1648 = vld [vmem:[%s1647] sm:$0xff]
    %v1649 = vld [vmem:[%s1647 + $0x8] sm:$0xff]
    %v1650 = vld [vmem:[%s1647 + $0x10] sm:$0xff]
    %s1651 = smul.u32 4, 6
    %s1652 = smul.addr %s1651, 8
    %s1653 = scalar_lea.vmem [#allocation2], %s1652
    %v1654 = vld [vmem:[%s1653 + $0x18] sm:$0xff]
    %v1655 = vld [vmem:[%s1653 + $0x20] sm:$0xff]
    %v1656 = vld [vmem:[%s1653 + $0x28] sm:$0xff]
    %1657 = vmatprep.subr.mxu0 %v609
    %1658 = vmatpush1.msra.mxu0 %v608
    %1659 = vmatprep.subr.mxu0 %v615
    %1660 = vmatpush1.msra.mxu0 %v614
    %1661 = vmatprep.subr.mxu0 %v621
    %1662 = vmatpush1.msra.mxu0 %v620
    %1663 = vmatprep.subr.mxu0 %v627
    %1664 = vmatpush1.msra.mxu0 %v626
    %1665 = vmatprep.subr.mxu0 %v633
    %1666 = vmatpush1.msra.mxu0 %v632
    %1667 = vmatprep.subr.mxu0 %v639
    %1668 = vmatpush1.msra.mxu0 %v638
    %1669 = vmatprep.subr.mxu0 %v645
    %1670 = vmatpush1.msra.mxu0 %v644
    %1671 = vmatprep.subr.mxu0 %v651
    %1672 = vmatpush1.msra.mxu0 %v650
    %1673 = vmatprep.subr.mxu0 %v657
    %1674 = vmatpush1.msra.mxu0 %v656
    %1675 = vmatprep.subr.mxu0 %v663
    %1676 = vmatpush1.msra.mxu0 %v662
    %1677 = vmatprep.subr.mxu0 %v669
    %1678 = vmatpush1.msra.mxu0 %v668
    %1679 = vmatprep.subr.mxu0 %v675
    %1680 = vmatpush1.msra.mxu0 %v674
    %1681 = vmatprep.subr.mxu0 %v681
    %1682 = vmatpush1.msra.mxu0 %v680
    %1683 = vmatprep.subr.mxu0 %v687
    %1684 = vmatpush1.msra.mxu0 %v686
    %1685 = vmatprep.subr.mxu0 %v693
    %1686 = vmatpush1.msra.mxu0 %v692
    %1687 = vmatprep.subr.mxu0 %v699
    %1688 = vmatpush1.msra.mxu0 %v698
    %1689 = vmatprep.subr.mxu0 %v705
    %1690 = vmatpush1.msra.mxu0 %v704
    %1691 = vmatprep.subr.mxu0 %v711
    %1692 = vmatpush1.msra.mxu0 %v710
    %1693 = vmatprep.subr.mxu0 %v717
    %1694 = vmatpush1.msra.mxu0 %v716
    %1695 = vmatprep.subr.mxu0 %v723
    %1696 = vmatpush1.msra.mxu0 %v722
    %1697 = vmatprep.subr.mxu0 %v729
    %1698 = vmatpush1.msra.mxu0 %v728
    %1699 = vmatprep.subr.mxu0 %v735
    %1700 = vmatpush1.msra.mxu0 %v734
    %1701 = vmatprep.subr.mxu0 %v741
    %1702 = vmatpush1.msra.mxu0 %v740
    %1703 = vmatprep.subr.mxu0 %v747
    %1704 = vmatpush1.msra.mxu0 %v746
    %1705 = vmatprep.subr.mxu0 %v753
    %1706 = vmatpush1.msra.mxu0 %v752
    %1707 = vmatprep.subr.mxu0 %v759
    %1708 = vmatpush1.msra.mxu0 %v758
    %1709 = vmatprep.subr.mxu0 %v765
    %1710 = vmatpush1.msra.mxu0 %v764
    %1711 = vmatprep.subr.mxu0 %v771
    %1712 = vmatpush1.msra.mxu0 %v770
    %1713 = vmatprep.subr.mxu0 %v777
    %1714 = vmatpush1.msra.mxu0 %v776
    %1715 = vmatprep.subr.mxu0 %v783
    %1716 = vmatpush1.msra.mxu0 %v782
    %1717 = vmatprep.subr.mxu0 %v789
    %1718 = vmatpush1.msra.mxu0 %v788
    %1719 = vmatprep.subr.mxu0 %v795
    %1720 = vmatpush1.msra.mxu0 %v794
    %1721 = vmatprep.mubr.f32.mxu0 %v1636
    %1722 = vmatmul.mubr.f32.gmra.mrb[0].mxu0 %v1632
    %v1723 = vpop.f32.mrb[0].mxu0
    %v1724 = vadd.f32 0.0, %v1723
    %v1725 = vpop.f32.mrb[0].mxu0
    %v1726 = vadd.f32 0.0, %v1725
    %1727 = vdwg.mxu0
    %1728 = vmatprep.subr.mxu0 %v611
    %1729 = vmatpush1.msra.mxu0 %v610
    %1730 = vmatprep.subr.mxu0 %v617
    %1731 = vmatpush1.msra.mxu0 %v616
    %1732 = vmatprep.subr.mxu0 %v623
    %1733 = vmatpush1.msra.mxu0 %v622
    %1734 = vmatprep.subr.mxu0 %v629
    %1735 = vmatpush1.msra.mxu0 %v628
    %1736 = vmatprep.subr.mxu0 %v635
    %1737 = vmatpush1.msra.mxu0 %v634
    %1738 = vmatprep.subr.mxu0 %v641
    %1739 = vmatpush1.msra.mxu0 %v640
    %1740 = vmatprep.subr.mxu0 %v647
    %1741 = vmatpush1.msra.mxu0 %v646
    %1742 = vmatprep.subr.mxu0 %v653
    %1743 = vmatpush1.msra.mxu0 %v652
    %1744 = vmatprep.subr.mxu0 %v659
    %1745 = vmatpush1.msra.mxu0 %v658
    %1746 = vmatprep.subr.mxu0 %v665
    %1747 = vmatpush1.msra.mxu0 %v664
    %1748 = vmatprep.subr.mxu0 %v671
    %1749 = vmatpush1.msra.mxu0 %v670
    %1750 = vmatprep.subr.mxu0 %v677
    %1751 = vmatpush1.msra.mxu0 %v676
    %1752 = vmatprep.subr.mxu0 %v683
    %1753 = vmatpush1.msra.mxu0 %v682
    %1754 = vmatprep.subr.mxu0 %v689
    %1755 = vmatpush1.msra.mxu0 %v688
    %1756 = vmatprep.subr.mxu0 %v695
    %1757 = vmatpush1.msra.mxu0 %v694
    %1758 = vmatprep.subr.mxu0 %v701
    %1759 = vmatpush1.msra.mxu0 %v700
    %1760 = vmatprep.subr.mxu0 %v707
    %1761 = vmatpush1.msra.mxu0 %v706
    %1762 = vmatprep.subr.mxu0 %v713
    %1763 = vmatpush1.msra.mxu0 %v712
    %1764 = vmatprep.subr.mxu0 %v719
    %1765 = vmatpush1.msra.mxu0 %v718
    %1766 = vmatprep.subr.mxu0 %v725
    %1767 = vmatpush1.msra.mxu0 %v724
    %1768 = vmatprep.subr.mxu0 %v731
    %1769 = vmatpush1.msra.mxu0 %v730
    %1770 = vmatprep.subr.mxu0 %v737
    %1771 = vmatpush1.msra.mxu0 %v736
    %1772 = vmatprep.subr.mxu0 %v743
    %1773 = vmatpush1.msra.mxu0 %v742
    %1774 = vmatprep.subr.mxu0 %v749
    %1775 = vmatpush1.msra.mxu0 %v748
    %1776 = vmatprep.subr.mxu0 %v755
    %1777 = vmatpush1.msra.mxu0 %v754
    %1778 = vmatprep.subr.mxu0 %v761
    %1779 = vmatpush1.msra.mxu0 %v760
    %1780 = vmatprep.subr.mxu0 %v767
    %1781 = vmatpush1.msra.mxu0 %v766
    %1782 = vmatprep.subr.mxu0 %v773
    %1783 = vmatpush1.msra.mxu0 %v772
    %1784 = vmatprep.subr.mxu0 %v779
    %1785 = vmatpush1.msra.mxu0 %v778
    %1786 = vmatprep.subr.mxu0 %v785
    %1787 = vmatpush1.msra.mxu0 %v784
    %1788 = vmatprep.subr.mxu0 %v791
    %1789 = vmatpush1.msra.mxu0 %v790
    %1790 = vmatprep.subr.mxu0 %v797
    %1791 = vmatpush1.msra.mxu0 %v796
    %1792 = vmatprep.mubr.f32.mxu0 %v1636
    %1793 = vmatmul.mubr.f32.gmra.mrb[0].mxu0 %v1632
    %v1794 = vpop.f32.mrb[0].mxu0
    %v1795 = vadd.f32 0.0, %v1794
    %v1796 = vpop.f32.mrb[0].mxu0
    %v1797 = vadd.f32 0.0, %v1796
    %1798 = vdwg.mxu0
    %1799 = vmatprep.subr.mxu0 %v613
    %1800 = vmatpush1.msra.mxu0 %v612
    %1801 = vmatprep.subr.mxu0 %v619
    %1802 = vmatpush1.msra.mxu0 %v618
    %1803 = vmatprep.subr.mxu0 %v625
    %1804 = vmatpush1.msra.mxu0 %v624
    %1805 = vmatprep.subr.mxu0 %v631
    %1806 = vmatpush1.msra.mxu0 %v630
    %1807 = vmatprep.subr.mxu0 %v637
    %1808 = vmatpush1.msra.mxu0 %v636
    %1809 = vmatprep.subr.mxu0 %v643
    %1810 = vmatpush1.msra.mxu0 %v642
    %1811 = vmatprep.subr.mxu0 %v649
    %1812 = vmatpush1.msra.mxu0 %v648
    %1813 = vmatprep.subr.mxu0 %v655
    %1814 = vmatpush1.msra.mxu0 %v654
    %1815 = vmatprep.subr.mxu0 %v661
    %1816 = vmatpush1.msra.mxu0 %v660
    %1817 = vmatprep.subr.mxu0 %v667
    %1818 = vmatpush1.msra.mxu0 %v666
    %1819 = vmatprep.subr.mxu0 %v673
    %1820 = vmatpush1.msra.mxu0 %v672
    %1821 = vmatprep.subr.mxu0 %v679
    %1822 = vmatpush1.msra.mxu0 %v678
    %1823 = vmatprep.subr.mxu0 %v685
    %1824 = vmatpush1.msra.mxu0 %v684
    %1825 = vmatprep.subr.mxu0 %v691
    %1826 = vmatpush1.msra.mxu0 %v690
    %1827 = vmatprep.subr.mxu0 %v697
    %1828 = vmatpush1.msra.mxu0 %v696
    %1829 = vmatprep.subr.mxu0 %v703
    %1830 = vmatpush1.msra.mxu0 %v702
    %1831 = vmatprep.subr.mxu0 %v709
    %1832 = vmatpush1.msra.mxu0 %v708
    %1833 = vmatprep.subr.mxu0 %v715
    %1834 = vmatpush1.msra.mxu0 %v714
    %1835 = vmatprep.subr.mxu0 %v721
    %1836 = vmatpush1.msra.mxu0 %v720
    %1837 = vmatprep.subr.mxu0 %v727
    %1838 = vmatpush1.msra.mxu0 %v726
    %1839 = vmatprep.subr.mxu0 %v733
    %1840 = vmatpush1.msra.mxu0 %v732
    %1841 = vmatprep.subr.mxu0 %v739
    %1842 = vmatpush1.msra.mxu0 %v738
    %1843 = vmatprep.subr.mxu0 %v745
    %1844 = vmatpush1.msra.mxu0 %v744
    %1845 = vmatprep.subr.mxu0 %v751
    %1846 = vmatpush1.msra.mxu0 %v750
    %1847 = vmatprep.subr.mxu0 %v757
    %1848 = vmatpush1.msra.mxu0 %v756
    %1849 = vmatprep.subr.mxu0 %v763
    %1850 = vmatpush1.msra.mxu0 %v762
    %1851 = vmatprep.subr.mxu0 %v769
    %1852 = vmatpush1.msra.mxu0 %v768
    %1853 = vmatprep.subr.mxu0 %v775
    %1854 = vmatpush1.msra.mxu0 %v774
    %1855 = vmatprep.subr.mxu0 %v781
    %1856 = vmatpush1.msra.mxu0 %v780
    %1857 = vmatprep.subr.mxu0 %v787
    %1858 = vmatpush1.msra.mxu0 %v786
    %1859 = vmatprep.subr.mxu0 %v793
    %1860 = vmatpush1.msra.mxu0 %v792
    %1861 = vmatprep.subr.mxu0 %v799
    %1862 = vmatpush1.msra.mxu0 %v798
    %1863 = vmatprep.mubr.f32.mxu0 %v1636
    %1864 = vmatmul.mubr.f32.gmra.mrb[0].mxu0 %v1632
    %v1865 = vpop.f32.mrb[0].mxu0
    %v1866 = vadd.f32 0.0, %v1865
    %v1867 = vpop.f32.mrb[0].mxu0
    %v1868 = vadd.f32 0.0, %v1867
    %1869 = vdwg.mxu0
    %v1870 = vadd.f32 %v1648, %v1724
    %v1871 = vxor.u32 %v1870, 2147483648
    %v1872 = vmul.f32 %v1871, 1.442695
    %v1873 = vpow.pop %v1872
    %v1874 = vadd.f32 %v1873, 1.0
    %v1875 = vrcp.pop %v1874
    %v1876 = vmul.f32 1.0, %v1875
    %v1877 = vadd.f32 %v1649, %v1726
    %v1878 = vxor.u32 %v1877, 2147483648
    %v1879 = vmul.f32 %v1878, 1.442695
    %v1880 = vpow.pop %v1879
    %v1881 = vadd.f32 %v1880, 1.0
    %v1882 = vrcp.pop %v1881
    %v1883 = vmul.f32 1.0, %v1882
    %v1884 = vadd.f32 %v1795, %v805
    %v1885 = vmul.f32 %v1876, %v1884
    %v1886 = vadd.f32 %v1650, %v1885
    %v1887 = vtanh.pop %v1886
    %v1888 = vadd.f32 %v1654, %v1797
    %v1889 = vxor.u32 %v1888, 2147483648
    %v1890 = vmul.f32 %v1889, 1.442695
    %v1891 = vpow.pop %v1890
    %v1892 = vadd.f32 %v1891, 1.0
    %v1893 = vrcp.pop %v1892
    %v1894 = vmul.f32 1.0, %v1893
    %v1895 = vadd.f32 %v1655, %v1866
    %v1896 = vxor.u32 %v1895, 2147483648
    %v1897 = vmul.f32 %v1896, 1.442695
    %v1898 = vpow.pop %v1897
    %v1899 = vadd.f32 %v1898, 1.0
    %v1900 = vrcp.pop %v1899
    %v1901 = vmul.f32 1.0, %v1900
    %v1902 = vadd.f32 %v1868, %v812
    %v1903 = vmul.f32 %v1894, %v1902
    %v1904 = vadd.f32 %v1656, %v1903
    %v1905 = vtanh.pop %v1904
    %v1906 = vsub.f32 1.0, %v1883
    %v1907 = vmul.f32 %v1906, %v1887
    %v1908 = vmul.f32 %v1883, %v1632
    %v1909 = vadd.f32 %v1907, %v1908
    %v1910 = vsub.f32 1.0, %v1901
    %v1911 = vmul.f32 %v1910, %v1905
    %v1912 = vmul.f32 %v1901, %v1636
    %v1913 = vadd.f32 %v1911, %v1912
    %s1914 = smul.u32 3, 2
    %s1915 = smul.addr %s1914, 8
    %s1916 = scalar_lea.vmem [#allocation3], %s1915
    %1917 = vst [vmem:[%s1916] sm:$0xff] %v1909
    %s1918 = smul.u32 4, 2
    %s1919 = smul.addr %s1918, 8
    %s1920 = scalar_lea.vmem [#allocation3], %s1919
    %1921 = vst [vmem:[%s1920 + $0x8] sm:$0xff] %v1913
    %v1922 = vld [vmem:[%s1653] sm:$0xff]
    %v1923 = vld [vmem:[%s1653 + $0x8] sm:$0xff]
    %v1924 = vld [vmem:[%s1653 + $0x10] sm:$0xff]
    %v1925 = vld [vmem:[%s1647 + $0x18] sm:$0xff]
    %v1926 = vld [vmem:[%s1647 + $0x20] sm:$0xff]
    %v1927 = vld [vmem:[%s1647 + $0x28] sm:$0xff]
    %1928 = vmatprep.subr.mxu0 %v609
    %1929 = vmatpush1.msra.mxu0 %v608
    %1930 = vmatprep.subr.mxu0 %v615
    %1931 = vmatpush1.msra.mxu0 %v614
    %1932 = vmatprep.subr.mxu0 %v621
    %1933 = vmatpush1.msra.mxu0 %v620
    %1934 = vmatprep.subr.mxu0 %v627
    %1935 = vmatpush1.msra.mxu0 %v626
    %1936 = vmatprep.subr.mxu0 %v633
    %1937 = vmatpush1.msra.mxu0 %v632
    %1938 = vmatprep.subr.mxu0 %v639
    %1939 = vmatpush1.msra.mxu0 %v638
    %1940 = vmatprep.subr.mxu0 %v645
    %1941 = vmatpush1.msra.mxu0 %v644
    %1942 = vmatprep.subr.mxu0 %v651
    %1943 = vmatpush1.msra.mxu0 %v650
    %1944 = vmatprep.subr.mxu0 %v657
    %1945 = vmatpush1.msra.mxu0 %v656
    %1946 = vmatprep.subr.mxu0 %v663
    %1947 = vmatpush1.msra.mxu0 %v662
    %1948 = vmatprep.subr.mxu0 %v669
    %1949 = vmatpush1.msra.mxu0 %v668
    %1950 = vmatprep.subr.mxu0 %v675
    %1951 = vmatpush1.msra.mxu0 %v674
    %1952 = vmatprep.subr.mxu0 %v681
    %1953 = vmatpush1.msra.mxu0 %v680
    %1954 = vmatprep.subr.mxu0 %v687
    %1955 = vmatpush1.msra.mxu0 %v686
    %1956 = vmatprep.subr.mxu0 %v693
    %1957 = vmatpush1.msra.mxu0 %v692
    %1958 = vmatprep.subr.mxu0 %v699
    %1959 = vmatpush1.msra.mxu0 %v698
    %1960 = vmatprep.subr.mxu0 %v705
    %1961 = vmatpush1.msra.mxu0 %v704
    %1962 = vmatprep.subr.mxu0 %v711
    %1963 = vmatpush1.msra.mxu0 %v710
    %1964 = vmatprep.subr.mxu0 %v717
    %1965 = vmatpush1.msra.mxu0 %v716
    %1966 = vmatprep.subr.mxu0 %v723
    %1967 = vmatpush1.msra.mxu0 %v722
    %1968 = vmatprep.subr.mxu0 %v729
    %1969 = vmatpush1.msra.mxu0 %v728
    %1970 = vmatprep.subr.mxu0 %v735
    %1971 = vmatpush1.msra.mxu0 %v734
    %1972 = vmatprep.subr.mxu0 %v741
    %1973 = vmatpush1.msra.mxu0 %v740
    %1974 = vmatprep.subr.mxu0 %v747
    %1975 = vmatpush1.msra.mxu0 %v746
    %1976 = vmatprep.subr.mxu0 %v753
    %1977 = vmatpush1.msra.mxu0 %v752
    %1978 = vmatprep.subr.mxu0 %v759
    %1979 = vmatpush1.msra.mxu0 %v758
    %1980 = vmatprep.subr.mxu0 %v765
    %1981 = vmatpush1.msra.mxu0 %v764
    %1982 = vmatprep.subr.mxu0 %v771
    %1983 = vmatpush1.msra.mxu0 %v770
    %1984 = vmatprep.subr.mxu0 %v777
    %1985 = vmatpush1.msra.mxu0 %v776
    %1986 = vmatprep.subr.mxu0 %v783
    %1987 = vmatpush1.msra.mxu0 %v782
    %1988 = vmatprep.subr.mxu0 %v789
    %1989 = vmatpush1.msra.mxu0 %v788
    %1990 = vmatprep.subr.mxu0 %v795
    %1991 = vmatpush1.msra.mxu0 %v794
    %1992 = vmatprep.mubr.f32.mxu0 %v1913
    %1993 = vmatmul.mubr.f32.gmra.mrb[0].mxu0 %v1909
    %v1994 = vpop.f32.mrb[0].mxu0
    %v1995 = vadd.f32 0.0, %v1994
    %v1996 = vpop.f32.mrb[0].mxu0
    %v1997 = vadd.f32 0.0, %v1996
    %1998 = vdwg.mxu0
    %1999 = vmatprep.subr.mxu0 %v611
    %2000 = vmatpush1.msra.mxu0 %v610
    %2001 = vmatprep.subr.mxu0 %v617
    %2002 = vmatpush1.msra.mxu0 %v616
    %2003 = vmatprep.subr.mxu0 %v623
    %2004 = vmatpush1.msra.mxu0 %v622
    %2005 = vmatprep.subr.mxu0 %v629
    %2006 = vmatpush1.msra.mxu0 %v628
    %2007 = vmatprep.subr.mxu0 %v635
    %2008 = vmatpush1.msra.mxu0 %v634
    %2009 = vmatprep.subr.mxu0 %v641
    %2010 = vmatpush1.msra.mxu0 %v640
    %2011 = vmatprep.subr.mxu0 %v647
    %2012 = vmatpush1.msra.mxu0 %v646
    %2013 = vmatprep.subr.mxu0 %v653
    %2014 = vmatpush1.msra.mxu0 %v652
    %2015 = vmatprep.subr.mxu0 %v659
    %2016 = vmatpush1.msra.mxu0 %v658
    %2017 = vmatprep.subr.mxu0 %v665
    %2018 = vmatpush1.msra.mxu0 %v664
    %2019 = vmatprep.subr.mxu0 %v671
    %2020 = vmatpush1.msra.mxu0 %v670
    %2021 = vmatprep.subr.mxu0 %v677
    %2022 = vmatpush1.msra.mxu0 %v676
    %2023 = vmatprep.subr.mxu0 %v683
    %2024 = vmatpush1.msra.mxu0 %v682
    %2025 = vmatprep.subr.mxu0 %v689
    %2026 = vmatpush1.msra.mxu0 %v688
    %2027 = vmatprep.subr.mxu0 %v695
    %2028 = vmatpush1.msra.mxu0 %v694
    %2029 = vmatprep.subr.mxu0 %v701
    %2030 = vmatpush1.msra.mxu0 %v700
    %2031 = vmatprep.subr.mxu0 %v707
    %2032 = vmatpush1.msra.mxu0 %v706
    %2033 = vmatprep.subr.mxu0 %v713
    %2034 = vmatpush1.msra.mxu0 %v712
    %2035 = vmatprep.subr.mxu0 %v719
    %2036 = vmatpush1.msra.mxu0 %v718
    %2037 = vmatprep.subr.mxu0 %v725
    %2038 = vmatpush1.msra.mxu0 %v724
    %2039 = vmatprep.subr.mxu0 %v731
    %2040 = vmatpush1.msra.mxu0 %v730
    %2041 = vmatprep.subr.mxu0 %v737
    %2042 = vmatpush1.msra.mxu0 %v736
    %2043 = vmatprep.subr.mxu0 %v743
    %2044 = vmatpush1.msra.mxu0 %v742
    %2045 = vmatprep.subr.mxu0 %v749
    %2046 = vmatpush1.msra.mxu0 %v748
    %2047 = vmatprep.subr.mxu0 %v755
    %2048 = vmatpush1.msra.mxu0 %v754
    %2049 = vmatprep.subr.mxu0 %v761
    %2050 = vmatpush1.msra.mxu0 %v760
    %2051 = vmatprep.subr.mxu0 %v767
    %2052 = vmatpush1.msra.mxu0 %v766
    %2053 = vmatprep.subr.mxu0 %v773
    %2054 = vmatpush1.msra.mxu0 %v772
    %2055 = vmatprep.subr.mxu0 %v779
    %2056 = vmatpush1.msra.mxu0 %v778
    %2057 = vmatprep.subr.mxu0 %v785
    %2058 = vmatpush1.msra.mxu0 %v784
    %2059 = vmatprep.subr.mxu0 %v791
    %2060 = vmatpush1.msra.mxu0 %v790
    %2061 = vmatprep.subr.mxu0 %v797
    %2062 = vmatpush1.msra.mxu0 %v796
    %2063 = vmatprep.mubr.f32.mxu0 %v1913
    %2064 = vmatmul.mubr.f32.gmra.mrb[0].mxu0 %v1909
    %v2065 = vpop.f32.mrb[0].mxu0
    %v2066 = vadd.f32 0.0, %v2065
    %v2067 = vpop.f32.mrb[0].mxu0
    %v2068 = vadd.f32 0.0, %v2067
    %2069 = vdwg.mxu0
    %2070 = vmatprep.subr.mxu0 %v613
    %2071 = vmatpush1.msra.mxu0 %v612
    %2072 = vmatprep.subr.mxu0 %v619
    %2073 = vmatpush1.msra.mxu0 %v618
    %2074 = vmatprep.subr.mxu0 %v625
    %2075 = vmatpush1.msra.mxu0 %v624
    %2076 = vmatprep.subr.mxu0 %v631
    %2077 = vmatpush1.msra.mxu0 %v630
    %2078 = vmatprep.subr.mxu0 %v637
    %2079 = vmatpush1.msra.mxu0 %v636
    %2080 = vmatprep.subr.mxu0 %v643
    %2081 = vmatpush1.msra.mxu0 %v642
    %2082 = vmatprep.subr.mxu0 %v649
    %2083 = vmatpush1.msra.mxu0 %v648
    %2084 = vmatprep.subr.mxu0 %v655
    %2085 = vmatpush1.msra.mxu0 %v654
    %2086 = vmatprep.subr.mxu0 %v661
    %2087 = vmatpush1.msra.mxu0 %v660
    %2088 = vmatprep.subr.mxu0 %v667
    %2089 = vmatpush1.msra.mxu0 %v666
    %2090 = vmatprep.subr.mxu0 %v673
    %2091 = vmatpush1.msra.mxu0 %v672
    %2092 = vmatprep.subr.mxu0 %v679
    %2093 = vmatpush1.msra.mxu0 %v678
    %2094 = vmatprep.subr.mxu0 %v685
    %2095 = vmatpush1.msra.mxu0 %v684
    %2096 = vmatprep.subr.mxu0 %v691
    %2097 = vmatpush1.msra.mxu0 %v690
    %2098 = vmatprep.subr.mxu0 %v697
    %2099 = vmatpush1.msra.mxu0 %v696
    %2100 = vmatprep.subr.mxu0 %v703
    %2101 = vmatpush1.msra.mxu0 %v702
    %2102 = vmatprep.subr.mxu0 %v709
    %2103 = vmatpush1.msra.mxu0 %v708
    %2104 = vmatprep.subr.mxu0 %v715
    %2105 = vmatpush1.msra.mxu0 %v714
    %2106 = vmatprep.subr.mxu0 %v721
    %2107 = vmatpush1.msra.mxu0 %v720
    %2108 = vmatprep.subr.mxu0 %v727
    %2109 = vmatpush1.msra.mxu0 %v726
    %2110 = vmatprep.subr.mxu0 %v733
    %2111 = vmatpush1.msra.mxu0 %v732
    %2112 = vmatprep.subr.mxu0 %v739
    %2113 = vmatpush1.msra.mxu0 %v738
    %2114 = vmatprep.subr.mxu0 %v745
    %2115 = vmatpush1.msra.mxu0 %v744
    %2116 = vmatprep.subr.mxu0 %v751
    %2117 = vmatpush1.msra.mxu0 %v750
    %2118 = vmatprep.subr.mxu0 %v757
    %2119 = vmatpush1.msra.mxu0 %v756
    %2120 = vmatprep.subr.mxu0 %v763
    %2121 = vmatpush1.msra.mxu0 %v762
    %2122 = vmatprep.subr.mxu0 %v769
    %2123 = vmatpush1.msra.mxu0 %v768
    %2124 = vmatprep.subr.mxu0 %v775
    %2125 = vmatpush1.msra.mxu0 %v774
    %2126 = vmatprep.subr.mxu0 %v781
    %2127 = vmatpush1.msra.mxu0 %v780
    %2128 = vmatprep.subr.mxu0 %v787
    %2129 = vmatpush1.msra.mxu0 %v786
    %2130 = vmatprep.subr.mxu0 %v793
    %2131 = vmatpush1.msra.mxu0 %v792
    %2132 = vmatprep.subr.mxu0 %v799
    %2133 = vmatpush1.msra.mxu0 %v798
    %2134 = vmatprep.mubr.f32.mxu0 %v1913
    %2135 = vmatmul.mubr.f32.gmra.mrb[0].mxu0 %v1909
    %v2136 = vpop.f32.mrb[0].mxu0
    %v2137 = vadd.f32 0.0, %v2136
    %v2138 = vpop.f32.mrb[0].mxu0
    %v2139 = vadd.f32 0.0, %v2138
    %2140 = vdwg.mxu0
    %v2141 = vadd.f32 %v1922, %v1995
    %v2142 = vxor.u32 %v2141, 2147483648
    %v2143 = vmul.f32 %v2142, 1.442695
    %v2144 = vpow.pop %v2143
    %v2145 = vadd.f32 %v2144, 1.0
    %v2146 = vrcp.pop %v2145
    %v2147 = vmul.f32 1.0, %v2146
    %v2148 = vadd.f32 %v1923, %v1997
    %v2149 = vxor.u32 %v2148, 2147483648
    %v2150 = vmul.f32 %v2149, 1.442695
    %v2151 = vpow.pop %v2150
    %v2152 = vadd.f32 %v2151, 1.0
    %v2153 = vrcp.pop %v2152
    %v2154 = vmul.f32 1.0, %v2153
    %v2155 = vadd.f32 %v2066, %v805
    %v2156 = vmul.f32 %v2147, %v2155
    %v2157 = vadd.f32 %v1924, %v2156
    %v2158 = vtanh.pop %v2157
    %v2159 = vadd.f32 %v1925, %v2068
    %v2160 = vxor.u32 %v2159, 2147483648
    %v2161 = vmul.f32 %v2160, 1.442695
    %v2162 = vpow.pop %v2161
    %v2163 = vadd.f32 %v2162, 1.0
    %v2164 = vrcp.pop %v2163
    %v2165 = vmul.f32 1.0, %v2164
    %v2166 = vadd.f32 %v1926, %v2137
    %v2167 = vxor.u32 %v2166, 2147483648
    %v2168 = vmul.f32 %v2167, 1.442695
    %v2169 = vpow.pop %v2168
    %v2170 = vadd.f32 %v2169, 1.0
    %v2171 = vrcp.pop %v2170
    %v2172 = vmul.f32 1.0, %v2171
    %v2173 = vadd.f32 %v2139, %v812
    %v2174 = vmul.f32 %v2165, %v2173
    %v2175 = vadd.f32 %v1927, %v2174
    %v2176 = vtanh.pop %v2175
    %v2177 = vsub.f32 1.0, %v2154
    %v2178 = vmul.f32 %v2177, %v2158
    %v2179 = vmul.f32 %v2154, %v1909
    %v2180 = vadd.f32 %v2178, %v2179
    %v2181 = vsub.f32 1.0, %v2172
    %v2182 = vmul.f32 %v2181, %v2176
    %v2183 = vmul.f32 %v2172, %v1913
    %v2184 = vadd.f32 %v2182, %v2183
    %2185 = vst [vmem:[%s1920] sm:$0xff] %v2180
    %2186 = vst [vmem:[%s1916 + $0x8] sm:$0xff] %v2184
    %v2187 = vld [vmem:[%s1376] sm:$0xff]
    %v2188 = vld [vmem:[%s1376 + $0x8] sm:$0xff]
    %v2189 = vld [vmem:[%s1376 + $0x10] sm:$0xff]
    %v2190 = vld [vmem:[%s1370 + $0x18] sm:$0xff]
    %v2191 = vld [vmem:[%s1370 + $0x20] sm:$0xff]
    %v2192 = vld [vmem:[%s1370 + $0x28] sm:$0xff]
    %2193 = vmatprep.subr.mxu0 %v609
    %2194 = vmatpush1.msra.mxu0 %v608
    %2195 = vmatprep.subr.mxu0 %v615
    %2196 = vmatpush1.msra.mxu0 %v614
    %2197 = vmatprep.subr.mxu0 %v621
    %2198 = vmatpush1.msra.mxu0 %v620
    %2199 = vmatprep.subr.mxu0 %v627
    %2200 = vmatpush1.msra.mxu0 %v626
    %2201 = vmatprep.subr.mxu0 %v633
    %2202 = vmatpush1.msra.mxu0 %v632
    %2203 = vmatprep.subr.mxu0 %v639
    %2204 = vmatpush1.msra.mxu0 %v638
    %2205 = vmatprep.subr.mxu0 %v645
    %2206 = vmatpush1.msra.mxu0 %v644
    %2207 = vmatprep.subr.mxu0 %v651
    %2208 = vmatpush1.msra.mxu0 %v650
    %2209 = vmatprep.subr.mxu0 %v657
    %2210 = vmatpush1.msra.mxu0 %v656
    %2211 = vmatprep.subr.mxu0 %v663
    %2212 = vmatpush1.msra.mxu0 %v662
    %2213 = vmatprep.subr.mxu0 %v669
    %2214 = vmatpush1.msra.mxu0 %v668
    %2215 = vmatprep.subr.mxu0 %v675
    %2216 = vmatpush1.msra.mxu0 %v674
    %2217 = vmatprep.subr.mxu0 %v681
    %2218 = vmatpush1.msra.mxu0 %v680
    %2219 = vmatprep.subr.mxu0 %v687
    %2220 = vmatpush1.msra.mxu0 %v686
    %2221 = vmatprep.subr.mxu0 %v693
    %2222 = vmatpush1.msra.mxu0 %v692
    %2223 = vmatprep.subr.mxu0 %v699
    %2224 = vmatpush1.msra.mxu0 %v698
    %2225 = vmatprep.subr.mxu0 %v705
    %2226 = vmatpush1.msra.mxu0 %v704
    %2227 = vmatprep.subr.mxu0 %v711
    %2228 = vmatpush1.msra.mxu0 %v710
    %2229 = vmatprep.subr.mxu0 %v717
    %2230 = vmatpush1.msra.mxu0 %v716
    %2231 = vmatprep.subr.mxu0 %v723
    %2232 = vmatpush1.msra.mxu0 %v722
    %2233 = vmatprep.subr.mxu0 %v729
    %2234 = vmatpush1.msra.mxu0 %v728
    %2235 = vmatprep.subr.mxu0 %v735
    %2236 = vmatpush1.msra.mxu0 %v734
    %2237 = vmatprep.subr.mxu0 %v741
    %2238 = vmatpush1.msra.mxu0 %v740
    %2239 = vmatprep.subr.mxu0 %v747
    %2240 = vmatpush1.msra.mxu0 %v746
    %2241 = vmatprep.subr.mxu0 %v753
    %2242 = vmatpush1.msra.mxu0 %v752
    %2243 = vmatprep.subr.mxu0 %v759
    %2244 = vmatpush1.msra.mxu0 %v758
    %2245 = vmatprep.subr.mxu0 %v765
    %2246 = vmatpush1.msra.mxu0 %v764
    %2247 = vmatprep.subr.mxu0 %v771
    %2248 = vmatpush1.msra.mxu0 %v770
    %2249 = vmatprep.subr.mxu0 %v777
    %2250 = vmatpush1.msra.mxu0 %v776
    %2251 = vmatprep.subr.mxu0 %v783
    %2252 = vmatpush1.msra.mxu0 %v782
    %2253 = vmatprep.subr.mxu0 %v789
    %2254 = vmatpush1.msra.mxu0 %v788
    %2255 = vmatprep.subr.mxu0 %v795
    %2256 = vmatpush1.msra.mxu0 %v794
    %2257 = vmatprep.mubr.f32.mxu0 %v2184
    %2258 = vmatmul.mubr.f32.gmra.mrb[0].mxu0 %v2180
    %v2259 = vpop.f32.mrb[0].mxu0
    %v2260 = vadd.f32 0.0, %v2259
    %v2261 = vpop.f32.mrb[0].mxu0
    %v2262 = vadd.f32 0.0, %v2261
    %2263 = vdwg.mxu0
    %2264 = vmatprep.subr.mxu0 %v611
    %2265 = vmatpush1.msra.mxu0 %v610
    %2266 = vmatprep.subr.mxu0 %v617
    %2267 = vmatpush1.msra.mxu0 %v616
    %2268 = vmatprep.subr.mxu0 %v623
    %2269 = vmatpush1.msra.mxu0 %v622
    %2270 = vmatprep.subr.mxu0 %v629
    %2271 = vmatpush1.msra.mxu0 %v628
    %2272 = vmatprep.subr.mxu0 %v635
    %2273 = vmatpush1.msra.mxu0 %v634
    %2274 = vmatprep.subr.mxu0 %v641
    %2275 = vmatpush1.msra.mxu0 %v640
    %2276 = vmatprep.subr.mxu0 %v647
    %2277 = vmatpush1.msra.mxu0 %v646
    %2278 = vmatprep.subr.mxu0 %v653
    %2279 = vmatpush1.msra.mxu0 %v652
    %2280 = vmatprep.subr.mxu0 %v659
    %2281 = vmatpush1.msra.mxu0 %v658
    %2282 = vmatprep.subr.mxu0 %v665
    %2283 = vmatpush1.msra.mxu0 %v664
    %2284 = vmatprep.subr.mxu0 %v671
    %2285 = vmatpush1.msra.mxu0 %v670
    %2286 = vmatprep.subr.mxu0 %v677
    %2287 = vmatpush1.msra.mxu0 %v676
    %2288 = vmatprep.subr.mxu0 %v683
    %2289 = vmatpush1.msra.mxu0 %v682
    %2290 = vmatprep.subr.mxu0 %v689
    %2291 = vmatpush1.msra.mxu0 %v688
    %2292 = vmatprep.subr.mxu0 %v695
    %2293 = vmatpush1.msra.mxu0 %v694
    %2294 = vmatprep.subr.mxu0 %v701
    %2295 = vmatpush1.msra.mxu0 %v700
    %2296 = vmatprep.subr.mxu0 %v707
    %2297 = vmatpush1.msra.mxu0 %v706
    %2298 = vmatprep.subr.mxu0 %v713
    %2299 = vmatpush1.msra.mxu0 %v712
    %2300 = vmatprep.subr.mxu0 %v719
    %2301 = vmatpush1.msra.mxu0 %v718
    %2302 = vmatprep.subr.mxu0 %v725
    %2303 = vmatpush1.msra.mxu0 %v724
    %2304 = vmatprep.subr.mxu0 %v731
    %2305 = vmatpush1.msra.mxu0 %v730
    %2306 = vmatprep.subr.mxu0 %v737
    %2307 = vmatpush1.msra.mxu0 %v736
    %2308 = vmatprep.subr.mxu0 %v743
    %2309 = vmatpush1.msra.mxu0 %v742
    %2310 = vmatprep.subr.mxu0 %v749
    %2311 = vmatpush1.msra.mxu0 %v748
    %2312 = vmatprep.subr.mxu0 %v755
    %2313 = vmatpush1.msra.mxu0 %v754
    %2314 = vmatprep.subr.mxu0 %v761
    %2315 = vmatpush1.msra.mxu0 %v760
    %2316 = vmatprep.subr.mxu0 %v767
    %2317 = vmatpush1.msra.mxu0 %v766
    %2318 = vmatprep.subr.mxu0 %v773
    %2319 = vmatpush1.msra.mxu0 %v772
    %2320 = vmatprep.subr.mxu0 %v779
    %2321 = vmatpush1.msra.mxu0 %v778
    %2322 = vmatprep.subr.mxu0 %v785
    %2323 = vmatpush1.msra.mxu0 %v784
    %2324 = vmatprep.subr.mxu0 %v791
    %2325 = vmatpush1.msra.mxu0 %v790
    %2326 = vmatprep.subr.mxu0 %v797
    %2327 = vmatpush1.msra.mxu0 %v796
    %2328 = vmatprep.mubr.f32.mxu0 %v2184
    %2329 = vmatmul.mubr.f32.gmra.mrb[0].mxu0 %v2180
    %v2330 = vpop.f32.mrb[0].mxu0
    %v2331 = vadd.f32 0.0, %v2330
    %v2332 = vpop.f32.mrb[0].mxu0
    %v2333 = vadd.f32 0.0, %v2332
    %2334 = vdwg.mxu0
    %2335 = vmatprep.subr.mxu0 %v613
    %2336 = vmatpush1.msra.mxu0 %v612
    %2337 = vmatprep.subr.mxu0 %v619
    %2338 = vmatpush1.msra.mxu0 %v618
    %2339 = vmatprep.subr.mxu0 %v625
    %2340 = vmatpush1.msra.mxu0 %v624
    %2341 = vmatprep.subr.mxu0 %v631
    %2342 = vmatpush1.msra.mxu0 %v630
    %2343 = vmatprep.subr.mxu0 %v637
    %2344 = vmatpush1.msra.mxu0 %v636
    %2345 = vmatprep.subr.mxu0 %v643
    %2346 = vmatpush1.msra.mxu0 %v642
    %2347 = vmatprep.subr.mxu0 %v649
    %2348 = vmatpush1.msra.mxu0 %v648
    %2349 = vmatprep.subr.mxu0 %v655
    %2350 = vmatpush1.msra.mxu0 %v654
    %2351 = vmatprep.subr.mxu0 %v661
    %2352 = vmatpush1.msra.mxu0 %v660
    %2353 = vmatprep.subr.mxu0 %v667
    %2354 = vmatpush1.msra.mxu0 %v666
    %2355 = vmatprep.subr.mxu0 %v673
    %2356 = vmatpush1.msra.mxu0 %v672
    %2357 = vmatprep.subr.mxu0 %v679
    %2358 = vmatpush1.msra.mxu0 %v678
    %2359 = vmatprep.subr.mxu0 %v685
    %2360 = vmatpush1.msra.mxu0 %v684
    %2361 = vmatprep.subr.mxu0 %v691
    %2362 = vmatpush1.msra.mxu0 %v690
    %2363 = vmatprep.subr.mxu0 %v697
    %2364 = vmatpush1.msra.mxu0 %v696
    %2365 = vmatprep.subr.mxu0 %v703
    %2366 = vmatpush1.msra.mxu0 %v702
    %2367 = vmatprep.subr.mxu0 %v709
    %2368 = vmatpush1.msra.mxu0 %v708
    %2369 = vmatprep.subr.mxu0 %v715
    %2370 = vmatpush1.msra.mxu0 %v714
    %2371 = vmatprep.subr.mxu0 %v721
    %2372 = vmatpush1.msra.mxu0 %v720
    %2373 = vmatprep.subr.mxu0 %v727
    %2374 = vmatpush1.msra.mxu0 %v726
    %2375 = vmatprep.subr.mxu0 %v733
    %2376 = vmatpush1.msra.mxu0 %v732
    %2377 = vmatprep.subr.mxu0 %v739
    %2378 = vmatpush1.msra.mxu0 %v738
    %2379 = vmatprep.subr.mxu0 %v745
    %2380 = vmatpush1.msra.mxu0 %v744
    %2381 = vmatprep.subr.mxu0 %v751
    %2382 = vmatpush1.msra.mxu0 %v750
    %2383 = vmatprep.subr.mxu0 %v757
    %2384 = vmatpush1.msra.mxu0 %v756
    %2385 = vmatprep.subr.mxu0 %v763
    %2386 = vmatpush1.msra.mxu0 %v762
    %2387 = vmatprep.subr.mxu0 %v769
    %2388 = vmatpush1.msra.mxu0 %v768
    %2389 = vmatprep.subr.mxu0 %v775
    %2390 = vmatpush1.msra.mxu0 %v774
    %2391 = vmatprep.subr.mxu0 %v781
    %2392 = vmatpush1.msra.mxu0 %v780
    %2393 = vmatprep.subr.mxu0 %v787
    %2394 = vmatpush1.msra.mxu0 %v786
    %2395 = vmatprep.subr.mxu0 %v793
    %2396 = vmatpush1.msra.mxu0 %v792
    %2397 = vmatprep.subr.mxu0 %v799
    %2398 = vmatpush1.msra.mxu0 %v798
    %2399 = vmatprep.mubr.f32.mxu0 %v2184
    %2400 = vmatmul.mubr.f32.gmra.mrb[0].mxu0 %v2180
    %v2401 = vpop.f32.mrb[0].mxu0
    %v2402 = vadd.f32 0.0, %v2401
    %v2403 = vpop.f32.mrb[0].mxu0
    %v2404 = vadd.f32 0.0, %v2403
    %2405 = vdwg.mxu0
    %v2406 = vadd.f32 %v2187, %v2260
    %v2407 = vxor.u32 %v2406, 2147483648
    %v2408 = vmul.f32 %v2407, 1.442695
    %v2409 = vpow.pop %v2408
    %v2410 = vadd.f32 %v2409, 1.0
    %v2411 = vrcp.pop %v2410
    %v2412 = vmul.f32 1.0, %v2411
    %v2413 = vadd.f32 %v2188, %v2262
    %v2414 = vxor.u32 %v2413, 2147483648
    %v2415 = vmul.f32 %v2414, 1.442695
    %v2416 = vpow.pop %v2415
    %v2417 = vadd.f32 %v2416, 1.0
    %v2418 = vrcp.pop %v2417
    %v2419 = vmul.f32 1.0, %v2418
    %v2420 = vadd.f32 %v2331, %v805
    %v2421 = vmul.f32 %v2412, %v2420
    %v2422 = vadd.f32 %v2189, %v2421
    %v2423 = vtanh.pop %v2422
    %v2424 = vadd.f32 %v2190, %v2333
    %v2425 = vxor.u32 %v2424, 2147483648
    %v2426 = vmul.f32 %v2425, 1.442695
    %v2427 = vpow.pop %v2426
    %v2428 = vadd.f32 %v2427, 1.0
    %v2429 = vrcp.pop %v2428
    %v2430 = vmul.f32 1.0, %v2429
    %v2431 = vadd.f32 %v2191, %v2402
    %v2432 = vxor.u32 %v2431, 2147483648
    %v2433 = vmul.f32 %v2432, 1.442695
    %v2434 = vpow.pop %v2433
    %v2435 = vadd.f32 %v2434, 1.0
    %v2436 = vrcp.pop %v2435
    %v2437 = vmul.f32 1.0, %v2436
    %v2438 = vadd.f32 %v2404, %v812
    %v2439 = vmul.f32 %v2430, %v2438
    %v2440 = vadd.f32 %v2192, %v2439
    %v2441 = vtanh.pop %v2440
    %v2442 = vsub.f32 1.0, %v2419
    %v2443 = vmul.f32 %v2442, %v2423
    %v2444 = vmul.f32 %v2419, %v2180
    %v2445 = vadd.f32 %v2443, %v2444
    %v2446 = vsub.f32 1.0, %v2437
    %v2447 = vmul.f32 %v2446, %v2441
    %v2448 = vmul.f32 %v2437, %v2184
    %v2449 = vadd.f32 %v2447, %v2448
    %2450 = vst [vmem:[%s1643] sm:$0xff] %v2445
    %2451 = vst [vmem:[%s1639 + $0x8] sm:$0xff] %v2449
    %v2452 = vld [vmem:[%s1099] sm:$0xff]
    %v2453 = vld [vmem:[%s1099 + $0x8] sm:$0xff]
    %v2454 = vld [vmem:[%s1099 + $0x10] sm:$0xff]
    %v2455 = vld [vmem:[%s1093 + $0x18] sm:$0xff]
    %v2456 = vld [vmem:[%s1093 + $0x20] sm:$0xff]
    %v2457 = vld [vmem:[%s1093 + $0x28] sm:$0xff]
    %2458 = vmatprep.subr.mxu0 %v609
    %2459 = vmatpush1.msra.mxu0 %v608
    %2460 = vmatprep.subr.mxu0 %v615
    %2461 = vmatpush1.msra.mxu0 %v614
    %2462 = vmatprep.subr.mxu0 %v621
    %2463 = vmatpush1.msra.mxu0 %v620
    %2464 = vmatprep.subr.mxu0 %v627
    %2465 = vmatpush1.msra.mxu0 %v626
    %2466 = vmatprep.subr.mxu0 %v633
    %2467 = vmatpush1.msra.mxu0 %v632
    %2468 = vmatprep.subr.mxu0 %v639
    %2469 = vmatpush1.msra.mxu0 %v638
    %2470 = vmatprep.subr.mxu0 %v645
    %2471 = vmatpush1.msra.mxu0 %v644
    %2472 = vmatprep.subr.mxu0 %v651
    %2473 = vmatpush1.msra.mxu0 %v650
    %2474 = vmatprep.subr.mxu0 %v657
    %2475 = vmatpush1.msra.mxu0 %v656
    %2476 = vmatprep.subr.mxu0 %v663
    %2477 = vmatpush1.msra.mxu0 %v662
    %2478 = vmatprep.subr.mxu0 %v669
    %2479 = vmatpush1.msra.mxu0 %v668
    %2480 = vmatprep.subr.mxu0 %v675
    %2481 = vmatpush1.msra.mxu0 %v674
    %2482 = vmatprep.subr.mxu0 %v681
    %2483 = vmatpush1.msra.mxu0 %v680
    %2484 = vmatprep.subr.mxu0 %v687
    %2485 = vmatpush1.msra.mxu0 %v686
    %2486 = vmatprep.subr.mxu0 %v693
    %2487 = vmatpush1.msra.mxu0 %v692
    %2488 = vmatprep.subr.mxu0 %v699
    %2489 = vmatpush1.msra.mxu0 %v698
    %2490 = vmatprep.subr.mxu0 %v705
    %2491 = vmatpush1.msra.mxu0 %v704
    %2492 = vmatprep.subr.mxu0 %v711
    %2493 = vmatpush1.msra.mxu0 %v710
    %2494 = vmatprep.subr.mxu0 %v717
    %2495 = vmatpush1.msra.mxu0 %v716
    %2496 = vmatprep.subr.mxu0 %v723
    %2497 = vmatpush1.msra.mxu0 %v722
    %2498 = vmatprep.subr.mxu0 %v729
    %2499 = vmatpush1.msra.mxu0 %v728
    %2500 = vmatprep.subr.mxu0 %v735
    %2501 = vmatpush1.msra.mxu0 %v734
    %2502 = vmatprep.subr.mxu0 %v741
    %2503 = vmatpush1.msra.mxu0 %v740
    %2504 = vmatprep.subr.mxu0 %v747
    %2505 = vmatpush1.msra.mxu0 %v746
    %2506 = vmatprep.subr.mxu0 %v753
    %2507 = vmatpush1.msra.mxu0 %v752
    %2508 = vmatprep.subr.mxu0 %v759
    %2509 = vmatpush1.msra.mxu0 %v758
    %2510 = vmatprep.subr.mxu0 %v765
    %2511 = vmatpush1.msra.mxu0 %v764
    %2512 = vmatprep.subr.mxu0 %v771
    %2513 = vmatpush1.msra.mxu0 %v770
    %2514 = vmatprep.subr.mxu0 %v777
    %2515 = vmatpush1.msra.mxu0 %v776
    %2516 = vmatprep.subr.mxu0 %v783
    %2517 = vmatpush1.msra.mxu0 %v782
    %2518 = vmatprep.subr.mxu0 %v789
    %2519 = vmatpush1.msra.mxu0 %v788
    %2520 = vmatprep.subr.mxu0 %v795
    %2521 = vmatpush1.msra.mxu0 %v794
    %2522 = vmatprep.mubr.f32.mxu0 %v2449
    %2523 = vmatmul.mubr.f32.gmra.mrb[0].mxu0 %v2445
    %v2524 = vpop.f32.mrb[0].mxu0
    %v2525 = vadd.f32 0.0, %v2524
    %v2526 = vpop.f32.mrb[0].mxu0
    %v2527 = vadd.f32 0.0, %v2526
    %2528 = vdwg.mxu0
    %2529 = vmatprep.subr.mxu0 %v611
    %2530 = vmatpush1.msra.mxu0 %v610
    %2531 = vmatprep.subr.mxu0 %v617
    %2532 = vmatpush1.msra.mxu0 %v616
    %2533 = vmatprep.subr.mxu0 %v623
    %2534 = vmatpush1.msra.mxu0 %v622
    %2535 = vmatprep.subr.mxu0 %v629
    %2536 = vmatpush1.msra.mxu0 %v628
    %2537 = vmatprep.subr.mxu0 %v635
    %2538 = vmatpush1.msra.mxu0 %v634
    %2539 = vmatprep.subr.mxu0 %v641
    %2540 = vmatpush1.msra.mxu0 %v640
    %2541 = vmatprep.subr.mxu0 %v647
    %2542 = vmatpush1.msra.mxu0 %v646
    %2543 = vmatprep.subr.mxu0 %v653
    %2544 = vmatpush1.msra.mxu0 %v652
    %2545 = vmatprep.subr.mxu0 %v659
    %2546 = vmatpush1.msra.mxu0 %v658
    %2547 = vmatprep.subr.mxu0 %v665
    %2548 = vmatpush1.msra.mxu0 %v664
    %2549 = vmatprep.subr.mxu0 %v671
    %2550 = vmatpush1.msra.mxu0 %v670
    %2551 = vmatprep.subr.mxu0 %v677
    %2552 = vmatpush1.msra.mxu0 %v676
    %2553 = vmatprep.subr.mxu0 %v683
    %2554 = vmatpush1.msra.mxu0 %v682
    %2555 = vmatprep.subr.mxu0 %v689
    %2556 = vmatpush1.msra.mxu0 %v688
    %2557 = vmatprep.subr.mxu0 %v695
    %2558 = vmatpush1.msra.mxu0 %v694
    %2559 = vmatprep.subr.mxu0 %v701
    %2560 = vmatpush1.msra.mxu0 %v700
    %2561 = vmatprep.subr.mxu0 %v707
    %2562 = vmatpush1.msra.mxu0 %v706
    %2563 = vmatprep.subr.mxu0 %v713
    %2564 = vmatpush1.msra.mxu0 %v712
    %2565 = vmatprep.subr.mxu0 %v719
    %2566 = vmatpush1.msra.mxu0 %v718
    %2567 = vmatprep.subr.mxu0 %v725
    %2568 = vmatpush1.msra.mxu0 %v724
    %2569 = vmatprep.subr.mxu0 %v731
    %2570 = vmatpush1.msra.mxu0 %v730
    %2571 = vmatprep.subr.mxu0 %v737
    %2572 = vmatpush1.msra.mxu0 %v736
    %2573 = vmatprep.subr.mxu0 %v743
    %2574 = vmatpush1.msra.mxu0 %v742
    %2575 = vmatprep.subr.mxu0 %v749
    %2576 = vmatpush1.msra.mxu0 %v748
    %2577 = vmatprep.subr.mxu0 %v755
    %2578 = vmatpush1.msra.mxu0 %v754
    %2579 = vmatprep.subr.mxu0 %v761
    %2580 = vmatpush1.msra.mxu0 %v760
    %2581 = vmatprep.subr.mxu0 %v767
    %2582 = vmatpush1.msra.mxu0 %v766
    %2583 = vmatprep.subr.mxu0 %v773
    %2584 = vmatpush1.msra.mxu0 %v772
    %2585 = vmatprep.subr.mxu0 %v779
    %2586 = vmatpush1.msra.mxu0 %v778
    %2587 = vmatprep.subr.mxu0 %v785
    %2588 = vmatpush1.msra.mxu0 %v784
    %2589 = vmatprep.subr.mxu0 %v791
    %2590 = vmatpush1.msra.mxu0 %v790
    %2591 = vmatprep.subr.mxu0 %v797
    %2592 = vmatpush1.msra.mxu0 %v796
    %2593 = vmatprep.mubr.f32.mxu0 %v2449
    %2594 = vmatmul.mubr.f32.gmra.mrb[0].mxu0 %v2445
    %v2595 = vpop.f32.mrb[0].mxu0
    %v2596 = vadd.f32 0.0, %v2595
    %v2597 = vpop.f32.mrb[0].mxu0
    %v2598 = vadd.f32 0.0, %v2597
    %2599 = vdwg.mxu0
    %2600 = vmatprep.subr.mxu0 %v613
    %2601 = vmatpush1.msra.mxu0 %v612
    %2602 = vmatprep.subr.mxu0 %v619
    %2603 = vmatpush1.msra.mxu0 %v618
    %2604 = vmatprep.subr.mxu0 %v625
    %2605 = vmatpush1.msra.mxu0 %v624
    %2606 = vmatprep.subr.mxu0 %v631
    %2607 = vmatpush1.msra.mxu0 %v630
    %2608 = vmatprep.subr.mxu0 %v637
    %2609 = vmatpush1.msra.mxu0 %v636
    %2610 = vmatprep.subr.mxu0 %v643
    %2611 = vmatpush1.msra.mxu0 %v642
    %2612 = vmatprep.subr.mxu0 %v649
    %2613 = vmatpush1.msra.mxu0 %v648
    %2614 = vmatprep.subr.mxu0 %v655
    %2615 = vmatpush1.msra.mxu0 %v654
    %2616 = vmatprep.subr.mxu0 %v661
    %2617 = vmatpush1.msra.mxu0 %v660
    %2618 = vmatprep.subr.mxu0 %v667
    %2619 = vmatpush1.msra.mxu0 %v666
    %2620 = vmatprep.subr.mxu0 %v673
    %2621 = vmatpush1.msra.mxu0 %v672
    %2622 = vmatprep.subr.mxu0 %v679
    %2623 = vmatpush1.msra.mxu0 %v678
    %2624 = vmatprep.subr.mxu0 %v685
    %2625 = vmatpush1.msra.mxu0 %v684
    %2626 = vmatprep.subr.mxu0 %v691
    %2627 = vmatpush1.msra.mxu0 %v690
    %2628 = vmatprep.subr.mxu0 %v697
    %2629 = vmatpush1.msra.mxu0 %v696
    %2630 = vmatprep.subr.mxu0 %v703
    %2631 = vmatpush1.msra.mxu0 %v702
    %2632 = vmatprep.subr.mxu0 %v709
    %2633 = vmatpush1.msra.mxu0 %v708
    %2634 = vmatprep.subr.mxu0 %v715
    %2635 = vmatpush1.msra.mxu0 %v714
    %2636 = vmatprep.subr.mxu0 %v721
    %2637 = vmatpush1.msra.mxu0 %v720
    %2638 = vmatprep.subr.mxu0 %v727
    %2639 = vmatpush1.msra.mxu0 %v726
    %2640 = vmatprep.subr.mxu0 %v733
    %2641 = vmatpush1.msra.mxu0 %v732
    %2642 = vmatprep.subr.mxu0 %v739
    %2643 = vmatpush1.msra.mxu0 %v738
    %2644 = vmatprep.subr.mxu0 %v745
    %2645 = vmatpush1.msra.mxu0 %v744
    %2646 = vmatprep.subr.mxu0 %v751
    %2647 = vmatpush1.msra.mxu0 %v750
    %2648 = vmatprep.subr.mxu0 %v757
    %2649 = vmatpush1.msra.mxu0 %v756
    %2650 = vmatprep.subr.mxu0 %v763
    %2651 = vmatpush1.msra.mxu0 %v762
    %2652 = vmatprep.subr.mxu0 %v769
    %2653 = vmatpush1.msra.mxu0 %v768
    %2654 = vmatprep.subr.mxu0 %v775
    %2655 = vmatpush1.msra.mxu0 %v774
    %2656 = vmatprep.subr.mxu0 %v781
    %2657 = vmatpush1.msra.mxu0 %v780
    %2658 = vmatprep.subr.mxu0 %v787
    %2659 = vmatpush1.msra.mxu0 %v786
    %2660 = vmatprep.subr.mxu0 %v793
    %2661 = vmatpush1.msra.mxu0 %v792
    %2662 = vmatprep.subr.mxu0 %v799
    %2663 = vmatpush1.msra.mxu0 %v798
    %2664 = vmatprep.mubr.f32.mxu0 %v2449
    %2665 = vmatmul.mubr.f32.gmra.mrb[0].mxu0 %v2445
    %v2666 = vpop.f32.mrb[0].mxu0
    %v2667 = vadd.f32 0.0, %v2666
    %v2668 = vpop.f32.mrb[0].mxu0
    %v2669 = vadd.f32 0.0, %v2668
    %2670 = vdwg.mxu0
    %v2671 = vadd.f32 %v2452, %v2525
    %v2672 = vxor.u32 %v2671, 2147483648
    %v2673 = vmul.f32 %v2672, 1.442695
    %v2674 = vpow.pop %v2673
    %v2675 = vadd.f32 %v2674, 1.0
    %v2676 = vrcp.pop %v2675
    %v2677 = vmul.f32 1.0, %v2676
    %v2678 = vadd.f32 %v2453, %v2527
    %v2679 = vxor.u32 %v2678, 2147483648
    %v2680 = vmul.f32 %v2679, 1.442695
    %v2681 = vpow.pop %v2680
    %v2682 = vadd.f32 %v2681, 1.0
    %v2683 = vrcp.pop %v2682
    %v2684 = vmul.f32 1.0, %v2683
    %v2685 = vadd.f32 %v2596, %v805
    %v2686 = vmul.f32 %v2677, %v2685
    %v2687 = vadd.f32 %v2454, %v2686
    %v2688 = vtanh.pop %v2687
    %v2689 = vadd.f32 %v2455, %v2598
    %v2690 = vxor.u32 %v2689, 2147483648
    %v2691 = vmul.f32 %v2690, 1.442695
    %v2692 = vpow.pop %v2691
    %v2693 = vadd.f32 %v2692, 1.0
    %v2694 = vrcp.pop %v2693
    %v2695 = vmul.f32 1.0, %v2694
    %v2696 = vadd.f32 %v2456, %v2667
    %v2697 = vxor.u32 %v2696, 2147483648
    %v2698 = vmul.f32 %v2697, 1.442695
    %v2699 = vpow.pop %v2698
    %v2700 = vadd.f32 %v2699, 1.0
    %v2701 = vrcp.pop %v2700
    %v2702 = vmul.f32 1.0, %v2701
    %v2703 = vadd.f32 %v2669, %v812
    %v2704 = vmul.f32 %v2695, %v2703
    %v2705 = vadd.f32 %v2457, %v2704
    %v2706 = vtanh.pop %v2705
    %v2707 = vsub.f32 1.0, %v2684
    %v2708 = vmul.f32 %v2707, %v2688
    %v2709 = vmul.f32 %v2684, %v2445
    %v2710 = vadd.f32 %v2708, %v2709
    %v2711 = vsub.f32 1.0, %v2702
    %v2712 = vmul.f32 %v2711, %v2706
    %v2713 = vmul.f32 %v2702, %v2449
    %v2714 = vadd.f32 %v2712, %v2713
    %2715 = vst [vmem:[%s1366] sm:$0xff] %v2710
    %2716 = vst [vmem:[%s1362 + $0x8] sm:$0xff] %v2714
    %v2717 = vld [vmem:[%s822] sm:$0xff]
    %v2718 = vld [vmem:[%s822 + $0x8] sm:$0xff]
    %v2719 = vld [vmem:[%s822 + $0x10] sm:$0xff]
    %v2720 = vld [vmem:[%s816 + $0x18] sm:$0xff]
    %v2721 = vld [vmem:[%s816 + $0x20] sm:$0xff]
    %v2722 = vld [vmem:[%s816 + $0x28] sm:$0xff]
    %2723 = vmatprep.subr.mxu0 %v609
    %2724 = vmatpush1.msra.mxu0 %v608
    %2725 = vmatprep.subr.mxu0 %v615
    %2726 = vmatpush1.msra.mxu0 %v614
    %2727 = vmatprep.subr.mxu0 %v621
    %2728 = vmatpush1.msra.mxu0 %v620
    %2729 = vmatprep.subr.mxu0 %v627
    %2730 = vmatpush1.msra.mxu0 %v626
    %2731 = vmatprep.subr.mxu0 %v633
    %2732 = vmatpush1.msra.mxu0 %v632
    %2733 = vmatprep.subr.mxu0 %v639
    %2734 = vmatpush1.msra.mxu0 %v638
    %2735 = vmatprep.subr.mxu0 %v645
    %2736 = vmatpush1.msra.mxu0 %v644
    %2737 = vmatprep.subr.mxu0 %v651
    %2738 = vmatpush1.msra.mxu0 %v650
    %2739 = vmatprep.subr.mxu0 %v657
    %2740 = vmatpush1.msra.mxu0 %v656
    %2741 = vmatprep.subr.mxu0 %v663
    %2742 = vmatpush1.msra.mxu0 %v662
    %2743 = vmatprep.subr.mxu0 %v669
    %2744 = vmatpush1.msra.mxu0 %v668
    %2745 = vmatprep.subr.mxu0 %v675
    %2746 = vmatpush1.msra.mxu0 %v674
    %2747 = vmatprep.subr.mxu0 %v681
    %2748 = vmatpush1.msra.mxu0 %v680
    %2749 = vmatprep.subr.mxu0 %v687
    %2750 = vmatpush1.msra.mxu0 %v686
    %2751 = vmatprep.subr.mxu0 %v693
    %2752 = vmatpush1.msra.mxu0 %v692
    %2753 = vmatprep.subr.mxu0 %v699
    %2754 = vmatpush1.msra.mxu0 %v698
    %2755 = vmatprep.subr.mxu0 %v705
    %2756 = vmatpush1.msra.mxu0 %v704
    %2757 = vmatprep.subr.mxu0 %v711
    %2758 = vmatpush1.msra.mxu0 %v710
    %2759 = vmatprep.subr.mxu0 %v717
    %2760 = vmatpush1.msra.mxu0 %v716
    %2761 = vmatprep.subr.mxu0 %v723
    %2762 = vmatpush1.msra.mxu0 %v722
    %2763 = vmatprep.subr.mxu0 %v729
    %2764 = vmatpush1.msra.mxu0 %v728
    %2765 = vmatprep.subr.mxu0 %v735
    %2766 = vmatpush1.msra.mxu0 %v734
    %2767 = vmatprep.subr.mxu0 %v741
    %2768 = vmatpush1.msra.mxu0 %v740
    %2769 = vmatprep.subr.mxu0 %v747
    %2770 = vmatpush1.msra.mxu0 %v746
    %2771 = vmatprep.subr.mxu0 %v753
    %2772 = vmatpush1.msra.mxu0 %v752
    %2773 = vmatprep.subr.mxu0 %v759
    %2774 = vmatpush1.msra.mxu0 %v758
    %2775 = vmatprep.subr.mxu0 %v765
    %2776 = vmatpush1.msra.mxu0 %v764
    %2777 = vmatprep.subr.mxu0 %v771
    %2778 = vmatpush1.msra.mxu0 %v770
    %2779 = vmatprep.subr.mxu0 %v777
    %2780 = vmatpush1.msra.mxu0 %v776
    %2781 = vmatprep.subr.mxu0 %v783
    %2782 = vmatpush1.msra.mxu0 %v782
    %2783 = vmatprep.subr.mxu0 %v789
    %2784 = vmatpush1.msra.mxu0 %v788
    %2785 = vmatprep.subr.mxu0 %v795
    %2786 = vmatpush1.msra.mxu0 %v794
    %2787 = vmatprep.mubr.f32.mxu0 %v2714
    %2788 = vmatmul.mubr.f32.gmra.mrb[0].mxu0 %v2710
    %v2789 = vpop.f32.mrb[0].mxu0
    %v2790 = vadd.f32 0.0, %v2789
    %v2791 = vpop.f32.mrb[0].mxu0
    %v2792 = vadd.f32 0.0, %v2791
    %2793 = vdwg.mxu0
    %2794 = vmatprep.subr.mxu0 %v611
    %2795 = vmatpush1.msra.mxu0 %v610
    %2796 = vmatprep.subr.mxu0 %v617
    %2797 = vmatpush1.msra.mxu0 %v616
    %2798 = vmatprep.subr.mxu0 %v623
    %2799 = vmatpush1.msra.mxu0 %v622
    %2800 = vmatprep.subr.mxu0 %v629
    %2801 = vmatpush1.msra.mxu0 %v628
    %2802 = vmatprep.subr.mxu0 %v635
    %2803 = vmatpush1.msra.mxu0 %v634
    %2804 = vmatprep.subr.mxu0 %v641
    %2805 = vmatpush1.msra.mxu0 %v640
    %2806 = vmatprep.subr.mxu0 %v647
    %2807 = vmatpush1.msra.mxu0 %v646
    %2808 = vmatprep.subr.mxu0 %v653
    %2809 = vmatpush1.msra.mxu0 %v652
    %2810 = vmatprep.subr.mxu0 %v659
    %2811 = vmatpush1.msra.mxu0 %v658
    %2812 = vmatprep.subr.mxu0 %v665
    %2813 = vmatpush1.msra.mxu0 %v664
    %2814 = vmatprep.subr.mxu0 %v671
    %2815 = vmatpush1.msra.mxu0 %v670
    %2816 = vmatprep.subr.mxu0 %v677
    %2817 = vmatpush1.msra.mxu0 %v676
    %2818 = vmatprep.subr.mxu0 %v683
    %2819 = vmatpush1.msra.mxu0 %v682
    %2820 = vmatprep.subr.mxu0 %v689
    %2821 = vmatpush1.msra.mxu0 %v688
    %2822 = vmatprep.subr.mxu0 %v695
    %2823 = vmatpush1.msra.mxu0 %v694
    %2824 = vmatprep.subr.mxu0 %v701
    %2825 = vmatpush1.msra.mxu0 %v700
    %2826 = vmatprep.subr.mxu0 %v707
    %2827 = vmatpush1.msra.mxu0 %v706
    %2828 = vmatprep.subr.mxu0 %v713
    %2829 = vmatpush1.msra.mxu0 %v712
    %2830 = vmatprep.subr.mxu0 %v719
    %2831 = vmatpush1.msra.mxu0 %v718
    %2832 = vmatprep.subr.mxu0 %v725
    %2833 = vmatpush1.msra.mxu0 %v724
    %2834 = vmatprep.subr.mxu0 %v731
    %2835 = vmatpush1.msra.mxu0 %v730
    %2836 = vmatprep.subr.mxu0 %v737
    %2837 = vmatpush1.msra.mxu0 %v736
    %2838 = vmatprep.subr.mxu0 %v743
    %2839 = vmatpush1.msra.mxu0 %v742
    %2840 = vmatprep.subr.mxu0 %v749
    %2841 = vmatpush1.msra.mxu0 %v748
    %2842 = vmatprep.subr.mxu0 %v755
    %2843 = vmatpush1.msra.mxu0 %v754
    %2844 = vmatprep.subr.mxu0 %v761
    %2845 = vmatpush1.msra.mxu0 %v760
    %2846 = vmatprep.subr.mxu0 %v767
    %2847 = vmatpush1.msra.mxu0 %v766
    %2848 = vmatprep.subr.mxu0 %v773
    %2849 = vmatpush1.msra.mxu0 %v772
    %2850 = vmatprep.subr.mxu0 %v779
    %2851 = vmatpush1.msra.mxu0 %v778
    %2852 = vmatprep.subr.mxu0 %v785
    %2853 = vmatpush1.msra.mxu0 %v784
    %2854 = vmatprep.subr.mxu0 %v791
    %2855 = vmatpush1.msra.mxu0 %v790
    %2856 = vmatprep.subr.mxu0 %v797
    %2857 = vmatpush1.msra.mxu0 %v796
    %2858 = vmatprep.mubr.f32.mxu0 %v2714
    %2859 = vmatmul.mubr.f32.gmra.mrb[0].mxu0 %v2710
    %v2860 = vpop.f32.mrb[0].mxu0
    %v2861 = vadd.f32 0.0, %v2860
    %v2862 = vpop.f32.mrb[0].mxu0
    %v2863 = vadd.f32 0.0, %v2862
    %2864 = vdwg.mxu0
    %2865 = vmatprep.subr.mxu0 %v613
    %2866 = vmatpush1.msra.mxu0 %v612
    %2867 = vmatprep.subr.mxu0 %v619
    %2868 = vmatpush1.msra.mxu0 %v618
    %2869 = vmatprep.subr.mxu0 %v625
    %2870 = vmatpush1.msra.mxu0 %v624
    %2871 = vmatprep.subr.mxu0 %v631
    %2872 = vmatpush1.msra.mxu0 %v630
    %2873 = vmatprep.subr.mxu0 %v637
    %2874 = vmatpush1.msra.mxu0 %v636
    %2875 = vmatprep.subr.mxu0 %v643
    %2876 = vmatpush1.msra.mxu0 %v642
    %2877 = vmatprep.subr.mxu0 %v649
    %2878 = vmatpush1.msra.mxu0 %v648
    %2879 = vmatprep.subr.mxu0 %v655
    %2880 = vmatpush1.msra.mxu0 %v654
    %2881 = vmatprep.subr.mxu0 %v661
    %2882 = vmatpush1.msra.mxu0 %v660
    %2883 = vmatprep.subr.mxu0 %v667
    %2884 = vmatpush1.msra.mxu0 %v666
    %2885 = vmatprep.subr.mxu0 %v673
    %2886 = vmatpush1.msra.mxu0 %v672
    %2887 = vmatprep.subr.mxu0 %v679
    %2888 = vmatpush1.msra.mxu0 %v678
    %2889 = vmatprep.subr.mxu0 %v685
    %2890 = vmatpush1.msra.mxu0 %v684
    %2891 = vmatprep.subr.mxu0 %v691
    %2892 = vmatpush1.msra.mxu0 %v690
    %2893 = vmatprep.subr.mxu0 %v697
    %2894 = vmatpush1.msra.mxu0 %v696
    %2895 = vmatprep.subr.mxu0 %v703
    %2896 = vmatpush1.msra.mxu0 %v702
    %2897 = vmatprep.subr.mxu0 %v709
    %2898 = vmatpush1.msra.mxu0 %v708
    %2899 = vmatprep.subr.mxu0 %v715
    %2900 = vmatpush1.msra.mxu0 %v714
    %2901 = vmatprep.subr.mxu0 %v721
    %2902 = vmatpush1.msra.mxu0 %v720
    %2903 = vmatprep.subr.mxu0 %v727
    %2904 = vmatpush1.msra.mxu0 %v726
    %2905 = vmatprep.subr.mxu0 %v733
    %2906 = vmatpush1.msra.mxu0 %v732
    %2907 = vmatprep.subr.mxu0 %v739
    %2908 = vmatpush1.msra.mxu0 %v738
    %2909 = vmatprep.subr.mxu0 %v745
    %2910 = vmatpush1.msra.mxu0 %v744
    %2911 = vmatprep.subr.mxu0 %v751
    %2912 = vmatpush1.msra.mxu0 %v750
    %2913 = vmatprep.subr.mxu0 %v757
    %2914 = vmatpush1.msra.mxu0 %v756
    %2915 = vmatprep.subr.mxu0 %v763
    %2916 = vmatpush1.msra.mxu0 %v762
    %2917 = vmatprep.subr.mxu0 %v769
    %2918 = vmatpush1.msra.mxu0 %v768
    %2919 = vmatprep.subr.mxu0 %v775
    %2920 = vmatpush1.msra.mxu0 %v774
    %2921 = vmatprep.subr.mxu0 %v781
    %2922 = vmatpush1.msra.mxu0 %v780
    %2923 = vmatprep.subr.mxu0 %v787
    %2924 = vmatpush1.msra.mxu0 %v786
    %2925 = vmatprep.subr.mxu0 %v793
    %2926 = vmatpush1.msra.mxu0 %v792
    %2927 = vmatprep.subr.mxu0 %v799
    %2928 = vmatpush1.msra.mxu0 %v798
    %2929 = vmatprep.mubr.f32.mxu0 %v2714
    %2930 = vmatmul.mubr.f32.gmra.mrb[0].mxu0 %v2710
    %v2931 = vpop.f32.mrb[0].mxu0
    %v2932 = vadd.f32 0.0, %v2931
    %v2933 = vpop.f32.mrb[0].mxu0
    %v2934 = vadd.f32 0.0, %v2933
    %2935 = vdwg.mxu0
    %v2936 = vadd.f32 %v2717, %v2790
    %v2937 = vxor.u32 %v2936, 2147483648
    %v2938 = vmul.f32 %v2937, 1.442695
    %v2939 = vpow.pop %v2938
    %v2940 = vadd.f32 %v2939, 1.0
    %v2941 = vrcp.pop %v2940
    %v2942 = vmul.f32 1.0, %v2941
    %v2943 = vadd.f32 %v2718, %v2792
    %v2944 = vxor.u32 %v2943, 2147483648
    %v2945 = vmul.f32 %v2944, 1.442695
    %v2946 = vpow.pop %v2945
    %v2947 = vadd.f32 %v2946, 1.0
    %v2948 = vrcp.pop %v2947
    %v2949 = vmul.f32 1.0, %v2948
    %v2950 = vadd.f32 %v2861, %v805
    %v2951 = vmul.f32 %v2942, %v2950
    %v2952 = vadd.f32 %v2719, %v2951
    %v2953 = vtanh.pop %v2952
    %v2954 = vadd.f32 %v2720, %v2863
    %v2955 = vxor.u32 %v2954, 2147483648
    %v2956 = vmul.f32 %v2955, 1.442695
    %v2957 = vpow.pop %v2956
    %v2958 = vadd.f32 %v2957, 1.0
    %v2959 = vrcp.pop %v2958
    %v2960 = vmul.f32 1.0, %v2959
    %v2961 = vadd.f32 %v2721, %v2932
    %v2962 = vxor.u32 %v2961, 2147483648
    %v2963 = vmul.f32 %v2962, 1.442695
    %v2964 = vpow.pop %v2963
    %v2965 = vadd.f32 %v2964, 1.0
    %v2966 = vrcp.pop %v2965
    %v2967 = vmul.f32 1.0, %v2966
    %v2968 = vadd.f32 %v2934, %v812
    %v2969 = vmul.f32 %v2960, %v2968
    %v2970 = vadd.f32 %v2722, %v2969
    %v2971 = vtanh.pop %v2970
    %v2972 = vsub.f32 1.0, %v2949
    %v2973 = vmul.f32 %v2972, %v2953
    %v2974 = vmul.f32 %v2949, %v2710
    %v2975 = vadd.f32 %v2973, %v2974
    %v2976 = vsub.f32 1.0, %v2967
    %v2977 = vmul.f32 %v2976, %v2971
    %v2978 = vmul.f32 %v2967, %v2714
    %v2979 = vadd.f32 %v2977, %v2978
    %2980 = vst [vmem:[%s1089] sm:$0xff] %v2975
    %2981 = vst [vmem:[%s1085 + $0x8] sm:$0xff] %v2979
    %v2982 = vld [vmem:[#allocation3] sm:$0xff]
    %v2983 = vld [vmem:[#allocation3 + $0x8] sm:$0xff]
    %v2984 = vld [vmem:[#allocation3 + $0x10] sm:$0xff]
    %v2985 = vld [vmem:[#allocation3 + $0x18] sm:$0xff]
    %v2986 = vld [vmem:[#allocation3 + $0x20] sm:$0xff]
    %v2987 = vld [vmem:[#allocation3 + $0x28] sm:$0xff]
    %v2988 = vld [vmem:[#allocation3 + $0x30] sm:$0xff]
    %v2989 = vld [vmem:[#allocation3 + $0x38] sm:$0xff]
    %v2990 = vld [vmem:[#allocation3 + $0x40] sm:$0xff]
    %v2991 = vld [vmem:[#allocation3 + $0x48] sm:$0xff]
    %v2992 = vld [vmem:[#allocation3 + $0x50] sm:$0xff]
    %v2993 = vld [vmem:[#allocation3 + $0x58] sm:$0xff]
    %v2994 = vld [vmem:[#allocation3 + $0x60] sm:$0xff]
    %v2995 = vld [vmem:[#allocation3 + $0x68] sm:$0xff]
    %v2996 = vld [vmem:[#allocation3 + $0x70] sm:$0xff]
    %v2997 = vld [vmem:[#allocation3 + $0x78] sm:$0xff]
    %v2998 = vld [vmem:[#allocation10] sm:$0xff]
    %v2999 = vld [vmem:[#allocation10 + $0x8] sm:$0xff]
    %v3000 = vld [vmem:[#allocation10 + $0x10] sm:$0xff]
    %v3001 = vld [vmem:[#allocation10 + $0x18] sm:$0xff]
    %v3002 = vld [vmem:[#allocation10 + $0x20] sm:$0xff]
    %v3003 = vld [vmem:[#allocation10 + $0x28] sm:$0xff]
    %v3004 = vld [vmem:[#allocation10 + $0x30] sm:$0xff]
    %v3005 = vld [vmem:[#allocation10 + $0x38] sm:$0xff]
    %v3006 = vld [vmem:[#allocation10 + $0x40] sm:$0xff]
    %v3007 = vld [vmem:[#allocation10 + $0x48] sm:$0xff]
    %v3008 = vld [vmem:[#allocation10 + $0x50] sm:$0xff]
    %v3009 = vld [vmem:[#allocation10 + $0x58] sm:$0xff]
    %v3010 = vld [vmem:[#allocation10 + $0x60] sm:$0xff]
    %v3011 = vld [vmem:[#allocation10 + $0x68] sm:$0xff]
    %v3012 = vld [vmem:[#allocation10 + $0x70] sm:$0xff]
    %v3013 = vld [vmem:[#allocation10 + $0x78] sm:$0xff]
    %v3014 = vld [vmem:[#allocation10 + $0x80] sm:$0xff]
    %v3015 = vld [vmem:[#allocation10 + $0x88] sm:$0xff]
    %v3016 = vld [vmem:[#allocation10 + $0x90] sm:$0xff]
    %v3017 = vld [vmem:[#allocation10 + $0x98] sm:$0xff]
    %v3018 = vld [vmem:[#allocation10 + $0xa0] sm:$0xff]
    %v3019 = vld [vmem:[#allocation10 + $0xa8] sm:$0xff]
    %v3020 = vld [vmem:[#allocation10 + $0xb0] sm:$0xff]
    %v3021 = vld [vmem:[#allocation10 + $0xb8] sm:$0xff]
    %v3022 = vld [vmem:[#allocation10 + $0xc0] sm:$0xff]
    %v3023 = vld [vmem:[#allocation10 + $0xc8] sm:$0xff]
    %v3024 = vld [vmem:[#allocation10 + $0xd0] sm:$0xff]
    %v3025 = vld [vmem:[#allocation10 + $0xd8] sm:$0xff]
    %v3026 = vld [vmem:[#allocation10 + $0xe0] sm:$0xff]
    %v3027 = vld [vmem:[#allocation10 + $0xe8] sm:$0xff]
    %v3028 = vld [vmem:[#allocation10 + $0xf0] sm:$0xff]
    %v3029 = vld [vmem:[#allocation10 + $0xf8] sm:$0xff]
    %v3030 = vld [vmem:[%s7] sm:$0x1]
    %v3032 = vlaneseq
    %v3033 = vshrl.u32 %v3032, 7
    %v3034 = vsub.s32 0, %v3033
    %v3035 = vrot.slane %v3030, %v3034
    %3037 = vmatprep.subr.mxu0 0.0
    %3038 = vmatpush1.msra.mxu0 %v2998
    %3039 = vmatprep.subr.mxu0 0.0
    %3040 = vmatpush1.msra.mxu0 %v2999
    %3041 = vmatprep.subr.mxu0 0.0
    %3042 = vmatpush1.msra.mxu0 %v3000
    %3043 = vmatprep.subr.mxu0 0.0
    %3044 = vmatpush1.msra.mxu0 %v3001
    %3045 = vmatprep.subr.mxu0 0.0
    %3046 = vmatpush1.msra.mxu0 %v3002
    %3047 = vmatprep.subr.mxu0 0.0
    %3048 = vmatpush1.msra.mxu0 %v3003
    %3049 = vmatprep.subr.mxu0 0.0
    %3050 = vmatpush1.msra.mxu0 %v3004
    %3051 = vmatprep.subr.mxu0 0.0
    %3052 = vmatpush1.msra.mxu0 %v3005
    %3053 = vmatprep.subr.mxu0 0.0
    %3054 = vmatpush1.msra.mxu0 %v3006
    %3055 = vmatprep.subr.mxu0 0.0
    %3056 = vmatpush1.msra.mxu0 %v3007
    %3057 = vmatprep.subr.mxu0 0.0
    %3058 = vmatpush1.msra.mxu0 %v3008
    %3059 = vmatprep.subr.mxu0 0.0
    %3060 = vmatpush1.msra.mxu0 %v3009
    %3061 = vmatprep.subr.mxu0 0.0
    %3062 = vmatpush1.msra.mxu0 %v3010
    %3063 = vmatprep.subr.mxu0 0.0
    %3064 = vmatpush1.msra.mxu0 %v3011
    %3065 = vmatprep.subr.mxu0 0.0
    %3066 = vmatpush1.msra.mxu0 %v3012
    %3067 = vmatprep.subr.mxu0 0.0
    %3068 = vmatpush1.msra.mxu0 %v3013
    %3069 = vmatprep.subr.mxu0 0.0
    %3070 = vmatpush1.msra.mxu0 %v3014
    %3071 = vmatprep.subr.mxu0 0.0
    %3072 = vmatpush1.msra.mxu0 %v3015
    %3073 = vmatprep.subr.mxu0 0.0
    %3074 = vmatpush1.msra.mxu0 %v3016
    %3075 = vmatprep.subr.mxu0 0.0
    %3076 = vmatpush1.msra.mxu0 %v3017
    %3077 = vmatprep.subr.mxu0 0.0
    %3078 = vmatpush1.msra.mxu0 %v3018
    %3079 = vmatprep.subr.mxu0 0.0
    %3080 = vmatpush1.msra.mxu0 %v3019
    %3081 = vmatprep.subr.mxu0 0.0
    %3082 = vmatpush1.msra.mxu0 %v3020
    %3083 = vmatprep.subr.mxu0 0.0
    %3084 = vmatpush1.msra.mxu0 %v3021
    %3085 = vmatprep.subr.mxu0 0.0
    %3086 = vmatpush1.msra.mxu0 %v3022
    %3087 = vmatprep.subr.mxu0 0.0
    %3088 = vmatpush1.msra.mxu0 %v3023
    %3089 = vmatprep.subr.mxu0 0.0
    %3090 = vmatpush1.msra.mxu0 %v3024
    %3091 = vmatprep.subr.mxu0 0.0
    %3092 = vmatpush1.msra.mxu0 %v3025
    %3093 = vmatprep.subr.mxu0 0.0
    %3094 = vmatpush1.msra.mxu0 %v3026
    %3095 = vmatprep.subr.mxu0 0.0
    %3096 = vmatpush1.msra.mxu0 %v3027
    %3097 = vmatprep.subr.mxu0 0.0
    %3098 = vmatpush1.msra.mxu0 %v3028
    %3099 = vmatprep.subr.mxu0 0.0
    %3100 = vmatpush1.msra.mxu0 %v3029
    %3101 = vmatprep.mubr.f32.mxu0 %v2983
    %3102 = vmatmul.mubr.f32.gmra.mrb[0].mxu0 %v2982
    %v3103 = vpop.f32.mrb[0].mxu0
    %v3104 = vadd.f32 %v3035, %v3103
    %v3105 = vpop.f32.mrb[0].mxu0
    %3106 = vmatprep.mubr.f32.mxu0 %v2985
    %3107 = vmatmul.mubr.f32.gmra.mrb[0].mxu0 %v2984
    %v3108 = vpop.f32.mrb[0].mxu0
    %v3109 = vadd.f32 %v3035, %v3108
    %v3110 = vpop.f32.mrb[0].mxu0
    %3111 = vmatprep.mubr.f32.mxu0 %v2987
    %3112 = vmatmul.mubr.f32.gmra.mrb[0].mxu0 %v2986
    %v3113 = vpop.f32.mrb[0].mxu0
    %v3114 = vadd.f32 %v3035, %v3113
    %v3115 = vpop.f32.mrb[0].mxu0
    %3116 = vmatprep.mubr.f32.mxu0 %v2989
    %3117 = vmatmul.mubr.f32.gmra.mrb[0].mxu0 %v2988
    %v3118 = vpop.f32.mrb[0].mxu0
    %v3119 = vadd.f32 %v3035, %v3118
    %v3120 = vpop.f32.mrb[0].mxu0
    %3121 = vmatprep.mubr.f32.mxu0 %v2991
    %3122 = vmatmul.mubr.f32.gmra.mrb[0].mxu0 %v2990
    %v3123 = vpop.f32.mrb[0].mxu0
    %v3124 = vadd.f32 %v3035, %v3123
    %v3125 = vpop.f32.mrb[0].mxu0
    %3126 = vmatprep.mubr.f32.mxu0 %v2993
    %3127 = vmatmul.mubr.f32.gmra.mrb[0].mxu0 %v2992
    %v3128 = vpop.f32.mrb[0].mxu0
    %v3129 = vadd.f32 %v3035, %v3128
    %v3130 = vpop.f32.mrb[0].mxu0
    %3131 = vmatprep.mubr.f32.mxu0 %v2995
    %3132 = vmatmul.mubr.f32.gmra.mrb[0].mxu0 %v2994
    %v3133 = vpop.f32.mrb[0].mxu0
    %v3134 = vadd.f32 %v3035, %v3133
    %v3135 = vpop.f32.mrb[0].mxu0
    %3136 = vmatprep.mubr.f32.mxu0 %v2997
    %3137 = vmatmul.mubr.f32.gmra.mrb[0].mxu0 %v2996
    %v3138 = vpop.f32.mrb[0].mxu0
    %v3139 = vadd.f32 %v3035, %v3138
    %v3140 = vpop.f32.mrb[0].mxu0
    %3141 = vdwg.mxu0
    %v3142 = vmax.f32 %v3104, 0.0
    %v3143 = vmax.f32 %v3109, 0.0
    %v3144 = vmax.f32 %v3114, 0.0
    %v3145 = vmax.f32 %v3119, 0.0
    %v3146 = vmax.f32 %v3124, 0.0
    %v3147 = vmax.f32 %v3129, 0.0
    %v3148 = vmax.f32 %v3134, 0.0
    %v3149 = vmax.f32 %v3139, 0.0
    %3150 = vst [vmem:[#allocation12] sm:$0xff] %v3142
    %3151 = vst [vmem:[#allocation12 + $0x8] sm:$0xff] %v3143
    %3152 = vst [vmem:[#allocation12 + $0x10] sm:$0xff] %v3144
    %3153 = vst [vmem:[#allocation12 + $0x18] sm:$0xff] %v3145
    %3154 = vst [vmem:[#allocation12 + $0x20] sm:$0xff] %v3146
    %3155 = vst [vmem:[#allocation12 + $0x28] sm:$0xff] %v3147
    %3156 = vst [vmem:[#allocation12 + $0x30] sm:$0xff] %v3148
    %3157 = vst [vmem:[#allocation12 + $0x38] sm:$0xff] %v3149
    // Predicated region
    $region50: #{tpu_custom_call.1} parent=1 // pred_check
      _
    $region51: #{tpu_custom_call.1} parent=1 // pred_check_branch
      %3159 = sbr.rel (0) target = $region53
    $region52: #{tpu_custom_call.1} parent=1 // pred_region
      %s3161 = ssub.s32 1024, 1024
      %3162 = vsyncadd [#allocation6], %s3161
      %s3163 = sshll.u32 [#allocation12], 4
      %s3164 = int_to_ptr.vmem [resolvable:$true] %s3163
      %3169 = dma.vmem_to_hbm [thread:$0]  %s3164, 1024, %s8, [#allocation6], 128, 128, 8
    $region53: #{tpu_custom_call.1} parent=1 // pred_fallthru
      _
    // Predicated region
    $region54: #{tpu_custom_call.1} parent=1 // pred_check
      _
    $region55: #{tpu_custom_call.1} parent=1 // pred_check_branch
      %3171 = sbr.rel (0) target = $region57
    $region56: #{tpu_custom_call.1} parent=1 // pred_region
      %3172 = dma.done [#allocation6], 1024
    $region57: #{tpu_custom_call.1} parent=1 // pred_fallthru
      _
    %3173 = vsyncpa [#allocation5], 1
    %3174 = vsyncpa [#allocation8], 1
    %3175 = vsyncpa [#allocation11], 1
    %3176 = vsyncpa [#allocation6], 1

</llo_original>
